<compile_context>
chip_gen: v7x
topology: tpu7x:2x2x1
jax: 0.10.0
libtpu: 0.0.40
codegen_flags: <defaults>
</compile_context>

<pallas_src>
import jax
import jax.numpy as jnp
from jax.experimental import pallas as pl
from jax.experimental.pallas import tpu as pltpu

NEG_SLOPE = 0.01  # PyTorch nn.LeakyReLU default

IMG_SIZE = (3, 96, 96)
HIDDEN = (256, 512, 2048)
LATENT = 100
OUT_DIM = IMG_SIZE[0] * IMG_SIZE[1] * IMG_SIZE[2]  # 27648


def _leaky_relu(x):
    return jnp.where(x > 0, x, NEG_SLOPE * x)


# ---------------------------------------------------------------------------
# Stage 1: tiny 3-layer MLP head, computed ONCE (grid of 1, all blocks full).
# Emits h in bf16 — exactly the operand the big projection kernel wants.
# ---------------------------------------------------------------------------
def mlp_head_kernel(z_ref, w1_ref, b1_ref, w2_ref, b2_ref, w3_ref, b3_ref,
                    h_ref):
    h = _leaky_relu(
        jnp.dot(z_ref[...], w1_ref[...], preferred_element_type=jnp.float32)
        + b1_ref[...])
    h = _leaky_relu(
        jnp.dot(h, w2_ref[...], preferred_element_type=jnp.float32)
        + b2_ref[...])
    h = _leaky_relu(
        jnp.dot(h, w3_ref[...], preferred_element_type=jnp.float32)
        + b3_ref[...])
    h_ref[...] = h.astype(h_ref.dtype)


def _mlp_head(z, w1, b1, w2, b2, w3, b3):
    B = z.shape[0]

    def full(shape):
        return pl.BlockSpec(shape, lambda i, _s=shape: (0,) * len(_s))

    return pl.pallas_call(
        mlp_head_kernel,
        out_shape=jax.ShapeDtypeStruct((B, HIDDEN[2]), jnp.bfloat16),
        grid_spec=pltpu.PrefetchScalarGridSpec(
            num_scalar_prefetch=0,
            grid=(1,),
            in_specs=[
                full((B, LATENT)),
                full((LATENT, HIDDEN[0])), full((1, HIDDEN[0])),
                full((HIDDEN[0], HIDDEN[1])), full((1, HIDDEN[1])),
                full((HIDDEN[1], HIDDEN[2])), full((1, HIDDEN[2])),
            ],
            out_specs=full((B, HIDDEN[2])),
        ),
        compiler_params=pltpu.CompilerParams(
            dimension_semantics=("arbitrary",),
            vmem_limit_bytes=32 * 1024 * 1024,
        ),
    )(z, w1, b1, w2, b2, w3, b3)


# ---------------------------------------------------------------------------
# Stage 2: big Linear(2048 -> 27648) + Tanh, HBM-bound on the int8 W4 stream.
# One grid axis over lane-dense output-column tiles. h / per-tile W4 / scale /
# bias come in via BlockSpec auto-pipelining (h has a constant block index so
# it stays VMEM-resident).
# ---------------------------------------------------------------------------
def img_proj_kernel(h_ref, w4_ref, s4_ref, b4_ref, o_ref):
    # Dequant path kept cheap: i8 -> f32 -> bf16 on the VPU (hidden under the
    # W4 tile DMA); the per-column scale is applied to the small (B, tn)
    # accumulator instead of the (2048, tn) weight tile.
    w_tile = w4_ref[...].astype(jnp.float32).astype(jnp.bfloat16)
    y = jnp.dot(h_ref[...], w_tile, preferred_element_type=jnp.float32)
    o_ref[...] = jnp.tanh(y * s4_ref[...] + b4_ref[...])


def generator_forward(z, qparams, *, tn=3456):
    """z: (B, LATENT) float32 -> image (B, 3, 96, 96) float32."""
    w1, b1, w2, b2, w3, b3, w4_i8, s4, b4 = qparams
    B = z.shape[0]

    assert OUT_DIM % tn == 0 and tn % 128 == 0
    n_tiles = OUT_DIM // tn  # 8 with tn=3456 (even -> 4/4 over v7x's two TCs)

    h = _mlp_head(z, w1, b1, w2, b2, w3, b3)  # (B, 2048) bf16

    cost = pl.CostEstimate(
        flops=2 * B * HIDDEN[2] * OUT_DIM,
        transcendentals=B * OUT_DIM,
        bytes_accessed=(h.size * 2 + w4_i8.size + s4.nbytes + b4.nbytes
                        + B * OUT_DIM * 4),
    )

    flat = pl.pallas_call(
        img_proj_kernel,
        out_shape=jax.ShapeDtypeStruct((B, OUT_DIM), jnp.float32),
        grid_spec=pltpu.PrefetchScalarGridSpec(
            num_scalar_prefetch=0,
            grid=(n_tiles,),
            in_specs=[
                pl.BlockSpec((B, HIDDEN[2]), lambda j: (0, 0)),   # h (bf16), VMEM-resident
                pl.BlockSpec((HIDDEN[2], tn), lambda j: (0, j)),  # W4 int8 column tile
                pl.BlockSpec((1, tn), lambda j: (0, j)),          # per-column scale (f32)
                pl.BlockSpec((1, tn), lambda j: (0, j)),          # bias (f32)
            ],
            out_specs=pl.BlockSpec((B, tn), lambda j: (0, j)),
        ),
        compiler_params=pltpu.CompilerParams(
            dimension_semantics=("parallel",),   # shard the W4 stream across TCs on v7x
            vmem_limit_bytes=40 * 1024 * 1024,   # ~15-30 MiB used; safe on v7x's 64 MiB
        ),
        cost_estimate=cost,
    )(h, w4_i8, s4, b4)

    # Same as PyTorch `.view(B, 3, 96, 96)` on the row-major flat vector.
    return flat.reshape(B, *IMG_SIZE)


# ---------------------------------------------------------------------------
# Parameters
# ---------------------------------------------------------------------------
def init_params(key):
    """Synthetic f32 parameters matching nn.Linear init / shapes, stored as
    (in, out) so the kernels do x @ W + b (== x @ W_torch.T + b)."""
    dims = [LATENT, HIDDEN[0], HIDDEN[1], HIDDEN[2], OUT_DIM]
    params = []
    keys = jax.random.split(key, len(dims) - 1)
    for k, (din, dout) in zip(keys, zip(dims[:-1], dims[1:])):
        bound = 1.0 / jnp.sqrt(din)
        kw, kb = jax.random.split(k)
        w = jax.random.uniform(kw, (din, dout), jnp.float32, -bound, bound)
        b = jax.random.uniform(kb, (1, dout), jnp.float32, -bound, bound)
        params.extend([w, b])
    return tuple(params)


def quantize_params(params):
    """Kernel-side parameter set: W4 -> symmetric int8 with per-output-column
    f32 scales (the only HBM-bandwidth-relevant tensor); everything else f32."""
    w1, b1, w2, b2, w3, b3, w4, b4 = params
    s4 = jnp.maximum(jnp.max(jnp.abs(w4), axis=0, keepdims=True), 1e-8) / 127.0
    w4_i8 = jnp.clip(jnp.round(w4 / s4), -127, 127).astype(jnp.int8)
    return (w1, b1, w2, b2, w3, b3, w4_i8, s4, b4)


# ---------------------------------------------------------------------------
# References
# ---------------------------------------------------------------------------
def _ref_hidden(z, params, precision):
    w1, b1, w2, b2, w3, b3 = params[:6]
    h = _leaky_relu(jnp.dot(z, w1, precision=precision) + b1)
    h = _leaky_relu(jnp.dot(h, w2, precision=precision) + b2)
    h = _leaky_relu(jnp.dot(h, w3, precision=precision) + b3)
    return h


def reference_forward_f32(z, params):
    """Plain-JAX reference of the original f32 PyTorch module semantics."""
    w4, b4 = params[6], params[7]
    hp = jax.lax.Precision.HIGHEST
    h = _ref_hidden(z, params, hp)
    y = jnp.tanh(jnp.dot(h, w4, precision=hp) + b4)
    return y.reshape(z.shape[0], *IMG_SIZE)


def reference_forward_mimic(z, params, qparams):
    """Reference that mimics the kernel's bf16 h and int8 W4 quantization, so
    it matches the kernel to accumulation/rounding noise."""
    w4_i8, s4, b4 = qparams[6], qparams[7], qparams[8]
    hp = jax.lax.Precision.HIGHEST
    h = _ref_hidden(z, params, hp)
    h_q = h.astype(jnp.bfloat16).astype(jnp.float32)
    y = jnp.dot(h_q, w4_i8.astype(jnp.float32), precision=hp) * s4 + b4
    return jnp.tanh(y).reshape(z.shape[0], *IMG_SIZE)


if __name__ == "__main__":
    key = jax.random.PRNGKey(0)
    k_params, k_z = jax.random.split(key)

    B = 8  # small demo batch (aligned to 8 sublanes)
    params = init_params(k_params)          # f32 "PyTorch" parameters
    qparams = quantize_params(params)       # kernel parameters (int8 W4)
    z = jax.random.normal(k_z, (B, LATENT), jnp.float32)

    out = jax.block_until_ready(generator_forward(z, qparams))
    assert out.shape == (B, *IMG_SIZE), out.shape

    # Tight check: same bf16-h / int8-W4 quantization as the kernel, only the
    # matmul accumulation order differs.
    ref_mimic = reference_forward_mimic(z, params, qparams)
    err_mimic = float(jnp.max(jnp.abs(out - ref_mimic)))
    assert err_mimic < 5e-3, err_mimic

    # Looser sanity check vs. the full-precision module semantics (bf16 h +
    # int8 W4 introduce a small, tanh-compressed error).
    ref_f32 = reference_forward_f32(z, params)
    err_f32 = float(jnp.max(jnp.abs(out - ref_f32)))
    assert err_f32 < 3e-2, err_f32

    print("KERNEL_OK")
</pallas_src>

<mosaic_0001>
module attributes {stable_mosaic.version = 11 : i64} {
  func.func @mlp_head_kernel(%arg0: i32, %arg1: memref<8x100xf32, #tpu.memory_space<vmem>>, %arg2: memref<100x256xf32, #tpu.memory_space<vmem>>, %arg3: memref<1x256xf32, #tpu.memory_space<vmem>>, %arg4: memref<256x512xf32, #tpu.memory_space<vmem>>, %arg5: memref<1x512xf32, #tpu.memory_space<vmem>>, %arg6: memref<512x2048xf32, #tpu.memory_space<vmem>>, %arg7: memref<1x2048xf32, #tpu.memory_space<vmem>>, %arg8: memref<8x2048xbf16, #tpu.memory_space<vmem>>) attributes {dimension_semantics = [#tpu.dimension_semantics<arbitrary>], iteration_bounds = array<i64: 1>, scalar_prefetch = 0 : i64, scratch_operands = 0 : i64, tpu.core_type = #tpu.core_type<tc>, window_params = [{pipeline_mode = #tpu.pipeline_mode<synchronous>, transform_indices = @transform_0, window_bounds = array<i64: 8, 100>}, {pipeline_mode = #tpu.pipeline_mode<synchronous>, transform_indices = @transform_1, window_bounds = array<i64: 100, 256>}, {pipeline_mode = #tpu.pipeline_mode<synchronous>, transform_indices = @transform_2, window_bounds = array<i64: 1, 256>}, {pipeline_mode = #tpu.pipeline_mode<synchronous>, transform_indices = @transform_3, window_bounds = array<i64: 256, 512>}, {pipeline_mode = #tpu.pipeline_mode<synchronous>, transform_indices = @transform_4, window_bounds = array<i64: 1, 512>}, {pipeline_mode = #tpu.pipeline_mode<synchronous>, transform_indices = @transform_5, window_bounds = array<i64: 512, 2048>}, {pipeline_mode = #tpu.pipeline_mode<synchronous>, transform_indices = @transform_6, window_bounds = array<i64: 1, 2048>}, {pipeline_mode = #tpu.pipeline_mode<synchronous>, transform_indices = @transform_7, window_bounds = array<i64: 8, 2048>}]} {
    %c0 = arith.constant 0 : index
    %c0_0 = arith.constant 0 : index
    %0 = vector.load %arg1[%c0, %c0_0] : memref<8x100xf32, #tpu.memory_space<vmem>>, vector<8x100xf32>
    %c0_1 = arith.constant 0 : index
    %c0_2 = arith.constant 0 : index
    %1 = vector.load %arg2[%c0_1, %c0_2] : memref<100x256xf32, #tpu.memory_space<vmem>>, vector<100x256xf32>
    %cst = arith.constant dense<0.000000e+00> : vector<8x256xf32>
    %2 = tpu.matmul %0, %1, %cst {dimension_numbers = #tpu.dot_dimension_numbers<[1], [0], [0], [1], [0, 0, 1, 1], [], []>} : vector<8x100xf32>, vector<100x256xf32>, vector<8x256xf32> -> vector<8x256xf32>
    %c0_3 = arith.constant 0 : index
    %c0_4 = arith.constant 0 : index
    %3 = vector.load %arg3[%c0_3, %c0_4] : memref<1x256xf32, #tpu.memory_space<vmem>>, vector<1x256xf32>
    %4 = vector.broadcast %3 : vector<1x256xf32> to vector<8x256xf32>
    %5 = arith.addf %2, %4 : vector<8x256xf32>
    %cst_5 = arith.constant 0.000000e+00 : f32
    %6 = vector.broadcast %cst_5 : f32 to vector<8x256xf32>
    %7 = arith.cmpf ogt, %5, %6 : vector<8x256xf32>
    %cst_6 = arith.constant 0.00999999977 : f32
    %8 = vector.broadcast %cst_6 : f32 to vector<8x256xf32>
    %9 = arith.mulf %8, %5 : vector<8x256xf32>
    %10 = arith.select %7, %5, %9 : vector<8x256xi1>, vector<8x256xf32>
    %c0_7 = arith.constant 0 : index
    %c0_8 = arith.constant 0 : index
    %11 = vector.load %arg4[%c0_7, %c0_8] : memref<256x512xf32, #tpu.memory_space<vmem>>, vector<256x512xf32>
    %cst_9 = arith.constant dense<0.000000e+00> : vector<8x512xf32>
    %12 = tpu.matmul %10, %11, %cst_9 {dimension_numbers = #tpu.dot_dimension_numbers<[1], [0], [0], [1], [0, 0, 1, 1], [], []>} : vector<8x256xf32>, vector<256x512xf32>, vector<8x512xf32> -> vector<8x512xf32>
    %c0_10 = arith.constant 0 : index
    %c0_11 = arith.constant 0 : index
    %13 = vector.load %arg5[%c0_10, %c0_11] : memref<1x512xf32, #tpu.memory_space<vmem>>, vector<1x512xf32>
    %14 = vector.broadcast %13 : vector<1x512xf32> to vector<8x512xf32>
    %15 = arith.addf %12, %14 : vector<8x512xf32>
    %cst_12 = arith.constant 0.000000e+00 : f32
    %16 = vector.broadcast %cst_12 : f32 to vector<8x512xf32>
    %17 = arith.cmpf ogt, %15, %16 : vector<8x512xf32>
    %cst_13 = arith.constant 0.00999999977 : f32
    %18 = vector.broadcast %cst_13 : f32 to vector<8x512xf32>
    %19 = arith.mulf %18, %15 : vector<8x512xf32>
    %20 = arith.select %17, %15, %19 : vector<8x512xi1>, vector<8x512xf32>
    %c0_14 = arith.constant 0 : index
    %c0_15 = arith.constant 0 : index
    %21 = vector.load %arg6[%c0_14, %c0_15] : memref<512x2048xf32, #tpu.memory_space<vmem>>, vector<512x2048xf32>
    %cst_16 = arith.constant dense<0.000000e+00> : vector<8x2048xf32>
    %22 = tpu.matmul %20, %21, %cst_16 {dimension_numbers = #tpu.dot_dimension_numbers<[1], [0], [0], [1], [0, 0, 1, 1], [], []>} : vector<8x512xf32>, vector<512x2048xf32>, vector<8x2048xf32> -> vector<8x2048xf32>
    %c0_17 = arith.constant 0 : index
    %c0_18 = arith.constant 0 : index
    %23 = vector.load %arg7[%c0_17, %c0_18] : memref<1x2048xf32, #tpu.memory_space<vmem>>, vector<1x2048xf32>
    %24 = vector.broadcast %23 : vector<1x2048xf32> to vector<8x2048xf32>
    %25 = arith.addf %22, %24 : vector<8x2048xf32>
    %cst_19 = arith.constant 0.000000e+00 : f32
    %26 = vector.broadcast %cst_19 : f32 to vector<8x2048xf32>
    %27 = arith.cmpf ogt, %25, %26 : vector<8x2048xf32>
    %cst_20 = arith.constant 0.00999999977 : f32
    %28 = vector.broadcast %cst_20 : f32 to vector<8x2048xf32>
    %29 = arith.mulf %28, %25 : vector<8x2048xf32>
    %30 = arith.select %27, %25, %29 : vector<8x2048xi1>, vector<8x2048xf32>
    %31 = arith.truncf %30 : vector<8x2048xf32> to vector<8x2048xbf16>
    %c0_21 = arith.constant 0 : index
    %c0_22 = arith.constant 0 : index
    %32 = vector.load %arg8[%c0_21, %c0_22] : memref<8x2048xbf16, #tpu.memory_space<vmem>>, vector<8x2048xbf16>
    tpu.vector_store %arg8[%c0_21, %c0_22], %31 {strides = array<i32>} : memref<8x2048xbf16, #tpu.memory_space<vmem>>, vector<8x2048xbf16>,
    return
  }
  func.func @transform_0(%arg0: i32) -> (i32, i32) {
    %c0_i32 = arith.constant 0 : i32
    %c0_i32_0 = arith.constant 0 : i32
    %c0_i32_1 = arith.constant 0 : i32
    return %c0_i32, %c0_i32_0 : i32, i32
  }
  func.func @transform_1(%arg0: i32) -> (i32, i32) {
    %c0_i32 = arith.constant 0 : i32
    %c0_i32_0 = arith.constant 0 : i32
    %c0_i32_1 = arith.constant 0 : i32
    return %c0_i32, %c0_i32_0 : i32, i32
  }
  func.func @transform_2(%arg0: i32) -> (i32, i32) {
    %c0_i32 = arith.constant 0 : i32
    %c0_i32_0 = arith.constant 0 : i32
    %c0_i32_1 = arith.constant 0 : i32
    return %c0_i32, %c0_i32_0 : i32, i32
  }
  func.func @transform_3(%arg0: i32) -> (i32, i32) {
    %c0_i32 = arith.constant 0 : i32
    %c0_i32_0 = arith.constant 0 : i32
    %c0_i32_1 = arith.constant 0 : i32
    return %c0_i32, %c0_i32_0 : i32, i32
  }
  func.func @transform_4(%arg0: i32) -> (i32, i32) {
    %c0_i32 = arith.constant 0 : i32
    %c0_i32_0 = arith.constant 0 : i32
    %c0_i32_1 = arith.constant 0 : i32
    return %c0_i32, %c0_i32_0 : i32, i32
  }
  func.func @transform_5(%arg0: i32) -> (i32, i32) {
    %c0_i32 = arith.constant 0 : i32
    %c0_i32_0 = arith.constant 0 : i32
    %c0_i32_1 = arith.constant 0 : i32
    return %c0_i32, %c0_i32_0 : i32, i32
  }
  func.func @transform_6(%arg0: i32) -> (i32, i32) {
    %c0_i32 = arith.constant 0 : i32
    %c0_i32_0 = arith.constant 0 : i32
    %c0_i32_1 = arith.constant 0 : i32
    return %c0_i32, %c0_i32_0 : i32, i32
  }
  func.func @transform_7(%arg0: i32) -> (i32, i32) {
    %c0_i32 = arith.constant 0 : i32
    %c0_i32_0 = arith.constant 0 : i32
    %c0_i32_1 = arith.constant 0 : i32
    return %c0_i32, %c0_i32_0 : i32, i32
  }
}

</mosaic_0001>

<llo_original>
// kernel: tpu_custom_call.1
$region0: #{tpu_custom_call.1}
  #allocation0 [shape = 'u32[]', space=smem, size = 0x4, offset = 0x4, fixed_abs, tag = 'smem constant byte address 0x4 - core index']
  #allocation1 [shape = 'u32[144,128]{1,0:T(1,128)}', space=vmem, size = 0x12000, scoped, tag = 'internal scratch']
  %s0 = inlined_call_operand.hbm [shape: f32[8,100], index: 0, kind: input, shape index: {}]
  %s1 = inlined_call_operand.hbm [shape: f32[100,256], index: 1, kind: input, shape index: {}]
  %s2 = inlined_call_operand.hbm [shape: f32[1,256], index: 2, kind: input, shape index: {}]
  %s3 = inlined_call_operand.hbm [shape: f32[256,512], index: 3, kind: input, shape index: {}]
  %s4 = inlined_call_operand.hbm [shape: f32[1,512], index: 4, kind: input, shape index: {}]
  %s5 = inlined_call_operand.hbm [shape: f32[512,2048], index: 5, kind: input, shape index: {}]
  %s6 = inlined_call_operand.hbm [shape: f32[1,2048], index: 6, kind: input, shape index: {}]
  %s7 = inlined_call_operand.hbm [shape: bf16[8,2048], index: 7, kind: output, shape index: {}]
  %s8 = sld [smem:[#allocation0]]
  $region66: #{tpu_custom_call.1} parent=0
    _
  %s10 = ssub.s32 1, %s8
  %s11 = scalar_select 0, %s10, %s8
  $region1: #{tpu_custom_call.1} parent=0
    #allocation2 [shape = 'u8[4096]{0}', space=vmem, size = 0x1000, scoped, tag = 'input window, operand 0, single buffered']
    #allocation3 [shape = 's32[1]{0}', space=sflag, size = 0x4, scoped, tag = 'scoped memory for tpu_custom_call.1']
    #allocation4 [shape = 's32[1]{0}', space=sflag, size = 0x4, scoped, tag = 'scoped memory for tpu_custom_call.1']
    #allocation5 [shape = 'u8[106496]{0}', space=vmem, size = 0x1a000, scoped, tag = 'input window, operand 1, single buffered']
    #allocation6 [shape = 's32[1]{0}', space=sflag, size = 0x4, scoped, tag = 'scoped memory for tpu_custom_call.1']
    #allocation7 [shape = 'u8[1024]{0}', space=vmem, size = 0x400, scoped, tag = 'input window, operand 2, single buffered']
    #allocation8 [shape = 'u8[524288]{0}', space=vmem, size = 0x80000, scoped, tag = 'input window, operand 3, single buffered']
    #allocation9 [shape = 's32[1]{0}', space=sflag, size = 0x4, scoped, tag = 'scoped memory for tpu_custom_call.1']
    #allocation10 [shape = 'u8[2048]{0}', space=vmem, size = 0x800, scoped, tag = 'input window, operand 4, single buffered']
    #allocation11 [shape = 'u8[4194304]{0}', space=vmem, size = 0x400000, scoped, tag = 'input window, operand 5, single buffered']
    #allocation12 [shape = 's32[1]{0}', space=sflag, size = 0x4, scoped, tag = 'scoped memory for tpu_custom_call.1']
    #allocation13 [shape = 'u8[8192]{0}', space=vmem, size = 0x2000, scoped, tag = 'input window, operand 6, single buffered']
    #allocation14 [shape = 'u8[32768]{0}', space=vmem, size = 0x8000, scoped, tag = 'output window, operand 0, single buffered']
    %12 = vsyncpa [#allocation3], 0
    %13 = vsyncpa [#allocation6], 0
    %14 = vsyncpa [#allocation9], 0
    %15 = vsyncpa [#allocation12], 0
    %16 = vsyncpa [#allocation4], 0
    // Predicated region
    $region2: #{tpu_custom_call.1} parent=1 // pred_check
      _
    $region3: #{tpu_custom_call.1} parent=1 // pred_check_branch
      %18 = sbr.rel (0) target = $region5
    $region4: #{tpu_custom_call.1} parent=1 // pred_region
      %s20 = ssub.s32 128, 128
      %21 = vsyncadd [#allocation3], %s20
      %s23 = sshll.u32 [#allocation2], 4
      %s24 = int_to_ptr.vmem [resolvable:$true] %s23
      %26 = dma.hbm_to_vmem [thread:$0]  %s0, 128, %s24, [#allocation3]
    $region5: #{tpu_custom_call.1} parent=1 // pred_fallthru
      _
    // Predicated region
    $region6: #{tpu_custom_call.1} parent=1 // pred_check
      _
    $region7: #{tpu_custom_call.1} parent=1 // pred_check_branch
      %28 = sbr.rel (0) target = $region9
    $region8: #{tpu_custom_call.1} parent=1 // pred_region
      %s30 = ssub.s32 3328, 3328
      %31 = vsyncadd [#allocation6], %s30
      %s32 = sshll.u32 [#allocation5], 4
      %s33 = int_to_ptr.vmem [resolvable:$true] %s32
      %38 = dma.hbm_to_vmem [thread:$0]  %s1, 3328, %s33, [#allocation6], 256, 256, 16
    $region9: #{tpu_custom_call.1} parent=1 // pred_fallthru
      _
    // Predicated region
    $region10: #{tpu_custom_call.1} parent=1 // pred_check
      _
    $region11: #{tpu_custom_call.1} parent=1 // pred_check_branch
      %40 = sbr.rel (0) target = $region13
    $region12: #{tpu_custom_call.1} parent=1 // pred_region
      %s42 = ssub.s32 32, 32
      %43 = vsyncadd [#allocation6], %s42
      %s45 = sshll.u32 [#allocation7], 4
      %s46 = int_to_ptr.vmem [resolvable:$true] %s45
      %48 = dma.hbm_to_vmem [thread:$0]  %s2, 32, %s46, [#allocation6]
    $region13: #{tpu_custom_call.1} parent=1 // pred_fallthru
      _
    // Predicated region
    $region14: #{tpu_custom_call.1} parent=1 // pred_check
      _
    $region15: #{tpu_custom_call.1} parent=1 // pred_check_branch
      %50 = sbr.rel (0) target = $region17
    $region16: #{tpu_custom_call.1} parent=1 // pred_region
      %s52 = ssub.s32 16384, 16384
      %53 = vsyncadd [#allocation9], %s52
      %s54 = sshll.u32 [#allocation8], 4
      %s55 = int_to_ptr.vmem [resolvable:$true] %s54
      %60 = dma.hbm_to_vmem [thread:$0]  %s3, 16384, %s55, [#allocation9], 512, 512, 32
    $region17: #{tpu_custom_call.1} parent=1 // pred_fallthru
      _
    // Predicated region
    $region18: #{tpu_custom_call.1} parent=1 // pred_check
      _
    $region19: #{tpu_custom_call.1} parent=1 // pred_check_branch
      %62 = sbr.rel (0) target = $region21
    $region20: #{tpu_custom_call.1} parent=1 // pred_region
      %s64 = ssub.s32 64, 64
      %65 = vsyncadd [#allocation9], %s64
      %s67 = sshll.u32 [#allocation10], 4
      %s68 = int_to_ptr.vmem [resolvable:$true] %s67
      %70 = dma.hbm_to_vmem [thread:$0]  %s4, 64, %s68, [#allocation9]
    $region21: #{tpu_custom_call.1} parent=1 // pred_fallthru
      _
    // Predicated region
    $region22: #{tpu_custom_call.1} parent=1 // pred_check
      _
    $region23: #{tpu_custom_call.1} parent=1 // pred_check_branch
      %72 = sbr.rel (0) target = $region25
    $region24: #{tpu_custom_call.1} parent=1 // pred_region
      %s74 = ssub.s32 131072, 131072
      %75 = vsyncadd [#allocation12], %s74
      %s76 = sshll.u32 [#allocation11], 4
      %s77 = int_to_ptr.vmem [resolvable:$true] %s76
      %82 = dma.hbm_to_vmem [thread:$0]  %s5, 131072, %s77, [#allocation12], 2048, 2048, 128
    $region25: #{tpu_custom_call.1} parent=1 // pred_fallthru
      _
    // Predicated region
    $region26: #{tpu_custom_call.1} parent=1 // pred_check
      _
    $region27: #{tpu_custom_call.1} parent=1 // pred_check_branch
      %84 = sbr.rel (0) target = $region29
    $region28: #{tpu_custom_call.1} parent=1 // pred_region
      %s86 = ssub.s32 256, 256
      %87 = vsyncadd [#allocation12], %s86
      %s89 = sshll.u32 [#allocation13], 4
      %s90 = int_to_ptr.vmem [resolvable:$true] %s89
      %92 = dma.hbm_to_vmem [thread:$0]  %s6, 256, %s90, [#allocation12]
    $region29: #{tpu_custom_call.1} parent=1 // pred_fallthru
      _
    // Predicated region
    $region30: #{tpu_custom_call.1} parent=1 // pred_check
      _
    $region31: #{tpu_custom_call.1} parent=1 // pred_check_branch
      %94 = sbr.rel (0) target = $region33
    $region32: #{tpu_custom_call.1} parent=1 // pred_region
      %95 = dma.done [#allocation3], 128
    $region33: #{tpu_custom_call.1} parent=1 // pred_fallthru
      _
    // Predicated region
    $region34: #{tpu_custom_call.1} parent=1 // pred_check
      _
    $region35: #{tpu_custom_call.1} parent=1 // pred_check_branch
      %97 = sbr.rel (0) target = $region37
    $region36: #{tpu_custom_call.1} parent=1 // pred_region
      %98 = dma.done [#allocation6], 3328
    $region37: #{tpu_custom_call.1} parent=1 // pred_fallthru
      _
    // Predicated region
    $region38: #{tpu_custom_call.1} parent=1 // pred_check
      _
    $region39: #{tpu_custom_call.1} parent=1 // pred_check_branch
      %100 = sbr.rel (0) target = $region41
    $region40: #{tpu_custom_call.1} parent=1 // pred_region
      %101 = dma.done [#allocation6], 32
    $region41: #{tpu_custom_call.1} parent=1 // pred_fallthru
      _
    // Predicated region
    $region42: #{tpu_custom_call.1} parent=1 // pred_check
      _
    $region43: #{tpu_custom_call.1} parent=1 // pred_check_branch
      %103 = sbr.rel (0) target = $region45
    $region44: #{tpu_custom_call.1} parent=1 // pred_region
      %104 = dma.done [#allocation9], 16384
    $region45: #{tpu_custom_call.1} parent=1 // pred_fallthru
      _
    // Predicated region
    $region46: #{tpu_custom_call.1} parent=1 // pred_check
      _
    $region47: #{tpu_custom_call.1} parent=1 // pred_check_branch
      %106 = sbr.rel (0) target = $region49
    $region48: #{tpu_custom_call.1} parent=1 // pred_region
      %107 = dma.done [#allocation9], 64
    $region49: #{tpu_custom_call.1} parent=1 // pred_fallthru
      _
    // Predicated region
    $region50: #{tpu_custom_call.1} parent=1 // pred_check
      _
    $region51: #{tpu_custom_call.1} parent=1 // pred_check_branch
      %109 = sbr.rel (0) target = $region53
    $region52: #{tpu_custom_call.1} parent=1 // pred_region
      %110 = dma.done [#allocation12], 131072
    $region53: #{tpu_custom_call.1} parent=1 // pred_fallthru
      _
    // Predicated region
    $region54: #{tpu_custom_call.1} parent=1 // pred_check
      _
    $region55: #{tpu_custom_call.1} parent=1 // pred_check_branch
      %112 = sbr.rel (0) target = $region57
    $region56: #{tpu_custom_call.1} parent=1 // pred_region
      %113 = dma.done [#allocation12], 256
    $region57: #{tpu_custom_call.1} parent=1 // pred_fallthru
      _
    %v114 = vld [vmem:[#allocation2] sm:$0xff]
    %v115 = vld [vmem:[#allocation5] sm:$0xff]
    %v116 = vld [vmem:[#allocation5 + $0x8] sm:$0xff]
    %v117 = vld [vmem:[#allocation5 + $0x10] sm:$0xff]
    %v118 = vld [vmem:[#allocation5 + $0x18] sm:$0xff]
    %v119 = vld [vmem:[#allocation5 + $0x20] sm:$0xff]
    %v120 = vld [vmem:[#allocation5 + $0x28] sm:$0xff]
    %v121 = vld [vmem:[#allocation5 + $0x30] sm:$0xff]
    %v122 = vld [vmem:[#allocation5 + $0x38] sm:$0xff]
    %v123 = vld [vmem:[#allocation5 + $0x40] sm:$0xff]
    %v124 = vld [vmem:[#allocation5 + $0x48] sm:$0xff]
    %v125 = vld [vmem:[#allocation5 + $0x50] sm:$0xff]
    %v126 = vld [vmem:[#allocation5 + $0x58] sm:$0xff]
    %v127 = vld [vmem:[#allocation5 + $0x60] sm:$0xff]
    %v128 = vld [vmem:[#allocation5 + $0x68] sm:$0xff]
    %v129 = vld [vmem:[#allocation5 + $0x70] sm:$0xff]
    %v130 = vld [vmem:[#allocation5 + $0x78] sm:$0xff]
    %v131 = vld [vmem:[#allocation5 + $0x80] sm:$0xff]
    %v132 = vld [vmem:[#allocation5 + $0x88] sm:$0xff]
    %v133 = vld [vmem:[#allocation5 + $0x90] sm:$0xff]
    %v134 = vld [vmem:[#allocation5 + $0x98] sm:$0xff]
    %v135 = vld [vmem:[#allocation5 + $0xa0] sm:$0xff]
    %v136 = vld [vmem:[#allocation5 + $0xa8] sm:$0xff]
    %v137 = vld [vmem:[#allocation5 + $0xb0] sm:$0xff]
    %v138 = vld [vmem:[#allocation5 + $0xb8] sm:$0xff]
    %v139 = vld [vmem:[#allocation5 + $0xc0] sm:$0xf]
    %v140 = vld [vmem:[#allocation5 + $0xc8] sm:$0xf]
    %v141 = vld [vmem:[#allocation7] sm:$0x3]
    %v143 = vlaneseq
    %v144 = vshrl.u32 %v143, 7
    %v145 = vsub.s32 0, %v144
    %v146 = vrot.slane %v141, %v145
    %v147 = vlaneseq
    %v148 = vshrl.u32 %v147, 7
    %v149 = vsub.s32 1, %v148
    %v150 = vrot.slane %v141, %v149
    %vm153 = vcmask 818176
    %v155 = vsel %vm153, %v114, 0
    %vm157 = vcmask 1043456
    %v159 = vsel %vm157, %v139, 0
    %v162 = vsel %vm157, %v140, 0
    %164 = vmatprep.subr.mxu0 %v116
    %165 = vmatpush1.msra.mxu0 %v115
    %166 = vmatprep.subr.mxu0 %v118
    %167 = vmatpush1.msra.mxu0 %v117
    %168 = vmatprep.subr.mxu0 %v120
    %169 = vmatpush1.msra.mxu0 %v119
    %170 = vmatprep.subr.mxu0 %v122
    %171 = vmatpush1.msra.mxu0 %v121
    %172 = vmatprep.subr.mxu0 %v124
    %173 = vmatpush1.msra.mxu0 %v123
    %174 = vmatprep.subr.mxu0 %v126
    %175 = vmatpush1.msra.mxu0 %v125
    %176 = vmatprep.subr.mxu0 %v128
    %177 = vmatpush1.msra.mxu0 %v127
    %178 = vmatprep.subr.mxu0 %v130
    %179 = vmatpush1.msra.mxu0 %v129
    %180 = vmatprep.subr.mxu0 %v132
    %181 = vmatpush1.msra.mxu0 %v131
    %182 = vmatprep.subr.mxu0 %v134
    %183 = vmatpush1.msra.mxu0 %v133
    %184 = vmatprep.subr.mxu0 %v136
    %185 = vmatpush1.msra.mxu0 %v135
    %186 = vmatprep.subr.mxu0 %v138
    %187 = vmatpush1.msra.mxu0 %v137
    %188 = vmatprep.subr.mxu0 %v162
    %189 = vmatpush1.msra.mxu0 %v159
    %190 = vmatprep.subr.mxu0 0.0
    %191 = vmatpush1.msra.mxu0 0.0
    %192 = vmatprep.subr.mxu0 0.0
    %193 = vmatpush1.msra.mxu0 0.0
    %194 = vmatprep.subr.mxu0 0.0
    %195 = vmatpush1.msra.mxu0 0.0
    %196 = vmatprep.subr.mxu0 0.0
    %197 = vmatpush1.msra.mxu0 0.0
    %198 = vmatprep.subr.mxu0 0.0
    %199 = vmatpush1.msra.mxu0 0.0
    %200 = vmatprep.subr.mxu0 0.0
    %201 = vmatpush1.msra.mxu0 0.0
    %202 = vmatprep.subr.mxu0 0.0
    %203 = vmatpush1.msra.mxu0 0.0
    %204 = vmatprep.subr.mxu0 0.0
    %205 = vmatpush1.msra.mxu0 0.0
    %206 = vmatprep.subr.mxu0 0.0
    %207 = vmatpush1.msra.mxu0 0.0
    %208 = vmatprep.subr.mxu0 0.0
    %209 = vmatpush1.msra.mxu0 0.0
    %210 = vmatprep.subr.mxu0 0.0
    %211 = vmatpush1.msra.mxu0 0.0
    %212 = vmatprep.subr.mxu0 0.0
    %213 = vmatpush1.msra.mxu0 0.0
    %214 = vmatprep.subr.mxu0 0.0
    %215 = vmatpush1.msra.mxu0 0.0
    %216 = vmatprep.subr.mxu0 0.0
    %217 = vmatpush1.msra.mxu0 0.0
    %218 = vmatprep.subr.mxu0 0.0
    %219 = vmatpush1.msra.mxu0 0.0
    %220 = vmatprep.subr.mxu0 0.0
    %221 = vmatpush1.msra.mxu0 0.0
    %222 = vmatprep.subr.mxu0 0.0
    %223 = vmatpush1.msra.mxu0 0.0
    %224 = vmatprep.subr.mxu0 0.0
    %225 = vmatpush1.msra.mxu0 0.0
    %226 = vmatprep.subr.mxu0 0.0
    %227 = vmatpush1.msra.mxu0 0.0
    %228 = vmatprep.mubr.f32.mxu0 0.0
    %229 = vmatmul.mubr.f32.gmra.mrb[0].mxu0 %v155
    %v230 = vpop.f32.mrb[0].mxu0
    %v231 = vadd.f32 %v146, %v230
    %v232 = vpop.f32.mrb[0].mxu0
    %v233 = vadd.f32 %v150, %v232
    %234 = vdwg.mxu0
    %vm235 = vcmp.gt.f32.partialorder %v231, 0.0
    %vm236 = vcmp.gt.f32.partialorder %v233, 0.0
    %v237 = vmul.f32 %v231, 0.01
    %v238 = vmul.f32 %v233, 0.01
    %v239 = vsel %vm235, %v231, %v237
    %v240 = vsel %vm236, %v233, %v238
    %v241 = vld [vmem:[#allocation8] sm:$0xff]
    %v242 = vld [vmem:[#allocation8 + $0x8] sm:$0xff]
    %v243 = vld [vmem:[#allocation8 + $0x10] sm:$0xff]
    %v244 = vld [vmem:[#allocation8 + $0x18] sm:$0xff]
    %v245 = vld [vmem:[#allocation8 + $0x20] sm:$0xff]
    %v246 = vld [vmem:[#allocation8 + $0x28] sm:$0xff]
    %v247 = vld [vmem:[#allocation8 + $0x30] sm:$0xff]
    %v248 = vld [vmem:[#allocation8 + $0x38] sm:$0xff]
    %v249 = vld [vmem:[#allocation8 + $0x40] sm:$0xff]
    %v250 = vld [vmem:[#allocation8 + $0x48] sm:$0xff]
    %v251 = vld [vmem:[#allocation8 + $0x50] sm:$0xff]
    %v252 = vld [vmem:[#allocation8 + $0x58] sm:$0xff]
    %v253 = vld [vmem:[#allocation8 + $0x60] sm:$0xff]
    %v254 = vld [vmem:[#allocation8 + $0x68] sm:$0xff]
    %v255 = vld [vmem:[#allocation8 + $0x70] sm:$0xff]
    %v256 = vld [vmem:[#allocation8 + $0x78] sm:$0xff]
    %v257 = vld [vmem:[#allocation8 + $0x80] sm:$0xff]
    %v258 = vld [vmem:[#allocation8 + $0x88] sm:$0xff]
    %v259 = vld [vmem:[#allocation8 + $0x90] sm:$0xff]
    %v260 = vld [vmem:[#allocation8 + $0x98] sm:$0xff]
    %v261 = vld [vmem:[#allocation8 + $0xa0] sm:$0xff]
    %v262 = vld [vmem:[#allocation8 + $0xa8] sm:$0xff]
    %v263 = vld [vmem:[#allocation8 + $0xb0] sm:$0xff]
    %v264 = vld [vmem:[#allocation8 + $0xb8] sm:$0xff]
    %v265 = vld [vmem:[#allocation8 + $0xc0] sm:$0xff]
    %v266 = vld [vmem:[#allocation8 + $0xc8] sm:$0xff]
    %v267 = vld [vmem:[#allocation8 + $0xd0] sm:$0xff]
    %v268 = vld [vmem:[#allocation8 + $0xd8] sm:$0xff]
    %v269 = vld [vmem:[#allocation8 + $0xe0] sm:$0xff]
    %v270 = vld [vmem:[#allocation8 + $0xe8] sm:$0xff]
    %v271 = vld [vmem:[#allocation8 + $0xf0] sm:$0xff]
    %v272 = vld [vmem:[#allocation8 + $0xf8] sm:$0xff]
    %v273 = vld [vmem:[#allocation8 + $0x100] sm:$0xff]
    %v274 = vld [vmem:[#allocation8 + $0x108] sm:$0xff]
    %v275 = vld [vmem:[#allocation8 + $0x110] sm:$0xff]
    %v276 = vld [vmem:[#allocation8 + $0x118] sm:$0xff]
    %v277 = vld [vmem:[#allocation8 + $0x120] sm:$0xff]
    %v278 = vld [vmem:[#allocation8 + $0x128] sm:$0xff]
    %v279 = vld [vmem:[#allocation8 + $0x130] sm:$0xff]
    %v280 = vld [vmem:[#allocation8 + $0x138] sm:$0xff]
    %v281 = vld [vmem:[#allocation8 + $0x140] sm:$0xff]
    %v282 = vld [vmem:[#allocation8 + $0x148] sm:$0xff]
    %v283 = vld [vmem:[#allocation8 + $0x150] sm:$0xff]
    %v284 = vld [vmem:[#allocation8 + $0x158] sm:$0xff]
    %v285 = vld [vmem:[#allocation8 + $0x160] sm:$0xff]
    %v286 = vld [vmem:[#allocation8 + $0x168] sm:$0xff]
    %v287 = vld [vmem:[#allocation8 + $0x170] sm:$0xff]
    %v288 = vld [vmem:[#allocation8 + $0x178] sm:$0xff]
    %v289 = vld [vmem:[#allocation8 + $0x180] sm:$0xff]
    %v290 = vld [vmem:[#allocation8 + $0x188] sm:$0xff]
    %v291 = vld [vmem:[#allocation8 + $0x190] sm:$0xff]
    %v292 = vld [vmem:[#allocation8 + $0x198] sm:$0xff]
    %v293 = vld [vmem:[#allocation8 + $0x1a0] sm:$0xff]
    %v294 = vld [vmem:[#allocation8 + $0x1a8] sm:$0xff]
    %v295 = vld [vmem:[#allocation8 + $0x1b0] sm:$0xff]
    %v296 = vld [vmem:[#allocation8 + $0x1b8] sm:$0xff]
    %v297 = vld [vmem:[#allocation8 + $0x1c0] sm:$0xff]
    %v298 = vld [vmem:[#allocation8 + $0x1c8] sm:$0xff]
    %v299 = vld [vmem:[#allocation8 + $0x1d0] sm:$0xff]
    %v300 = vld [vmem:[#allocation8 + $0x1d8] sm:$0xff]
    %v301 = vld [vmem:[#allocation8 + $0x1e0] sm:$0xff]
    %v302 = vld [vmem:[#allocation8 + $0x1e8] sm:$0xff]
    %v303 = vld [vmem:[#allocation8 + $0x1f0] sm:$0xff]
    %v304 = vld [vmem:[#allocation8 + $0x1f8] sm:$0xff]
    %v305 = vld [vmem:[#allocation8 + $0x200] sm:$0xff]
    %v306 = vld [vmem:[#allocation8 + $0x208] sm:$0xff]
    %v307 = vld [vmem:[#allocation8 + $0x210] sm:$0xff]
    %v308 = vld [vmem:[#allocation8 + $0x218] sm:$0xff]
    %v309 = vld [vmem:[#allocation8 + $0x220] sm:$0xff]
    %v310 = vld [vmem:[#allocation8 + $0x228] sm:$0xff]
    %v311 = vld [vmem:[#allocation8 + $0x230] sm:$0xff]
    %v312 = vld [vmem:[#allocation8 + $0x238] sm:$0xff]
    %v313 = vld [vmem:[#allocation8 + $0x240] sm:$0xff]
    %v314 = vld [vmem:[#allocation8 + $0x248] sm:$0xff]
    %v315 = vld [vmem:[#allocation8 + $0x250] sm:$0xff]
    %v316 = vld [vmem:[#allocation8 + $0x258] sm:$0xff]
    %v317 = vld [vmem:[#allocation8 + $0x260] sm:$0xff]
    %v318 = vld [vmem:[#allocation8 + $0x268] sm:$0xff]
    %v319 = vld [vmem:[#allocation8 + $0x270] sm:$0xff]
    %v320 = vld [vmem:[#allocation8 + $0x278] sm:$0xff]
    %v321 = vld [vmem:[#allocation8 + $0x280] sm:$0xff]
    %v322 = vld [vmem:[#allocation8 + $0x288] sm:$0xff]
    %v323 = vld [vmem:[#allocation8 + $0x290] sm:$0xff]
    %v324 = vld [vmem:[#allocation8 + $0x298] sm:$0xff]
    %v325 = vld [vmem:[#allocation8 + $0x2a0] sm:$0xff]
    %v326 = vld [vmem:[#allocation8 + $0x2a8] sm:$0xff]
    %v327 = vld [vmem:[#allocation8 + $0x2b0] sm:$0xff]
    %v328 = vld [vmem:[#allocation8 + $0x2b8] sm:$0xff]
    %v329 = vld [vmem:[#allocation8 + $0x2c0] sm:$0xff]
    %v330 = vld [vmem:[#allocation8 + $0x2c8] sm:$0xff]
    %v331 = vld [vmem:[#allocation8 + $0x2d0] sm:$0xff]
    %v332 = vld [vmem:[#allocation8 + $0x2d8] sm:$0xff]
    %v333 = vld [vmem:[#allocation8 + $0x2e0] sm:$0xff]
    %v334 = vld [vmem:[#allocation8 + $0x2e8] sm:$0xff]
    %v335 = vld [vmem:[#allocation8 + $0x2f0] sm:$0xff]
    %v336 = vld [vmem:[#allocation8 + $0x2f8] sm:$0xff]
    %v337 = vld [vmem:[#allocation8 + $0x300] sm:$0xff]
    %v338 = vld [vmem:[#allocation8 + $0x308] sm:$0xff]
    %v339 = vld [vmem:[#allocation8 + $0x310] sm:$0xff]
    %v340 = vld [vmem:[#allocation8 + $0x318] sm:$0xff]
    %v341 = vld [vmem:[#allocation8 + $0x320] sm:$0xff]
    %v342 = vld [vmem:[#allocation8 + $0x328] sm:$0xff]
    %v343 = vld [vmem:[#allocation8 + $0x330] sm:$0xff]
    %v344 = vld [vmem:[#allocation8 + $0x338] sm:$0xff]
    %v345 = vld [vmem:[#allocation8 + $0x340] sm:$0xff]
    %v346 = vld [vmem:[#allocation8 + $0x348] sm:$0xff]
    %v347 = vld [vmem:[#allocation8 + $0x350] sm:$0xff]
    %v348 = vld [vmem:[#allocation8 + $0x358] sm:$0xff]
    %v349 = vld [vmem:[#allocation8 + $0x360] sm:$0xff]
    %v350 = vld [vmem:[#allocation8 + $0x368] sm:$0xff]
    %v351 = vld [vmem:[#allocation8 + $0x370] sm:$0xff]
    %v352 = vld [vmem:[#allocation8 + $0x378] sm:$0xff]
    %v353 = vld [vmem:[#allocation8 + $0x380] sm:$0xff]
    %v354 = vld [vmem:[#allocation8 + $0x388] sm:$0xff]
    %v355 = vld [vmem:[#allocation8 + $0x390] sm:$0xff]
    %v356 = vld [vmem:[#allocation8 + $0x398] sm:$0xff]
    %v357 = vld [vmem:[#allocation8 + $0x3a0] sm:$0xff]
    %v358 = vld [vmem:[#allocation8 + $0x3a8] sm:$0xff]
    %v359 = vld [vmem:[#allocation8 + $0x3b0] sm:$0xff]
    %v360 = vld [vmem:[#allocation8 + $0x3b8] sm:$0xff]
    %v361 = vld [vmem:[#allocation8 + $0x3c0] sm:$0xff]
    %v362 = vld [vmem:[#allocation8 + $0x3c8] sm:$0xff]
    %v363 = vld [vmem:[#allocation8 + $0x3d0] sm:$0xff]
    %v364 = vld [vmem:[#allocation8 + $0x3d8] sm:$0xff]
    %v365 = vld [vmem:[#allocation8 + $0x3e0] sm:$0xff]
    %v366 = vld [vmem:[#allocation8 + $0x3e8] sm:$0xff]
    %v367 = vld [vmem:[#allocation8 + $0x3f0] sm:$0xff]
    %v368 = vld [vmem:[#allocation8 + $0x3f8] sm:$0xff]
    %v369 = vld [vmem:[#allocation10] sm:$0xf]
    %v371 = vlaneseq
    %v372 = vshrl.u32 %v371, 7
    %v373 = vsub.s32 0, %v372
    %v374 = vrot.slane %v369, %v373
    %v375 = vlaneseq
    %v376 = vshrl.u32 %v375, 7
    %v377 = vsub.s32 1, %v376
    %v378 = vrot.slane %v369, %v377
    %v379 = vlaneseq
    %v380 = vshrl.u32 %v379, 7
    %v381 = vsub.s32 2, %v380
    %v382 = vrot.slane %v369, %v381
    %v383 = vlaneseq
    %v384 = vshrl.u32 %v383, 7
    %v385 = vsub.s32 3, %v384
    %v386 = vrot.slane %v369, %v385
    %391 = vmatprep.subr.mxu0 %v242
    %392 = vmatpush1.msra.mxu0 %v241
    %393 = vmatprep.subr.mxu0 %v246
    %394 = vmatpush1.msra.mxu0 %v245
    %395 = vmatprep.subr.mxu0 %v250
    %396 = vmatpush1.msra.mxu0 %v249
    %397 = vmatprep.subr.mxu0 %v254
    %398 = vmatpush1.msra.mxu0 %v253
    %399 = vmatprep.subr.mxu0 %v258
    %400 = vmatpush1.msra.mxu0 %v257
    %401 = vmatprep.subr.mxu0 %v262
    %402 = vmatpush1.msra.mxu0 %v261
    %403 = vmatprep.subr.mxu0 %v266
    %404 = vmatpush1.msra.mxu0 %v265
    %405 = vmatprep.subr.mxu0 %v270
    %406 = vmatpush1.msra.mxu0 %v269
    %407 = vmatprep.subr.mxu0 %v274
    %408 = vmatpush1.msra.mxu0 %v273
    %409 = vmatprep.subr.mxu0 %v278
    %410 = vmatpush1.msra.mxu0 %v277
    %411 = vmatprep.subr.mxu0 %v282
    %412 = vmatpush1.msra.mxu0 %v281
    %413 = vmatprep.subr.mxu0 %v286
    %414 = vmatpush1.msra.mxu0 %v285
    %415 = vmatprep.subr.mxu0 %v290
    %416 = vmatpush1.msra.mxu0 %v289
    %417 = vmatprep.subr.mxu0 %v294
    %418 = vmatpush1.msra.mxu0 %v293
    %419 = vmatprep.subr.mxu0 %v298
    %420 = vmatpush1.msra.mxu0 %v297
    %421 = vmatprep.subr.mxu0 %v302
    %422 = vmatpush1.msra.mxu0 %v301
    %423 = vmatprep.subr.mxu0 %v306
    %424 = vmatpush1.msra.mxu0 %v305
    %425 = vmatprep.subr.mxu0 %v310
    %426 = vmatpush1.msra.mxu0 %v309
    %427 = vmatprep.subr.mxu0 %v314
    %428 = vmatpush1.msra.mxu0 %v313
    %429 = vmatprep.subr.mxu0 %v318
    %430 = vmatpush1.msra.mxu0 %v317
    %431 = vmatprep.subr.mxu0 %v322
    %432 = vmatpush1.msra.mxu0 %v321
    %433 = vmatprep.subr.mxu0 %v326
    %434 = vmatpush1.msra.mxu0 %v325
    %435 = vmatprep.subr.mxu0 %v330
    %436 = vmatpush1.msra.mxu0 %v329
    %437 = vmatprep.subr.mxu0 %v334
    %438 = vmatpush1.msra.mxu0 %v333
    %439 = vmatprep.subr.mxu0 %v338
    %440 = vmatpush1.msra.mxu0 %v337
    %441 = vmatprep.subr.mxu0 %v342
    %442 = vmatpush1.msra.mxu0 %v341
    %443 = vmatprep.subr.mxu0 %v346
    %444 = vmatpush1.msra.mxu0 %v345
    %445 = vmatprep.subr.mxu0 %v350
    %446 = vmatpush1.msra.mxu0 %v349
    %447 = vmatprep.subr.mxu0 %v354
    %448 = vmatpush1.msra.mxu0 %v353
    %449 = vmatprep.subr.mxu0 %v358
    %450 = vmatpush1.msra.mxu0 %v357
    %451 = vmatprep.subr.mxu0 %v362
    %452 = vmatpush1.msra.mxu0 %v361
    %453 = vmatprep.subr.mxu0 %v366
    %454 = vmatpush1.msra.mxu0 %v365
    %455 = vmatprep.mubr.f32.mxu0 %v240
    %456 = vmatmul.mubr.f32.gmra.mrb[0].mxu0 %v239
    %v457 = vpop.f32.mrb[0].mxu0
    %v458 = vadd.f32 %v374, %v457
    %v459 = vpop.f32.mrb[0].mxu0
    %v460 = vadd.f32 %v378, %v459
    %461 = vdwg.mxu0
    %462 = vmatprep.subr.mxu0 %v244
    %463 = vmatpush1.msra.mxu0 %v243
    %464 = vmatprep.subr.mxu0 %v248
    %465 = vmatpush1.msra.mxu0 %v247
    %466 = vmatprep.subr.mxu0 %v252
    %467 = vmatpush1.msra.mxu0 %v251
    %468 = vmatprep.subr.mxu0 %v256
    %469 = vmatpush1.msra.mxu0 %v255
    %470 = vmatprep.subr.mxu0 %v260
    %471 = vmatpush1.msra.mxu0 %v259
    %472 = vmatprep.subr.mxu0 %v264
    %473 = vmatpush1.msra.mxu0 %v263
    %474 = vmatprep.subr.mxu0 %v268
    %475 = vmatpush1.msra.mxu0 %v267
    %476 = vmatprep.subr.mxu0 %v272
    %477 = vmatpush1.msra.mxu0 %v271
    %478 = vmatprep.subr.mxu0 %v276
    %479 = vmatpush1.msra.mxu0 %v275
    %480 = vmatprep.subr.mxu0 %v280
    %481 = vmatpush1.msra.mxu0 %v279
    %482 = vmatprep.subr.mxu0 %v284
    %483 = vmatpush1.msra.mxu0 %v283
    %484 = vmatprep.subr.mxu0 %v288
    %485 = vmatpush1.msra.mxu0 %v287
    %486 = vmatprep.subr.mxu0 %v292
    %487 = vmatpush1.msra.mxu0 %v291
    %488 = vmatprep.subr.mxu0 %v296
    %489 = vmatpush1.msra.mxu0 %v295
    %490 = vmatprep.subr.mxu0 %v300
    %491 = vmatpush1.msra.mxu0 %v299
    %492 = vmatprep.subr.mxu0 %v304
    %493 = vmatpush1.msra.mxu0 %v303
    %494 = vmatprep.subr.mxu0 %v308
    %495 = vmatpush1.msra.mxu0 %v307
    %496 = vmatprep.subr.mxu0 %v312
    %497 = vmatpush1.msra.mxu0 %v311
    %498 = vmatprep.subr.mxu0 %v316
    %499 = vmatpush1.msra.mxu0 %v315
    %500 = vmatprep.subr.mxu0 %v320
    %501 = vmatpush1.msra.mxu0 %v319
    %502 = vmatprep.subr.mxu0 %v324
    %503 = vmatpush1.msra.mxu0 %v323
    %504 = vmatprep.subr.mxu0 %v328
    %505 = vmatpush1.msra.mxu0 %v327
    %506 = vmatprep.subr.mxu0 %v332
    %507 = vmatpush1.msra.mxu0 %v331
    %508 = vmatprep.subr.mxu0 %v336
    %509 = vmatpush1.msra.mxu0 %v335
    %510 = vmatprep.subr.mxu0 %v340
    %511 = vmatpush1.msra.mxu0 %v339
    %512 = vmatprep.subr.mxu0 %v344
    %513 = vmatpush1.msra.mxu0 %v343
    %514 = vmatprep.subr.mxu0 %v348
    %515 = vmatpush1.msra.mxu0 %v347
    %516 = vmatprep.subr.mxu0 %v352
    %517 = vmatpush1.msra.mxu0 %v351
    %518 = vmatprep.subr.mxu0 %v356
    %519 = vmatpush1.msra.mxu0 %v355
    %520 = vmatprep.subr.mxu0 %v360
    %521 = vmatpush1.msra.mxu0 %v359
    %522 = vmatprep.subr.mxu0 %v364
    %523 = vmatpush1.msra.mxu0 %v363
    %524 = vmatprep.subr.mxu0 %v368
    %525 = vmatpush1.msra.mxu0 %v367
    %526 = vmatprep.mubr.f32.mxu0 %v240
    %527 = vmatmul.mubr.f32.gmra.mrb[0].mxu0 %v239
    %v528 = vpop.f32.mrb[0].mxu0
    %v529 = vadd.f32 %v382, %v528
    %v530 = vpop.f32.mrb[0].mxu0
    %v531 = vadd.f32 %v386, %v530
    %532 = vdwg.mxu0
    %vm533 = vcmp.gt.f32.partialorder %v458, 0.0
    %vm534 = vcmp.gt.f32.partialorder %v460, 0.0
    %vm535 = vcmp.gt.f32.partialorder %v529, 0.0
    %vm536 = vcmp.gt.f32.partialorder %v531, 0.0
    %v537 = vmul.f32 %v458, 0.01
    %v538 = vmul.f32 %v460, 0.01
    %v539 = vmul.f32 %v529, 0.01
    %v540 = vmul.f32 %v531, 0.01
    %v541 = vsel %vm533, %v458, %v537
    %v542 = vsel %vm534, %v460, %v538
    %v543 = vsel %vm535, %v529, %v539
    %v544 = vsel %vm536, %v531, %v540
    %v545 = vld [vmem:[#allocation11] sm:$0xff]
    %v546 = vld [vmem:[#allocation11 + $0x8] sm:$0xff]
    %v547 = vld [vmem:[#allocation11 + $0x10] sm:$0xff]
    %v548 = vld [vmem:[#allocation11 + $0x18] sm:$0xff]
    %v549 = vld [vmem:[#allocation11 + $0x20] sm:$0xff]
    %v550 = vld [vmem:[#allocation11 + $0x28] sm:$0xff]
    %v551 = vld [vmem:[#allocation11 + $0x30] sm:$0xff]
    %v552 = vld [vmem:[#allocation11 + $0x38] sm:$0xff]
    %v553 = vld [vmem:[#allocation11 + $0x40] sm:$0xff]
    %v554 = vld [vmem:[#allocation11 + $0x48] sm:$0xff]
    %v555 = vld [vmem:[#allocation11 + $0x50] sm:$0xff]
    %v556 = vld [vmem:[#allocation11 + $0x58] sm:$0xff]
    %v557 = vld [vmem:[#allocation11 + $0x60] sm:$0xff]
    %v558 = vld [vmem:[#allocation11 + $0x68] sm:$0xff]
    %v559 = vld [vmem:[#allocation11 + $0x70] sm:$0xff]
    %v560 = vld [vmem:[#allocation11 + $0x78] sm:$0xff]
    %v561 = vld [vmem:[#allocation11 + $0x80] sm:$0xff]
    %v562 = vld [vmem:[#allocation11 + $0x88] sm:$0xff]
    %v563 = vld [vmem:[#allocation11 + $0x90] sm:$0xff]
    %v564 = vld [vmem:[#allocation11 + $0x98] sm:$0xff]
    %v565 = vld [vmem:[#allocation11 + $0xa0] sm:$0xff]
    %v566 = vld [vmem:[#allocation11 + $0xa8] sm:$0xff]
    %v567 = vld [vmem:[#allocation11 + $0xb0] sm:$0xff]
    %v568 = vld [vmem:[#allocation11 + $0xb8] sm:$0xff]
    %v569 = vld [vmem:[#allocation11 + $0xc0] sm:$0xff]
    %v570 = vld [vmem:[#allocation11 + $0xc8] sm:$0xff]
    %v571 = vld [vmem:[#allocation11 + $0xd0] sm:$0xff]
    %v572 = vld [vmem:[#allocation11 + $0xd8] sm:$0xff]
    %v573 = vld [vmem:[#allocation11 + $0xe0] sm:$0xff]
    %v574 = vld [vmem:[#allocation11 + $0xe8] sm:$0xff]
    %v575 = vld [vmem:[#allocation11 + $0xf0] sm:$0xff]
    %v576 = vld [vmem:[#allocation11 + $0xf8] sm:$0xff]
    %v577 = vld [vmem:[#allocation11 + $0x100] sm:$0xff]
    %v578 = vld [vmem:[#allocation11 + $0x108] sm:$0xff]
    %v579 = vld [vmem:[#allocation11 + $0x110] sm:$0xff]
    %v580 = vld [vmem:[#allocation11 + $0x118] sm:$0xff]
    %v581 = vld [vmem:[#allocation11 + $0x120] sm:$0xff]
    %v582 = vld [vmem:[#allocation11 + $0x128] sm:$0xff]
    %v583 = vld [vmem:[#allocation11 + $0x130] sm:$0xff]
    %v584 = vld [vmem:[#allocation11 + $0x138] sm:$0xff]
    %v585 = vld [vmem:[#allocation11 + $0x140] sm:$0xff]
    %v586 = vld [vmem:[#allocation11 + $0x148] sm:$0xff]
    %v587 = vld [vmem:[#allocation11 + $0x150] sm:$0xff]
    %v588 = vld [vmem:[#allocation11 + $0x158] sm:$0xff]
    %v589 = vld [vmem:[#allocation11 + $0x160] sm:$0xff]
    %v590 = vld [vmem:[#allocation11 + $0x168] sm:$0xff]
    %v591 = vld [vmem:[#allocation11 + $0x170] sm:$0xff]
    %v592 = vld [vmem:[#allocation11 + $0x178] sm:$0xff]
    %v593 = vld [vmem:[#allocation11 + $0x180] sm:$0xff]
    %v594 = vld [vmem:[#allocation11 + $0x188] sm:$0xff]
    %v595 = vld [vmem:[#allocation11 + $0x190] sm:$0xff]
    %v596 = vld [vmem:[#allocation11 + $0x198] sm:$0xff]
    %v597 = vld [vmem:[#allocation11 + $0x1a0] sm:$0xff]
    %v598 = vld [vmem:[#allocation11 + $0x1a8] sm:$0xff]
    %v599 = vld [vmem:[#allocation11 + $0x1b0] sm:$0xff]
    %v600 = vld [vmem:[#allocation11 + $0x1b8] sm:$0xff]
    %v601 = vld [vmem:[#allocation11 + $0x1c0] sm:$0xff]
    %v602 = vld [vmem:[#allocation11 + $0x1c8] sm:$0xff]
    %v603 = vld [vmem:[#allocation11 + $0x1d0] sm:$0xff]
    %v604 = vld [vmem:[#allocation11 + $0x1d8] sm:$0xff]
    %v605 = vld [vmem:[#allocation11 + $0x1e0] sm:$0xff]
    %v606 = vld [vmem:[#allocation11 + $0x1e8] sm:$0xff]
    %v607 = vld [vmem:[#allocation11 + $0x1f0] sm:$0xff]
    %v608 = vld [vmem:[#allocation11 + $0x1f8] sm:$0xff]
    %v609 = vld [vmem:[#allocation11 + $0x200] sm:$0xff]
    %v610 = vld [vmem:[#allocation11 + $0x208] sm:$0xff]
    %v611 = vld [vmem:[#allocation11 + $0x210] sm:$0xff]
    %v612 = vld [vmem:[#allocation11 + $0x218] sm:$0xff]
    %v613 = vld [vmem:[#allocation11 + $0x220] sm:$0xff]
    %v614 = vld [vmem:[#allocation11 + $0x228] sm:$0xff]
    %v615 = vld [vmem:[#allocation11 + $0x230] sm:$0xff]
    %v616 = vld [vmem:[#allocation11 + $0x238] sm:$0xff]
    %v617 = vld [vmem:[#allocation11 + $0x240] sm:$0xff]
    %v618 = vld [vmem:[#allocation11 + $0x248] sm:$0xff]
    %v619 = vld [vmem:[#allocation11 + $0x250] sm:$0xff]
    %v620 = vld [vmem:[#allocation11 + $0x258] sm:$0xff]
    %v621 = vld [vmem:[#allocation11 + $0x260] sm:$0xff]
    %v622 = vld [vmem:[#allocation11 + $0x268] sm:$0xff]
    %v623 = vld [vmem:[#allocation11 + $0x270] sm:$0xff]
    %v624 = vld [vmem:[#allocation11 + $0x278] sm:$0xff]
    %v625 = vld [vmem:[#allocation11 + $0x280] sm:$0xff]
    %v626 = vld [vmem:[#allocation11 + $0x288] sm:$0xff]
    %v627 = vld [vmem:[#allocation11 + $0x290] sm:$0xff]
    %v628 = vld [vmem:[#allocation11 + $0x298] sm:$0xff]
    %v629 = vld [vmem:[#allocation11 + $0x2a0] sm:$0xff]
    %v630 = vld [vmem:[#allocation11 + $0x2a8] sm:$0xff]
    %v631 = vld [vmem:[#allocation11 + $0x2b0] sm:$0xff]
    %v632 = vld [vmem:[#allocation11 + $0x2b8] sm:$0xff]
    %v633 = vld [vmem:[#allocation11 + $0x2c0] sm:$0xff]
    %v634 = vld [vmem:[#allocation11 + $0x2c8] sm:$0xff]
    %v635 = vld [vmem:[#allocation11 + $0x2d0] sm:$0xff]
    %v636 = vld [vmem:[#allocation11 + $0x2d8] sm:$0xff]
    %v637 = vld [vmem:[#allocation11 + $0x2e0] sm:$0xff]
    %v638 = vld [vmem:[#allocation11 + $0x2e8] sm:$0xff]
    %v639 = vld [vmem:[#allocation11 + $0x2f0] sm:$0xff]
    %v640 = vld [vmem:[#allocation11 + $0x2f8] sm:$0xff]
    %v641 = vld [vmem:[#allocation11 + $0x300] sm:$0xff]
    %v642 = vld [vmem:[#allocation11 + $0x308] sm:$0xff]
    %v643 = vld [vmem:[#allocation11 + $0x310] sm:$0xff]
    %v644 = vld [vmem:[#allocation11 + $0x318] sm:$0xff]
    %v645 = vld [vmem:[#allocation11 + $0x320] sm:$0xff]
    %v646 = vld [vmem:[#allocation11 + $0x328] sm:$0xff]
    %v647 = vld [vmem:[#allocation11 + $0x330] sm:$0xff]
    %v648 = vld [vmem:[#allocation11 + $0x338] sm:$0xff]
    %v649 = vld [vmem:[#allocation11 + $0x340] sm:$0xff]
    %v650 = vld [vmem:[#allocation11 + $0x348] sm:$0xff]
    %v651 = vld [vmem:[#allocation11 + $0x350] sm:$0xff]
    %v652 = vld [vmem:[#allocation11 + $0x358] sm:$0xff]
    %v653 = vld [vmem:[#allocation11 + $0x360] sm:$0xff]
    %v654 = vld [vmem:[#allocation11 + $0x368] sm:$0xff]
    %v655 = vld [vmem:[#allocation11 + $0x370] sm:$0xff]
    %v656 = vld [vmem:[#allocation11 + $0x378] sm:$0xff]
    %v657 = vld [vmem:[#allocation11 + $0x380] sm:$0xff]
    %v658 = vld [vmem:[#allocation11 + $0x388] sm:$0xff]
    %v659 = vld [vmem:[#allocation11 + $0x390] sm:$0xff]
    %v660 = vld [vmem:[#allocation11 + $0x398] sm:$0xff]
    %v661 = vld [vmem:[#allocation11 + $0x3a0] sm:$0xff]
    %v662 = vld [vmem:[#allocation11 + $0x3a8] sm:$0xff]
    %v663 = vld [vmem:[#allocation11 + $0x3b0] sm:$0xff]
    %v664 = vld [vmem:[#allocation11 + $0x3b8] sm:$0xff]
    %v665 = vld [vmem:[#allocation11 + $0x3c0] sm:$0xff]
    %v666 = vld [vmem:[#allocation11 + $0x3c8] sm:$0xff]
    %v667 = vld [vmem:[#allocation11 + $0x3d0] sm:$0xff]
    %v668 = vld [vmem:[#allocation11 + $0x3d8] sm:$0xff]
    %v669 = vld [vmem:[#allocation11 + $0x3e0] sm:$0xff]
    %v670 = vld [vmem:[#allocation11 + $0x3e8] sm:$0xff]
    %v671 = vld [vmem:[#allocation11 + $0x3f0] sm:$0xff]
    %v672 = vld [vmem:[#allocation11 + $0x3f8] sm:$0xff]
    %v673 = vld [vmem:[#allocation11 + $0x400] sm:$0xff]
    %v674 = vld [vmem:[#allocation11 + $0x408] sm:$0xff]
    %v675 = vld [vmem:[#allocation11 + $0x410] sm:$0xff]
    %v676 = vld [vmem:[#allocation11 + $0x418] sm:$0xff]
    %v677 = vld [vmem:[#allocation11 + $0x420] sm:$0xff]
    %v678 = vld [vmem:[#allocation11 + $0x428] sm:$0xff]
    %v679 = vld [vmem:[#allocation11 + $0x430] sm:$0xff]
    %v680 = vld [vmem:[#allocation11 + $0x438] sm:$0xff]
    %v681 = vld [vmem:[#allocation11 + $0x440] sm:$0xff]
    %v682 = vld [vmem:[#allocation11 + $0x448] sm:$0xff]
    %v683 = vld [vmem:[#allocation11 + $0x450] sm:$0xff]
    %v684 = vld [vmem:[#allocation11 + $0x458] sm:$0xff]
    %v685 = vld [vmem:[#allocation11 + $0x460] sm:$0xff]
    %v686 = vld [vmem:[#allocation11 + $0x468] sm:$0xff]
    %v687 = vld [vmem:[#allocation11 + $0x470] sm:$0xff]
    %v688 = vld [vmem:[#allocation11 + $0x478] sm:$0xff]
    %v689 = vld [vmem:[#allocation11 + $0x480] sm:$0xff]
    %v690 = vld [vmem:[#allocation11 + $0x488] sm:$0xff]
    %v691 = vld [vmem:[#allocation11 + $0x490] sm:$0xff]
    %v692 = vld [vmem:[#allocation11 + $0x498] sm:$0xff]
    %v693 = vld [vmem:[#allocation11 + $0x4a0] sm:$0xff]
    %v694 = vld [vmem:[#allocation11 + $0x4a8] sm:$0xff]
    %v695 = vld [vmem:[#allocation11 + $0x4b0] sm:$0xff]
    %v696 = vld [vmem:[#allocation11 + $0x4b8] sm:$0xff]
    %v697 = vld [vmem:[#allocation11 + $0x4c0] sm:$0xff]
    %v698 = vld [vmem:[#allocation11 + $0x4c8] sm:$0xff]
    %v699 = vld [vmem:[#allocation11 + $0x4d0] sm:$0xff]
    %v700 = vld [vmem:[#allocation11 + $0x4d8] sm:$0xff]
    %v701 = vld [vmem:[#allocation11 + $0x4e0] sm:$0xff]
    %v702 = vld [vmem:[#allocation11 + $0x4e8] sm:$0xff]
    %v703 = vld [vmem:[#allocation11 + $0x4f0] sm:$0xff]
    %v704 = vld [vmem:[#allocation11 + $0x4f8] sm:$0xff]
    %v705 = vld [vmem:[#allocation11 + $0x500] sm:$0xff]
    %v706 = vld [vmem:[#allocation11 + $0x508] sm:$0xff]
    %v707 = vld [vmem:[#allocation11 + $0x510] sm:$0xff]
    %v708 = vld [vmem:[#allocation11 + $0x518] sm:$0xff]
    %v709 = vld [vmem:[#allocation11 + $0x520] sm:$0xff]
    %v710 = vld [vmem:[#allocation11 + $0x528] sm:$0xff]
    %v711 = vld [vmem:[#allocation11 + $0x530] sm:$0xff]
    %v712 = vld [vmem:[#allocation11 + $0x538] sm:$0xff]
    %v713 = vld [vmem:[#allocation11 + $0x540] sm:$0xff]
    %v714 = vld [vmem:[#allocation11 + $0x548] sm:$0xff]
    %v715 = vld [vmem:[#allocation11 + $0x550] sm:$0xff]
    %v716 = vld [vmem:[#allocation11 + $0x558] sm:$0xff]
    %v717 = vld [vmem:[#allocation11 + $0x560] sm:$0xff]
    %v718 = vld [vmem:[#allocation11 + $0x568] sm:$0xff]
    %v719 = vld [vmem:[#allocation11 + $0x570] sm:$0xff]
    %v720 = vld [vmem:[#allocation11 + $0x578] sm:$0xff]
    %v721 = vld [vmem:[#allocation11 + $0x580] sm:$0xff]
    %v722 = vld [vmem:[#allocation11 + $0x588] sm:$0xff]
    %v723 = vld [vmem:[#allocation11 + $0x590] sm:$0xff]
    %v724 = vld [vmem:[#allocation11 + $0x598] sm:$0xff]
    %v725 = vld [vmem:[#allocation11 + $0x5a0] sm:$0xff]
    %v726 = vld [vmem:[#allocation11 + $0x5a8] sm:$0xff]
    %v727 = vld [vmem:[#allocation11 + $0x5b0] sm:$0xff]
    %v728 = vld [vmem:[#allocation11 + $0x5b8] sm:$0xff]
    %v729 = vld [vmem:[#allocation11 + $0x5c0] sm:$0xff]
    %v730 = vld [vmem:[#allocation11 + $0x5c8] sm:$0xff]
    %v731 = vld [vmem:[#allocation11 + $0x5d0] sm:$0xff]
    %v732 = vld [vmem:[#allocation11 + $0x5d8] sm:$0xff]
    %v733 = vld [vmem:[#allocation11 + $0x5e0] sm:$0xff]
    %v734 = vld [vmem:[#allocation11 + $0x5e8] sm:$0xff]
    %v735 = vld [vmem:[#allocation11 + $0x5f0] sm:$0xff]
    %v736 = vld [vmem:[#allocation11 + $0x5f8] sm:$0xff]
    %v737 = vld [vmem:[#allocation11 + $0x600] sm:$0xff]
    %v738 = vld [vmem:[#allocation11 + $0x608] sm:$0xff]
    %v739 = vld [vmem:[#allocation11 + $0x610] sm:$0xff]
    %v740 = vld [vmem:[#allocation11 + $0x618] sm:$0xff]
    %v741 = vld [vmem:[#allocation11 + $0x620] sm:$0xff]
    %v742 = vld [vmem:[#allocation11 + $0x628] sm:$0xff]
    %v743 = vld [vmem:[#allocation11 + $0x630] sm:$0xff]
    %v744 = vld [vmem:[#allocation11 + $0x638] sm:$0xff]
    %v745 = vld [vmem:[#allocation11 + $0x640] sm:$0xff]
    %v746 = vld [vmem:[#allocation11 + $0x648] sm:$0xff]
    %v747 = vld [vmem:[#allocation11 + $0x650] sm:$0xff]
    %v748 = vld [vmem:[#allocation11 + $0x658] sm:$0xff]
    %v749 = vld [vmem:[#allocation11 + $0x660] sm:$0xff]
    %v750 = vld [vmem:[#allocation11 + $0x668] sm:$0xff]
    %v751 = vld [vmem:[#allocation11 + $0x670] sm:$0xff]
    %v752 = vld [vmem:[#allocation11 + $0x678] sm:$0xff]
    %v753 = vld [vmem:[#allocation11 + $0x680] sm:$0xff]
    %v754 = vld [vmem:[#allocation11 + $0x688] sm:$0xff]
    %v755 = vld [vmem:[#allocation11 + $0x690] sm:$0xff]
    %v756 = vld [vmem:[#allocation11 + $0x698] sm:$0xff]
    %v757 = vld [vmem:[#allocation11 + $0x6a0] sm:$0xff]
    %v758 = vld [vmem:[#allocation11 + $0x6a8] sm:$0xff]
    %v759 = vld [vmem:[#allocation11 + $0x6b0] sm:$0xff]
    %v760 = vld [vmem:[#allocation11 + $0x6b8] sm:$0xff]
    %v761 = vld [vmem:[#allocation11 + $0x6c0] sm:$0xff]
    %v762 = vld [vmem:[#allocation11 + $0x6c8] sm:$0xff]
    %v763 = vld [vmem:[#allocation11 + $0x6d0] sm:$0xff]
    %v764 = vld [vmem:[#allocation11 + $0x6d8] sm:$0xff]
    %v765 = vld [vmem:[#allocation11 + $0x6e0] sm:$0xff]
    %v766 = vld [vmem:[#allocation11 + $0x6e8] sm:$0xff]
    %v767 = vld [vmem:[#allocation11 + $0x6f0] sm:$0xff]
    %v768 = vld [vmem:[#allocation11 + $0x6f8] sm:$0xff]
    %v769 = vld [vmem:[#allocation11 + $0x700] sm:$0xff]
    %v770 = vld [vmem:[#allocation11 + $0x708] sm:$0xff]
    %v771 = vld [vmem:[#allocation11 + $0x710] sm:$0xff]
    %v772 = vld [vmem:[#allocation11 + $0x718] sm:$0xff]
    %v773 = vld [vmem:[#allocation11 + $0x720] sm:$0xff]
    %v774 = vld [vmem:[#allocation11 + $0x728] sm:$0xff]
    %v775 = vld [vmem:[#allocation11 + $0x730] sm:$0xff]
    %v776 = vld [vmem:[#allocation11 + $0x738] sm:$0xff]
    %v777 = vld [vmem:[#allocation11 + $0x740] sm:$0xff]
    %v778 = vld [vmem:[#allocation11 + $0x748] sm:$0xff]
    %v779 = vld [vmem:[#allocation11 + $0x750] sm:$0xff]
    %v780 = vld [vmem:[#allocation11 + $0x758] sm:$0xff]
    %v781 = vld [vmem:[#allocation11 + $0x760] sm:$0xff]
    %v782 = vld [vmem:[#allocation11 + $0x768] sm:$0xff]
    %v783 = vld [vmem:[#allocation11 + $0x770] sm:$0xff]
    %v784 = vld [vmem:[#allocation11 + $0x778] sm:$0xff]
    %v785 = vld [vmem:[#allocation11 + $0x780] sm:$0xff]
    %v786 = vld [vmem:[#allocation11 + $0x788] sm:$0xff]
    %v787 = vld [vmem:[#allocation11 + $0x790] sm:$0xff]
    %v788 = vld [vmem:[#allocation11 + $0x798] sm:$0xff]
    %v789 = vld [vmem:[#allocation11 + $0x7a0] sm:$0xff]
    %v790 = vld [vmem:[#allocation11 + $0x7a8] sm:$0xff]
    %v791 = vld [vmem:[#allocation11 + $0x7b0] sm:$0xff]
    %v792 = vld [vmem:[#allocation11 + $0x7b8] sm:$0xff]
    %v793 = vld [vmem:[#allocation11 + $0x7c0] sm:$0xff]
    %v794 = vld [vmem:[#allocation11 + $0x7c8] sm:$0xff]
    %v795 = vld [vmem:[#allocation11 + $0x7d0] sm:$0xff]
    %v796 = vld [vmem:[#allocation11 + $0x7d8] sm:$0xff]
    %v797 = vld [vmem:[#allocation11 + $0x7e0] sm:$0xff]
    %v798 = vld [vmem:[#allocation11 + $0x7e8] sm:$0xff]
    %v799 = vld [vmem:[#allocation11 + $0x7f0] sm:$0xff]
    %v800 = vld [vmem:[#allocation11 + $0x7f8] sm:$0xff]
    %v801 = vld [vmem:[#allocation11 + $0x800] sm:$0xff]
    %v802 = vld [vmem:[#allocation11 + $0x808] sm:$0xff]
    %v803 = vld [vmem:[#allocation11 + $0x810] sm:$0xff]
    %v804 = vld [vmem:[#allocation11 + $0x818] sm:$0xff]
    %v805 = vld [vmem:[#allocation11 + $0x820] sm:$0xff]
    %v806 = vld [vmem:[#allocation11 + $0x828] sm:$0xff]
    %v807 = vld [vmem:[#allocation11 + $0x830] sm:$0xff]
    %v808 = vld [vmem:[#allocation11 + $0x838] sm:$0xff]
    %v809 = vld [vmem:[#allocation11 + $0x840] sm:$0xff]
    %v810 = vld [vmem:[#allocation11 + $0x848] sm:$0xff]
    %v811 = vld [vmem:[#allocation11 + $0x850] sm:$0xff]
    %v812 = vld [vmem:[#allocation11 + $0x858] sm:$0xff]
    %v813 = vld [vmem:[#allocation11 + $0x860] sm:$0xff]
    %v814 = vld [vmem:[#allocation11 + $0x868] sm:$0xff]
    %v815 = vld [vmem:[#allocation11 + $0x870] sm:$0xff]
    %v816 = vld [vmem:[#allocation11 + $0x878] sm:$0xff]
    %v817 = vld [vmem:[#allocation11 + $0x880] sm:$0xff]
    %v818 = vld [vmem:[#allocation11 + $0x888] sm:$0xff]
    %v819 = vld [vmem:[#allocation11 + $0x890] sm:$0xff]
    %v820 = vld [vmem:[#allocation11 + $0x898] sm:$0xff]
    %v821 = vld [vmem:[#allocation11 + $0x8a0] sm:$0xff]
    %v822 = vld [vmem:[#allocation11 + $0x8a8] sm:$0xff]
    %v823 = vld [vmem:[#allocation11 + $0x8b0] sm:$0xff]
    %v824 = vld [vmem:[#allocation11 + $0x8b8] sm:$0xff]
    %v825 = vld [vmem:[#allocation11 + $0x8c0] sm:$0xff]
    %v826 = vld [vmem:[#allocation11 + $0x8c8] sm:$0xff]
    %v827 = vld [vmem:[#allocation11 + $0x8d0] sm:$0xff]
    %v828 = vld [vmem:[#allocation11 + $0x8d8] sm:$0xff]
    %v829 = vld [vmem:[#allocation11 + $0x8e0] sm:$0xff]
    %v830 = vld [vmem:[#allocation11 + $0x8e8] sm:$0xff]
    %v831 = vld [vmem:[#allocation11 + $0x8f0] sm:$0xff]
    %v832 = vld [vmem:[#allocation11 + $0x8f8] sm:$0xff]
    %v833 = vld [vmem:[#allocation11 + $0x900] sm:$0xff]
    %v834 = vld [vmem:[#allocation11 + $0x908] sm:$0xff]
    %v835 = vld [vmem:[#allocation11 + $0x910] sm:$0xff]
    %v836 = vld [vmem:[#allocation11 + $0x918] sm:$0xff]
    %v837 = vld [vmem:[#allocation11 + $0x920] sm:$0xff]
    %v838 = vld [vmem:[#allocation11 + $0x928] sm:$0xff]
    %v839 = vld [vmem:[#allocation11 + $0x930] sm:$0xff]
    %v840 = vld [vmem:[#allocation11 + $0x938] sm:$0xff]
    %v841 = vld [vmem:[#allocation11 + $0x940] sm:$0xff]
    %v842 = vld [vmem:[#allocation11 + $0x948] sm:$0xff]
    %v843 = vld [vmem:[#allocation11 + $0x950] sm:$0xff]
    %v844 = vld [vmem:[#allocation11 + $0x958] sm:$0xff]
    %v845 = vld [vmem:[#allocation11 + $0x960] sm:$0xff]
    %v846 = vld [vmem:[#allocation11 + $0x968] sm:$0xff]
    %v847 = vld [vmem:[#allocation11 + $0x970] sm:$0xff]
    %v848 = vld [vmem:[#allocation11 + $0x978] sm:$0xff]
    %v849 = vld [vmem:[#allocation11 + $0x980] sm:$0xff]
    %v850 = vld [vmem:[#allocation11 + $0x988] sm:$0xff]
    %v851 = vld [vmem:[#allocation11 + $0x990] sm:$0xff]
    %v852 = vld [vmem:[#allocation11 + $0x998] sm:$0xff]
    %v853 = vld [vmem:[#allocation11 + $0x9a0] sm:$0xff]
    %v854 = vld [vmem:[#allocation11 + $0x9a8] sm:$0xff]
    %v855 = vld [vmem:[#allocation11 + $0x9b0] sm:$0xff]
    %v856 = vld [vmem:[#allocation11 + $0x9b8] sm:$0xff]
    %v857 = vld [vmem:[#allocation11 + $0x9c0] sm:$0xff]
    %v858 = vld [vmem:[#allocation11 + $0x9c8] sm:$0xff]
    %v859 = vld [vmem:[#allocation11 + $0x9d0] sm:$0xff]
    %v860 = vld [vmem:[#allocation11 + $0x9d8] sm:$0xff]
    %v861 = vld [vmem:[#allocation11 + $0x9e0] sm:$0xff]
    %v862 = vld [vmem:[#allocation11 + $0x9e8] sm:$0xff]
    %v863 = vld [vmem:[#allocation11 + $0x9f0] sm:$0xff]
    %v864 = vld [vmem:[#allocation11 + $0x9f8] sm:$0xff]
    %v865 = vld [vmem:[#allocation11 + $0xa00] sm:$0xff]
    %v866 = vld [vmem:[#allocation11 + $0xa08] sm:$0xff]
    %v867 = vld [vmem:[#allocation11 + $0xa10] sm:$0xff]
    %v868 = vld [vmem:[#allocation11 + $0xa18] sm:$0xff]
    %v869 = vld [vmem:[#allocation11 + $0xa20] sm:$0xff]
    %v870 = vld [vmem:[#allocation11 + $0xa28] sm:$0xff]
    %v871 = vld [vmem:[#allocation11 + $0xa30] sm:$0xff]
    %v872 = vld [vmem:[#allocation11 + $0xa38] sm:$0xff]
    %v873 = vld [vmem:[#allocation11 + $0xa40] sm:$0xff]
    %v874 = vld [vmem:[#allocation11 + $0xa48] sm:$0xff]
    %v875 = vld [vmem:[#allocation11 + $0xa50] sm:$0xff]
    %v876 = vld [vmem:[#allocation11 + $0xa58] sm:$0xff]
    %v877 = vld [vmem:[#allocation11 + $0xa60] sm:$0xff]
    %v878 = vld [vmem:[#allocation11 + $0xa68] sm:$0xff]
    %v879 = vld [vmem:[#allocation11 + $0xa70] sm:$0xff]
    %v880 = vld [vmem:[#allocation11 + $0xa78] sm:$0xff]
    %v881 = vld [vmem:[#allocation11 + $0xa80] sm:$0xff]
    %v882 = vld [vmem:[#allocation11 + $0xa88] sm:$0xff]
    %v883 = vld [vmem:[#allocation11 + $0xa90] sm:$0xff]
    %v884 = vld [vmem:[#allocation11 + $0xa98] sm:$0xff]
    %v885 = vld [vmem:[#allocation11 + $0xaa0] sm:$0xff]
    %v886 = vld [vmem:[#allocation11 + $0xaa8] sm:$0xff]
    %v887 = vld [vmem:[#allocation11 + $0xab0] sm:$0xff]
    %v888 = vld [vmem:[#allocation11 + $0xab8] sm:$0xff]
    %v889 = vld [vmem:[#allocation11 + $0xac0] sm:$0xff]
    %v890 = vld [vmem:[#allocation11 + $0xac8] sm:$0xff]
    %v891 = vld [vmem:[#allocation11 + $0xad0] sm:$0xff]
    %v892 = vld [vmem:[#allocation11 + $0xad8] sm:$0xff]
    %v893 = vld [vmem:[#allocation11 + $0xae0] sm:$0xff]
    %v894 = vld [vmem:[#allocation11 + $0xae8] sm:$0xff]
    %v895 = vld [vmem:[#allocation11 + $0xaf0] sm:$0xff]
    %v896 = vld [vmem:[#allocation11 + $0xaf8] sm:$0xff]
    %v897 = vld [vmem:[#allocation11 + $0xb00] sm:$0xff]
    %v898 = vld [vmem:[#allocation11 + $0xb08] sm:$0xff]
    %v899 = vld [vmem:[#allocation11 + $0xb10] sm:$0xff]
    %v900 = vld [vmem:[#allocation11 + $0xb18] sm:$0xff]
    %v901 = vld [vmem:[#allocation11 + $0xb20] sm:$0xff]
    %v902 = vld [vmem:[#allocation11 + $0xb28] sm:$0xff]
    %v903 = vld [vmem:[#allocation11 + $0xb30] sm:$0xff]
    %v904 = vld [vmem:[#allocation11 + $0xb38] sm:$0xff]
    %v905 = vld [vmem:[#allocation11 + $0xb40] sm:$0xff]
    %v906 = vld [vmem:[#allocation11 + $0xb48] sm:$0xff]
    %v907 = vld [vmem:[#allocation11 + $0xb50] sm:$0xff]
    %v908 = vld [vmem:[#allocation11 + $0xb58] sm:$0xff]
    %v909 = vld [vmem:[#allocation11 + $0xb60] sm:$0xff]
    %v910 = vld [vmem:[#allocation11 + $0xb68] sm:$0xff]
    %v911 = vld [vmem:[#allocation11 + $0xb70] sm:$0xff]
    %v912 = vld [vmem:[#allocation11 + $0xb78] sm:$0xff]
    %v913 = vld [vmem:[#allocation11 + $0xb80] sm:$0xff]
    %v914 = vld [vmem:[#allocation11 + $0xb88] sm:$0xff]
    %v915 = vld [vmem:[#allocation11 + $0xb90] sm:$0xff]
    %v916 = vld [vmem:[#allocation11 + $0xb98] sm:$0xff]
    %v917 = vld [vmem:[#allocation11 + $0xba0] sm:$0xff]
    %v918 = vld [vmem:[#allocation11 + $0xba8] sm:$0xff]
    %v919 = vld [vmem:[#allocation11 + $0xbb0] sm:$0xff]
    %v920 = vld [vmem:[#allocation11 + $0xbb8] sm:$0xff]
    %v921 = vld [vmem:[#allocation11 + $0xbc0] sm:$0xff]
    %v922 = vld [vmem:[#allocation11 + $0xbc8] sm:$0xff]
    %v923 = vld [vmem:[#allocation11 + $0xbd0] sm:$0xff]
    %v924 = vld [vmem:[#allocation11 + $0xbd8] sm:$0xff]
    %v925 = vld [vmem:[#allocation11 + $0xbe0] sm:$0xff]
    %v926 = vld [vmem:[#allocation11 + $0xbe8] sm:$0xff]
    %v927 = vld [vmem:[#allocation11 + $0xbf0] sm:$0xff]
    %v928 = vld [vmem:[#allocation11 + $0xbf8] sm:$0xff]
    %v929 = vld [vmem:[#allocation11 + $0xc00] sm:$0xff]
    %v930 = vld [vmem:[#allocation11 + $0xc08] sm:$0xff]
    %v931 = vld [vmem:[#allocation11 + $0xc10] sm:$0xff]
    %v932 = vld [vmem:[#allocation11 + $0xc18] sm:$0xff]
    %v933 = vld [vmem:[#allocation11 + $0xc20] sm:$0xff]
    %v934 = vld [vmem:[#allocation11 + $0xc28] sm:$0xff]
    %v935 = vld [vmem:[#allocation11 + $0xc30] sm:$0xff]
    %v936 = vld [vmem:[#allocation11 + $0xc38] sm:$0xff]
    %v937 = vld [vmem:[#allocation11 + $0xc40] sm:$0xff]
    %v938 = vld [vmem:[#allocation11 + $0xc48] sm:$0xff]
    %v939 = vld [vmem:[#allocation11 + $0xc50] sm:$0xff]
    %v940 = vld [vmem:[#allocation11 + $0xc58] sm:$0xff]
    %v941 = vld [vmem:[#allocation11 + $0xc60] sm:$0xff]
    %v942 = vld [vmem:[#allocation11 + $0xc68] sm:$0xff]
    %v943 = vld [vmem:[#allocation11 + $0xc70] sm:$0xff]
    %v944 = vld [vmem:[#allocation11 + $0xc78] sm:$0xff]
    %v945 = vld [vmem:[#allocation11 + $0xc80] sm:$0xff]
    %v946 = vld [vmem:[#allocation11 + $0xc88] sm:$0xff]
    %v947 = vld [vmem:[#allocation11 + $0xc90] sm:$0xff]
    %v948 = vld [vmem:[#allocation11 + $0xc98] sm:$0xff]
    %v949 = vld [vmem:[#allocation11 + $0xca0] sm:$0xff]
    %v950 = vld [vmem:[#allocation11 + $0xca8] sm:$0xff]
    %v951 = vld [vmem:[#allocation11 + $0xcb0] sm:$0xff]
    %v952 = vld [vmem:[#allocation11 + $0xcb8] sm:$0xff]
    %v953 = vld [vmem:[#allocation11 + $0xcc0] sm:$0xff]
    %v954 = vld [vmem:[#allocation11 + $0xcc8] sm:$0xff]
    %v955 = vld [vmem:[#allocation11 + $0xcd0] sm:$0xff]
    %v956 = vld [vmem:[#allocation11 + $0xcd8] sm:$0xff]
    %v957 = vld [vmem:[#allocation11 + $0xce0] sm:$0xff]
    %v958 = vld [vmem:[#allocation11 + $0xce8] sm:$0xff]
    %v959 = vld [vmem:[#allocation11 + $0xcf0] sm:$0xff]
    %v960 = vld [vmem:[#allocation11 + $0xcf8] sm:$0xff]
    %v961 = vld [vmem:[#allocation11 + $0xd00] sm:$0xff]
    %v962 = vld [vmem:[#allocation11 + $0xd08] sm:$0xff]
    %v963 = vld [vmem:[#allocation11 + $0xd10] sm:$0xff]
    %v964 = vld [vmem:[#allocation11 + $0xd18] sm:$0xff]
    %v965 = vld [vmem:[#allocation11 + $0xd20] sm:$0xff]
    %v966 = vld [vmem:[#allocation11 + $0xd28] sm:$0xff]
    %v967 = vld [vmem:[#allocation11 + $0xd30] sm:$0xff]
    %v968 = vld [vmem:[#allocation11 + $0xd38] sm:$0xff]
    %v969 = vld [vmem:[#allocation11 + $0xd40] sm:$0xff]
    %v970 = vld [vmem:[#allocation11 + $0xd48] sm:$0xff]
    %v971 = vld [vmem:[#allocation11 + $0xd50] sm:$0xff]
    %v972 = vld [vmem:[#allocation11 + $0xd58] sm:$0xff]
    %v973 = vld [vmem:[#allocation11 + $0xd60] sm:$0xff]
    %v974 = vld [vmem:[#allocation11 + $0xd68] sm:$0xff]
    %v975 = vld [vmem:[#allocation11 + $0xd70] sm:$0xff]
    %v976 = vld [vmem:[#allocation11 + $0xd78] sm:$0xff]
    %v977 = vld [vmem:[#allocation11 + $0xd80] sm:$0xff]
    %v978 = vld [vmem:[#allocation11 + $0xd88] sm:$0xff]
    %v979 = vld [vmem:[#allocation11 + $0xd90] sm:$0xff]
    %v980 = vld [vmem:[#allocation11 + $0xd98] sm:$0xff]
    %v981 = vld [vmem:[#allocation11 + $0xda0] sm:$0xff]
    %v982 = vld [vmem:[#allocation11 + $0xda8] sm:$0xff]
    %v983 = vld [vmem:[#allocation11 + $0xdb0] sm:$0xff]
    %v984 = vld [vmem:[#allocation11 + $0xdb8] sm:$0xff]
    %v985 = vld [vmem:[#allocation11 + $0xdc0] sm:$0xff]
    %v986 = vld [vmem:[#allocation11 + $0xdc8] sm:$0xff]
    %v987 = vld [vmem:[#allocation11 + $0xdd0] sm:$0xff]
    %v988 = vld [vmem:[#allocation11 + $0xdd8] sm:$0xff]
    %v989 = vld [vmem:[#allocation11 + $0xde0] sm:$0xff]
    %v990 = vld [vmem:[#allocation11 + $0xde8] sm:$0xff]
    %v991 = vld [vmem:[#allocation11 + $0xdf0] sm:$0xff]
    %v992 = vld [vmem:[#allocation11 + $0xdf8] sm:$0xff]
    %v993 = vld [vmem:[#allocation11 + $0xe00] sm:$0xff]
    %v994 = vld [vmem:[#allocation11 + $0xe08] sm:$0xff]
    %v995 = vld [vmem:[#allocation11 + $0xe10] sm:$0xff]
    %v996 = vld [vmem:[#allocation11 + $0xe18] sm:$0xff]
    %v997 = vld [vmem:[#allocation11 + $0xe20] sm:$0xff]
    %v998 = vld [vmem:[#allocation11 + $0xe28] sm:$0xff]
    %v999 = vld [vmem:[#allocation11 + $0xe30] sm:$0xff]
    %v1000 = vld [vmem:[#allocation11 + $0xe38] sm:$0xff]
    %v1001 = vld [vmem:[#allocation11 + $0xe40] sm:$0xff]
    %v1002 = vld [vmem:[#allocation11 + $0xe48] sm:$0xff]
    %v1003 = vld [vmem:[#allocation11 + $0xe50] sm:$0xff]
    %v1004 = vld [vmem:[#allocation11 + $0xe58] sm:$0xff]
    %v1005 = vld [vmem:[#allocation11 + $0xe60] sm:$0xff]
    %v1006 = vld [vmem:[#allocation11 + $0xe68] sm:$0xff]
    %v1007 = vld [vmem:[#allocation11 + $0xe70] sm:$0xff]
    %v1008 = vld [vmem:[#allocation11 + $0xe78] sm:$0xff]
    %v1009 = vld [vmem:[#allocation11 + $0xe80] sm:$0xff]
    %v1010 = vld [vmem:[#allocation11 + $0xe88] sm:$0xff]
    %v1011 = vld [vmem:[#allocation11 + $0xe90] sm:$0xff]
    %v1012 = vld [vmem:[#allocation11 + $0xe98] sm:$0xff]
    %v1013 = vld [vmem:[#allocation11 + $0xea0] sm:$0xff]
    %v1014 = vld [vmem:[#allocation11 + $0xea8] sm:$0xff]
    %v1015 = vld [vmem:[#allocation11 + $0xeb0] sm:$0xff]
    %v1016 = vld [vmem:[#allocation11 + $0xeb8] sm:$0xff]
    %v1017 = vld [vmem:[#allocation11 + $0xec0] sm:$0xff]
    %v1018 = vld [vmem:[#allocation11 + $0xec8] sm:$0xff]
    %v1019 = vld [vmem:[#allocation11 + $0xed0] sm:$0xff]
    %v1020 = vld [vmem:[#allocation11 + $0xed8] sm:$0xff]
    %v1021 = vld [vmem:[#allocation11 + $0xee0] sm:$0xff]
    %v1022 = vld [vmem:[#allocation11 + $0xee8] sm:$0xff]
    %v1023 = vld [vmem:[#allocation11 + $0xef0] sm:$0xff]
    %v1024 = vld [vmem:[#allocation11 + $0xef8] sm:$0xff]
    %v1025 = vld [vmem:[#allocation11 + $0xf00] sm:$0xff]
    %v1026 = vld [vmem:[#allocation11 + $0xf08] sm:$0xff]
    %v1027 = vld [vmem:[#allocation11 + $0xf10] sm:$0xff]
    %v1028 = vld [vmem:[#allocation11 + $0xf18] sm:$0xff]
    %v1029 = vld [vmem:[#allocation11 + $0xf20] sm:$0xff]
    %v1030 = vld [vmem:[#allocation11 + $0xf28] sm:$0xff]
    %v1031 = vld [vmem:[#allocation11 + $0xf30] sm:$0xff]
    %v1032 = vld [vmem:[#allocation11 + $0xf38] sm:$0xff]
    %v1033 = vld [vmem:[#allocation11 + $0xf40] sm:$0xff]
    %v1034 = vld [vmem:[#allocation11 + $0xf48] sm:$0xff]
    %v1035 = vld [vmem:[#allocation11 + $0xf50] sm:$0xff]
    %v1036 = vld [vmem:[#allocation11 + $0xf58] sm:$0xff]
    %v1037 = vld [vmem:[#allocation11 + $0xf60] sm:$0xff]
    %v1038 = vld [vmem:[#allocation11 + $0xf68] sm:$0xff]
    %v1039 = vld [vmem:[#allocation11 + $0xf70] sm:$0xff]
    %v1040 = vld [vmem:[#allocation11 + $0xf78] sm:$0xff]
    %v1041 = vld [vmem:[#allocation11 + $0xf80] sm:$0xff]
    %v1042 = vld [vmem:[#allocation11 + $0xf88] sm:$0xff]
    %v1043 = vld [vmem:[#allocation11 + $0xf90] sm:$0xff]
    %v1044 = vld [vmem:[#allocation11 + $0xf98] sm:$0xff]
    %v1045 = vld [vmem:[#allocation11 + $0xfa0] sm:$0xff]
    %v1046 = vld [vmem:[#allocation11 + $0xfa8] sm:$0xff]
    %v1047 = vld [vmem:[#allocation11 + $0xfb0] sm:$0xff]
    %v1048 = vld [vmem:[#allocation11 + $0xfb8] sm:$0xff]
    %v1049 = vld [vmem:[#allocation11 + $0xfc0] sm:$0xff]
    %v1050 = vld [vmem:[#allocation11 + $0xfc8] sm:$0xff]
    %v1051 = vld [vmem:[#allocation11 + $0xfd0] sm:$0xff]
    %v1052 = vld [vmem:[#allocation11 + $0xfd8] sm:$0xff]
    %v1053 = vld [vmem:[#allocation11 + $0xfe0] sm:$0xff]
    %v1054 = vld [vmem:[#allocation11 + $0xfe8] sm:$0xff]
    %v1055 = vld [vmem:[#allocation11 + $0xff0] sm:$0xff]
    %v1056 = vld [vmem:[#allocation11 + $0xff8] sm:$0xff]
    %v1057 = vld [vmem:[#allocation11 + $0x1000] sm:$0xff]
    %v1058 = vld [vmem:[#allocation11 + $0x1008] sm:$0xff]
    %v1059 = vld [vmem:[#allocation11 + $0x1010] sm:$0xff]
    %v1060 = vld [vmem:[#allocation11 + $0x1018] sm:$0xff]
    %v1061 = vld [vmem:[#allocation11 + $0x1020] sm:$0xff]
    %v1062 = vld [vmem:[#allocation11 + $0x1028] sm:$0xff]
    %v1063 = vld [vmem:[#allocation11 + $0x1030] sm:$0xff]
    %v1064 = vld [vmem:[#allocation11 + $0x1038] sm:$0xff]
    %v1065 = vld [vmem:[#allocation11 + $0x1040] sm:$0xff]
    %v1066 = vld [vmem:[#allocation11 + $0x1048] sm:$0xff]
    %v1067 = vld [vmem:[#allocation11 + $0x1050] sm:$0xff]
    %v1068 = vld [vmem:[#allocation11 + $0x1058] sm:$0xff]
    %v1069 = vld [vmem:[#allocation11 + $0x1060] sm:$0xff]
    %v1070 = vld [vmem:[#allocation11 + $0x1068] sm:$0xff]
    %v1071 = vld [vmem:[#allocation11 + $0x1070] sm:$0xff]
    %v1072 = vld [vmem:[#allocation11 + $0x1078] sm:$0xff]
    %v1073 = vld [vmem:[#allocation11 + $0x1080] sm:$0xff]
    %v1074 = vld [vmem:[#allocation11 + $0x1088] sm:$0xff]
    %v1075 = vld [vmem:[#allocation11 + $0x1090] sm:$0xff]
    %v1076 = vld [vmem:[#allocation11 + $0x1098] sm:$0xff]
    %v1077 = vld [vmem:[#allocation11 + $0x10a0] sm:$0xff]
    %v1078 = vld [vmem:[#allocation11 + $0x10a8] sm:$0xff]
    %v1079 = vld [vmem:[#allocation11 + $0x10b0] sm:$0xff]
    %v1080 = vld [vmem:[#allocation11 + $0x10b8] sm:$0xff]
    %v1081 = vld [vmem:[#allocation11 + $0x10c0] sm:$0xff]
    %v1082 = vld [vmem:[#allocation11 + $0x10c8] sm:$0xff]
    %v1083 = vld [vmem:[#allocation11 + $0x10d0] sm:$0xff]
    %v1084 = vld [vmem:[#allocation11 + $0x10d8] sm:$0xff]
    %v1085 = vld [vmem:[#allocation11 + $0x10e0] sm:$0xff]
    %v1086 = vld [vmem:[#allocation11 + $0x10e8] sm:$0xff]
    %v1087 = vld [vmem:[#allocation11 + $0x10f0] sm:$0xff]
    %v1088 = vld [vmem:[#allocation11 + $0x10f8] sm:$0xff]
    %v1089 = vld [vmem:[#allocation11 + $0x1100] sm:$0xff]
    %v1090 = vld [vmem:[#allocation11 + $0x1108] sm:$0xff]
    %v1091 = vld [vmem:[#allocation11 + $0x1110] sm:$0xff]
    %v1092 = vld [vmem:[#allocation11 + $0x1118] sm:$0xff]
    %v1093 = vld [vmem:[#allocation11 + $0x1120] sm:$0xff]
    %v1094 = vld [vmem:[#allocation11 + $0x1128] sm:$0xff]
    %v1095 = vld [vmem:[#allocation11 + $0x1130] sm:$0xff]
    %v1096 = vld [vmem:[#allocation11 + $0x1138] sm:$0xff]
    %v1097 = vld [vmem:[#allocation11 + $0x1140] sm:$0xff]
    %v1098 = vld [vmem:[#allocation11 + $0x1148] sm:$0xff]
    %v1099 = vld [vmem:[#allocation11 + $0x1150] sm:$0xff]
    %v1100 = vld [vmem:[#allocation11 + $0x1158] sm:$0xff]
    %v1101 = vld [vmem:[#allocation11 + $0x1160] sm:$0xff]
    %v1102 = vld [vmem:[#allocation11 + $0x1168] sm:$0xff]
    %v1103 = vld [vmem:[#allocation11 + $0x1170] sm:$0xff]
    %v1104 = vld [vmem:[#allocation11 + $0x1178] sm:$0xff]
    %v1105 = vld [vmem:[#allocation11 + $0x1180] sm:$0xff]
    %v1106 = vld [vmem:[#allocation11 + $0x1188] sm:$0xff]
    %v1107 = vld [vmem:[#allocation11 + $0x1190] sm:$0xff]
    %v1108 = vld [vmem:[#allocation11 + $0x1198] sm:$0xff]
    %v1109 = vld [vmem:[#allocation11 + $0x11a0] sm:$0xff]
    %v1110 = vld [vmem:[#allocation11 + $0x11a8] sm:$0xff]
    %v1111 = vld [vmem:[#allocation11 + $0x11b0] sm:$0xff]
    %v1112 = vld [vmem:[#allocation11 + $0x11b8] sm:$0xff]
    %v1113 = vld [vmem:[#allocation11 + $0x11c0] sm:$0xff]
    %v1114 = vld [vmem:[#allocation11 + $0x11c8] sm:$0xff]
    %v1115 = vld [vmem:[#allocation11 + $0x11d0] sm:$0xff]
    %v1116 = vld [vmem:[#allocation11 + $0x11d8] sm:$0xff]
    %v1117 = vld [vmem:[#allocation11 + $0x11e0] sm:$0xff]
    %v1118 = vld [vmem:[#allocation11 + $0x11e8] sm:$0xff]
    %v1119 = vld [vmem:[#allocation11 + $0x11f0] sm:$0xff]
    %v1120 = vld [vmem:[#allocation11 + $0x11f8] sm:$0xff]
    %v1121 = vld [vmem:[#allocation11 + $0x1200] sm:$0xff]
    %v1122 = vld [vmem:[#allocation11 + $0x1208] sm:$0xff]
    %v1123 = vld [vmem:[#allocation11 + $0x1210] sm:$0xff]
    %v1124 = vld [vmem:[#allocation11 + $0x1218] sm:$0xff]
    %v1125 = vld [vmem:[#allocation11 + $0x1220] sm:$0xff]
    %v1126 = vld [vmem:[#allocation11 + $0x1228] sm:$0xff]
    %v1127 = vld [vmem:[#allocation11 + $0x1230] sm:$0xff]
    %v1128 = vld [vmem:[#allocation11 + $0x1238] sm:$0xff]
    %v1129 = vld [vmem:[#allocation11 + $0x1240] sm:$0xff]
    %v1130 = vld [vmem:[#allocation11 + $0x1248] sm:$0xff]
    %v1131 = vld [vmem:[#allocation11 + $0x1250] sm:$0xff]
    %v1132 = vld [vmem:[#allocation11 + $0x1258] sm:$0xff]
    %v1133 = vld [vmem:[#allocation11 + $0x1260] sm:$0xff]
    %v1134 = vld [vmem:[#allocation11 + $0x1268] sm:$0xff]
    %v1135 = vld [vmem:[#allocation11 + $0x1270] sm:$0xff]
    %v1136 = vld [vmem:[#allocation11 + $0x1278] sm:$0xff]
    %v1137 = vld [vmem:[#allocation11 + $0x1280] sm:$0xff]
    %v1138 = vld [vmem:[#allocation11 + $0x1288] sm:$0xff]
    %v1139 = vld [vmem:[#allocation11 + $0x1290] sm:$0xff]
    %v1140 = vld [vmem:[#allocation11 + $0x1298] sm:$0xff]
    %v1141 = vld [vmem:[#allocation11 + $0x12a0] sm:$0xff]
    %v1142 = vld [vmem:[#allocation11 + $0x12a8] sm:$0xff]
    %v1143 = vld [vmem:[#allocation11 + $0x12b0] sm:$0xff]
    %v1144 = vld [vmem:[#allocation11 + $0x12b8] sm:$0xff]
    %v1145 = vld [vmem:[#allocation11 + $0x12c0] sm:$0xff]
    %v1146 = vld [vmem:[#allocation11 + $0x12c8] sm:$0xff]
    %v1147 = vld [vmem:[#allocation11 + $0x12d0] sm:$0xff]
    %v1148 = vld [vmem:[#allocation11 + $0x12d8] sm:$0xff]
    %v1149 = vld [vmem:[#allocation11 + $0x12e0] sm:$0xff]
    %v1150 = vld [vmem:[#allocation11 + $0x12e8] sm:$0xff]
    %v1151 = vld [vmem:[#allocation11 + $0x12f0] sm:$0xff]
    %v1152 = vld [vmem:[#allocation11 + $0x12f8] sm:$0xff]
    %v1153 = vld [vmem:[#allocation11 + $0x1300] sm:$0xff]
    %v1154 = vld [vmem:[#allocation11 + $0x1308] sm:$0xff]
    %v1155 = vld [vmem:[#allocation11 + $0x1310] sm:$0xff]
    %v1156 = vld [vmem:[#allocation11 + $0x1318] sm:$0xff]
    %v1157 = vld [vmem:[#allocation11 + $0x1320] sm:$0xff]
    %v1158 = vld [vmem:[#allocation11 + $0x1328] sm:$0xff]
    %v1159 = vld [vmem:[#allocation11 + $0x1330] sm:$0xff]
    %v1160 = vld [vmem:[#allocation11 + $0x1338] sm:$0xff]
    %v1161 = vld [vmem:[#allocation11 + $0x1340] sm:$0xff]
    %v1162 = vld [vmem:[#allocation11 + $0x1348] sm:$0xff]
    %v1163 = vld [vmem:[#allocation11 + $0x1350] sm:$0xff]
    %v1164 = vld [vmem:[#allocation11 + $0x1358] sm:$0xff]
    %v1165 = vld [vmem:[#allocation11 + $0x1360] sm:$0xff]
    %v1166 = vld [vmem:[#allocation11 + $0x1368] sm:$0xff]
    %v1167 = vld [vmem:[#allocation11 + $0x1370] sm:$0xff]
    %v1168 = vld [vmem:[#allocation11 + $0x1378] sm:$0xff]
    %v1169 = vld [vmem:[#allocation11 + $0x1380] sm:$0xff]
    %v1170 = vld [vmem:[#allocation11 + $0x1388] sm:$0xff]
    %v1171 = vld [vmem:[#allocation11 + $0x1390] sm:$0xff]
    %v1172 = vld [vmem:[#allocation11 + $0x1398] sm:$0xff]
    %v1173 = vld [vmem:[#allocation11 + $0x13a0] sm:$0xff]
    %v1174 = vld [vmem:[#allocation11 + $0x13a8] sm:$0xff]
    %v1175 = vld [vmem:[#allocation11 + $0x13b0] sm:$0xff]
    %v1176 = vld [vmem:[#allocation11 + $0x13b8] sm:$0xff]
    %v1177 = vld [vmem:[#allocation11 + $0x13c0] sm:$0xff]
    %v1178 = vld [vmem:[#allocation11 + $0x13c8] sm:$0xff]
    %v1179 = vld [vmem:[#allocation11 + $0x13d0] sm:$0xff]
    %v1180 = vld [vmem:[#allocation11 + $0x13d8] sm:$0xff]
    %v1181 = vld [vmem:[#allocation11 + $0x13e0] sm:$0xff]
    %v1182 = vld [vmem:[#allocation11 + $0x13e8] sm:$0xff]
    %v1183 = vld [vmem:[#allocation11 + $0x13f0] sm:$0xff]
    %v1184 = vld [vmem:[#allocation11 + $0x13f8] sm:$0xff]
    %v1185 = vld [vmem:[#allocation11 + $0x1400] sm:$0xff]
    %v1186 = vld [vmem:[#allocation11 + $0x1408] sm:$0xff]
    %v1187 = vld [vmem:[#allocation11 + $0x1410] sm:$0xff]
    %v1188 = vld [vmem:[#allocation11 + $0x1418] sm:$0xff]
    %v1189 = vld [vmem:[#allocation11 + $0x1420] sm:$0xff]
    %v1190 = vld [vmem:[#allocation11 + $0x1428] sm:$0xff]
    %v1191 = vld [vmem:[#allocation11 + $0x1430] sm:$0xff]
    %v1192 = vld [vmem:[#allocation11 + $0x1438] sm:$0xff]
    %v1193 = vld [vmem:[#allocation11 + $0x1440] sm:$0xff]
    %v1194 = vld [vmem:[#allocation11 + $0x1448] sm:$0xff]
    %v1195 = vld [vmem:[#allocation11 + $0x1450] sm:$0xff]
    %v1196 = vld [vmem:[#allocation11 + $0x1458] sm:$0xff]
    %v1197 = vld [vmem:[#allocation11 + $0x1460] sm:$0xff]
    %v1198 = vld [vmem:[#allocation11 + $0x1468] sm:$0xff]
    %v1199 = vld [vmem:[#allocation11 + $0x1470] sm:$0xff]
    %v1200 = vld [vmem:[#allocation11 + $0x1478] sm:$0xff]
    %v1201 = vld [vmem:[#allocation11 + $0x1480] sm:$0xff]
    %v1202 = vld [vmem:[#allocation11 + $0x1488] sm:$0xff]
    %v1203 = vld [vmem:[#allocation11 + $0x1490] sm:$0xff]
    %v1204 = vld [vmem:[#allocation11 + $0x1498] sm:$0xff]
    %v1205 = vld [vmem:[#allocation11 + $0x14a0] sm:$0xff]
    %v1206 = vld [vmem:[#allocation11 + $0x14a8] sm:$0xff]
    %v1207 = vld [vmem:[#allocation11 + $0x14b0] sm:$0xff]
    %v1208 = vld [vmem:[#allocation11 + $0x14b8] sm:$0xff]
    %v1209 = vld [vmem:[#allocation11 + $0x14c0] sm:$0xff]
    %v1210 = vld [vmem:[#allocation11 + $0x14c8] sm:$0xff]
    %v1211 = vld [vmem:[#allocation11 + $0x14d0] sm:$0xff]
    %v1212 = vld [vmem:[#allocation11 + $0x14d8] sm:$0xff]
    %v1213 = vld [vmem:[#allocation11 + $0x14e0] sm:$0xff]
    %v1214 = vld [vmem:[#allocation11 + $0x14e8] sm:$0xff]
    %v1215 = vld [vmem:[#allocation11 + $0x14f0] sm:$0xff]
    %v1216 = vld [vmem:[#allocation11 + $0x14f8] sm:$0xff]
    %v1217 = vld [vmem:[#allocation11 + $0x1500] sm:$0xff]
    %v1218 = vld [vmem:[#allocation11 + $0x1508] sm:$0xff]
    %v1219 = vld [vmem:[#allocation11 + $0x1510] sm:$0xff]
    %v1220 = vld [vmem:[#allocation11 + $0x1518] sm:$0xff]
    %v1221 = vld [vmem:[#allocation11 + $0x1520] sm:$0xff]
    %v1222 = vld [vmem:[#allocation11 + $0x1528] sm:$0xff]
    %v1223 = vld [vmem:[#allocation11 + $0x1530] sm:$0xff]
    %v1224 = vld [vmem:[#allocation11 + $0x1538] sm:$0xff]
    %v1225 = vld [vmem:[#allocation11 + $0x1540] sm:$0xff]
    %v1226 = vld [vmem:[#allocation11 + $0x1548] sm:$0xff]
    %v1227 = vld [vmem:[#allocation11 + $0x1550] sm:$0xff]
    %v1228 = vld [vmem:[#allocation11 + $0x1558] sm:$0xff]
    %v1229 = vld [vmem:[#allocation11 + $0x1560] sm:$0xff]
    %v1230 = vld [vmem:[#allocation11 + $0x1568] sm:$0xff]
    %v1231 = vld [vmem:[#allocation11 + $0x1570] sm:$0xff]
    %v1232 = vld [vmem:[#allocation11 + $0x1578] sm:$0xff]
    %v1233 = vld [vmem:[#allocation11 + $0x1580] sm:$0xff]
    %v1234 = vld [vmem:[#allocation11 + $0x1588] sm:$0xff]
    %v1235 = vld [vmem:[#allocation11 + $0x1590] sm:$0xff]
    %v1236 = vld [vmem:[#allocation11 + $0x1598] sm:$0xff]
    %v1237 = vld [vmem:[#allocation11 + $0x15a0] sm:$0xff]
    %v1238 = vld [vmem:[#allocation11 + $0x15a8] sm:$0xff]
    %v1239 = vld [vmem:[#allocation11 + $0x15b0] sm:$0xff]
    %v1240 = vld [vmem:[#allocation11 + $0x15b8] sm:$0xff]
    %v1241 = vld [vmem:[#allocation11 + $0x15c0] sm:$0xff]
    %v1242 = vld [vmem:[#allocation11 + $0x15c8] sm:$0xff]
    %v1243 = vld [vmem:[#allocation11 + $0x15d0] sm:$0xff]
    %v1244 = vld [vmem:[#allocation11 + $0x15d8] sm:$0xff]
    %v1245 = vld [vmem:[#allocation11 + $0x15e0] sm:$0xff]
    %v1246 = vld [vmem:[#allocation11 + $0x15e8] sm:$0xff]
    %v1247 = vld [vmem:[#allocation11 + $0x15f0] sm:$0xff]
    %v1248 = vld [vmem:[#allocation11 + $0x15f8] sm:$0xff]
    %v1249 = vld [vmem:[#allocation11 + $0x1600] sm:$0xff]
    %v1250 = vld [vmem:[#allocation11 + $0x1608] sm:$0xff]
    %v1251 = vld [vmem:[#allocation11 + $0x1610] sm:$0xff]
    %v1252 = vld [vmem:[#allocation11 + $0x1618] sm:$0xff]
    %v1253 = vld [vmem:[#allocation11 + $0x1620] sm:$0xff]
    %v1254 = vld [vmem:[#allocation11 + $0x1628] sm:$0xff]
    %v1255 = vld [vmem:[#allocation11 + $0x1630] sm:$0xff]
    %v1256 = vld [vmem:[#allocation11 + $0x1638] sm:$0xff]
    %v1257 = vld [vmem:[#allocation11 + $0x1640] sm:$0xff]
    %v1258 = vld [vmem:[#allocation11 + $0x1648] sm:$0xff]
    %v1259 = vld [vmem:[#allocation11 + $0x1650] sm:$0xff]
    %v1260 = vld [vmem:[#allocation11 + $0x1658] sm:$0xff]
    %v1261 = vld [vmem:[#allocation11 + $0x1660] sm:$0xff]
    %v1262 = vld [vmem:[#allocation11 + $0x1668] sm:$0xff]
    %v1263 = vld [vmem:[#allocation11 + $0x1670] sm:$0xff]
    %v1264 = vld [vmem:[#allocation11 + $0x1678] sm:$0xff]
    %v1265 = vld [vmem:[#allocation11 + $0x1680] sm:$0xff]
    %v1266 = vld [vmem:[#allocation11 + $0x1688] sm:$0xff]
    %v1267 = vld [vmem:[#allocation11 + $0x1690] sm:$0xff]
    %v1268 = vld [vmem:[#allocation11 + $0x1698] sm:$0xff]
    %v1269 = vld [vmem:[#allocation11 + $0x16a0] sm:$0xff]
    %v1270 = vld [vmem:[#allocation11 + $0x16a8] sm:$0xff]
    %v1271 = vld [vmem:[#allocation11 + $0x16b0] sm:$0xff]
    %v1272 = vld [vmem:[#allocation11 + $0x16b8] sm:$0xff]
    %v1273 = vld [vmem:[#allocation11 + $0x16c0] sm:$0xff]
    %v1274 = vld [vmem:[#allocation11 + $0x16c8] sm:$0xff]
    %v1275 = vld [vmem:[#allocation11 + $0x16d0] sm:$0xff]
    %v1276 = vld [vmem:[#allocation11 + $0x16d8] sm:$0xff]
    %v1277 = vld [vmem:[#allocation11 + $0x16e0] sm:$0xff]
    %v1278 = vld [vmem:[#allocation11 + $0x16e8] sm:$0xff]
    %v1279 = vld [vmem:[#allocation11 + $0x16f0] sm:$0xff]
    %v1280 = vld [vmem:[#allocation11 + $0x16f8] sm:$0xff]
    %v1281 = vld [vmem:[#allocation11 + $0x1700] sm:$0xff]
    %v1282 = vld [vmem:[#allocation11 + $0x1708] sm:$0xff]
    %v1283 = vld [vmem:[#allocation11 + $0x1710] sm:$0xff]
    %v1284 = vld [vmem:[#allocation11 + $0x1718] sm:$0xff]
    %v1285 = vld [vmem:[#allocation11 + $0x1720] sm:$0xff]
    %v1286 = vld [vmem:[#allocation11 + $0x1728] sm:$0xff]
    %v1287 = vld [vmem:[#allocation11 + $0x1730] sm:$0xff]
    %v1288 = vld [vmem:[#allocation11 + $0x1738] sm:$0xff]
    %v1289 = vld [vmem:[#allocation11 + $0x1740] sm:$0xff]
    %v1290 = vld [vmem:[#allocation11 + $0x1748] sm:$0xff]
    %v1291 = vld [vmem:[#allocation11 + $0x1750] sm:$0xff]
    %v1292 = vld [vmem:[#allocation11 + $0x1758] sm:$0xff]
    %v1293 = vld [vmem:[#allocation11 + $0x1760] sm:$0xff]
    %v1294 = vld [vmem:[#allocation11 + $0x1768] sm:$0xff]
    %v1295 = vld [vmem:[#allocation11 + $0x1770] sm:$0xff]
    %v1296 = vld [vmem:[#allocation11 + $0x1778] sm:$0xff]
    %v1297 = vld [vmem:[#allocation11 + $0x1780] sm:$0xff]
    %v1298 = vld [vmem:[#allocation11 + $0x1788] sm:$0xff]
    %v1299 = vld [vmem:[#allocation11 + $0x1790] sm:$0xff]
    %v1300 = vld [vmem:[#allocation11 + $0x1798] sm:$0xff]
    %v1301 = vld [vmem:[#allocation11 + $0x17a0] sm:$0xff]
    %v1302 = vld [vmem:[#allocation11 + $0x17a8] sm:$0xff]
    %v1303 = vld [vmem:[#allocation11 + $0x17b0] sm:$0xff]
    %v1304 = vld [vmem:[#allocation11 + $0x17b8] sm:$0xff]
    %v1305 = vld [vmem:[#allocation11 + $0x17c0] sm:$0xff]
    %v1306 = vld [vmem:[#allocation11 + $0x17c8] sm:$0xff]
    %v1307 = vld [vmem:[#allocation11 + $0x17d0] sm:$0xff]
    %v1308 = vld [vmem:[#allocation11 + $0x17d8] sm:$0xff]
    %v1309 = vld [vmem:[#allocation11 + $0x17e0] sm:$0xff]
    %v1310 = vld [vmem:[#allocation11 + $0x17e8] sm:$0xff]
    %v1311 = vld [vmem:[#allocation11 + $0x17f0] sm:$0xff]
    %v1312 = vld [vmem:[#allocation11 + $0x17f8] sm:$0xff]
    %v1313 = vld [vmem:[#allocation11 + $0x1800] sm:$0xff]
    %v1314 = vld [vmem:[#allocation11 + $0x1808] sm:$0xff]
    %v1315 = vld [vmem:[#allocation11 + $0x1810] sm:$0xff]
    %v1316 = vld [vmem:[#allocation11 + $0x1818] sm:$0xff]
    %v1317 = vld [vmem:[#allocation11 + $0x1820] sm:$0xff]
    %v1318 = vld [vmem:[#allocation11 + $0x1828] sm:$0xff]
    %v1319 = vld [vmem:[#allocation11 + $0x1830] sm:$0xff]
    %v1320 = vld [vmem:[#allocation11 + $0x1838] sm:$0xff]
    %v1321 = vld [vmem:[#allocation11 + $0x1840] sm:$0xff]
    %v1322 = vld [vmem:[#allocation11 + $0x1848] sm:$0xff]
    %v1323 = vld [vmem:[#allocation11 + $0x1850] sm:$0xff]
    %v1324 = vld [vmem:[#allocation11 + $0x1858] sm:$0xff]
    %v1325 = vld [vmem:[#allocation11 + $0x1860] sm:$0xff]
    %v1326 = vld [vmem:[#allocation11 + $0x1868] sm:$0xff]
    %v1327 = vld [vmem:[#allocation11 + $0x1870] sm:$0xff]
    %v1328 = vld [vmem:[#allocation11 + $0x1878] sm:$0xff]
    %v1329 = vld [vmem:[#allocation11 + $0x1880] sm:$0xff]
    %v1330 = vld [vmem:[#allocation11 + $0x1888] sm:$0xff]
    %v1331 = vld [vmem:[#allocation11 + $0x1890] sm:$0xff]
    %v1332 = vld [vmem:[#allocation11 + $0x1898] sm:$0xff]
    %v1333 = vld [vmem:[#allocation11 + $0x18a0] sm:$0xff]
    %v1334 = vld [vmem:[#allocation11 + $0x18a8] sm:$0xff]
    %v1335 = vld [vmem:[#allocation11 + $0x18b0] sm:$0xff]
    %v1336 = vld [vmem:[#allocation11 + $0x18b8] sm:$0xff]
    %v1337 = vld [vmem:[#allocation11 + $0x18c0] sm:$0xff]
    %v1338 = vld [vmem:[#allocation11 + $0x18c8] sm:$0xff]
    %v1339 = vld [vmem:[#allocation11 + $0x18d0] sm:$0xff]
    %v1340 = vld [vmem:[#allocation11 + $0x18d8] sm:$0xff]
    %v1341 = vld [vmem:[#allocation11 + $0x18e0] sm:$0xff]
    %v1342 = vld [vmem:[#allocation11 + $0x18e8] sm:$0xff]
    %v1343 = vld [vmem:[#allocation11 + $0x18f0] sm:$0xff]
    %v1344 = vld [vmem:[#allocation11 + $0x18f8] sm:$0xff]
    %v1345 = vld [vmem:[#allocation11 + $0x1900] sm:$0xff]
    %v1346 = vld [vmem:[#allocation11 + $0x1908] sm:$0xff]
    %v1347 = vld [vmem:[#allocation11 + $0x1910] sm:$0xff]
    %v1348 = vld [vmem:[#allocation11 + $0x1918] sm:$0xff]
    %v1349 = vld [vmem:[#allocation11 + $0x1920] sm:$0xff]
    %v1350 = vld [vmem:[#allocation11 + $0x1928] sm:$0xff]
    %v1351 = vld [vmem:[#allocation11 + $0x1930] sm:$0xff]
    %v1352 = vld [vmem:[#allocation11 + $0x1938] sm:$0xff]
    %v1353 = vld [vmem:[#allocation11 + $0x1940] sm:$0xff]
    %v1354 = vld [vmem:[#allocation11 + $0x1948] sm:$0xff]
    %v1355 = vld [vmem:[#allocation11 + $0x1950] sm:$0xff]
    %v1356 = vld [vmem:[#allocation11 + $0x1958] sm:$0xff]
    %v1357 = vld [vmem:[#allocation11 + $0x1960] sm:$0xff]
    %v1358 = vld [vmem:[#allocation11 + $0x1968] sm:$0xff]
    %v1359 = vld [vmem:[#allocation11 + $0x1970] sm:$0xff]
    %v1360 = vld [vmem:[#allocation11 + $0x1978] sm:$0xff]
    %v1361 = vld [vmem:[#allocation11 + $0x1980] sm:$0xff]
    %v1362 = vld [vmem:[#allocation11 + $0x1988] sm:$0xff]
    %v1363 = vld [vmem:[#allocation11 + $0x1990] sm:$0xff]
    %v1364 = vld [vmem:[#allocation11 + $0x1998] sm:$0xff]
    %v1365 = vld [vmem:[#allocation11 + $0x19a0] sm:$0xff]
    %v1366 = vld [vmem:[#allocation11 + $0x19a8] sm:$0xff]
    %v1367 = vld [vmem:[#allocation11 + $0x19b0] sm:$0xff]
    %v1368 = vld [vmem:[#allocation11 + $0x19b8] sm:$0xff]
    %v1369 = vld [vmem:[#allocation11 + $0x19c0] sm:$0xff]
    %v1370 = vld [vmem:[#allocation11 + $0x19c8] sm:$0xff]
    %v1371 = vld [vmem:[#allocation11 + $0x19d0] sm:$0xff]
    %v1372 = vld [vmem:[#allocation11 + $0x19d8] sm:$0xff]
    %v1373 = vld [vmem:[#allocation11 + $0x19e0] sm:$0xff]
    %v1374 = vld [vmem:[#allocation11 + $0x19e8] sm:$0xff]
    %v1375 = vld [vmem:[#allocation11 + $0x19f0] sm:$0xff]
    %v1376 = vld [vmem:[#allocation11 + $0x19f8] sm:$0xff]
    %v1377 = vld [vmem:[#allocation11 + $0x1a00] sm:$0xff]
    %v1378 = vld [vmem:[#allocation11 + $0x1a08] sm:$0xff]
    %v1379 = vld [vmem:[#allocation11 + $0x1a10] sm:$0xff]
    %v1380 = vld [vmem:[#allocation11 + $0x1a18] sm:$0xff]
    %v1381 = vld [vmem:[#allocation11 + $0x1a20] sm:$0xff]
    %v1382 = vld [vmem:[#allocation11 + $0x1a28] sm:$0xff]
    %v1383 = vld [vmem:[#allocation11 + $0x1a30] sm:$0xff]
    %v1384 = vld [vmem:[#allocation11 + $0x1a38] sm:$0xff]
    %v1385 = vld [vmem:[#allocation11 + $0x1a40] sm:$0xff]
    %v1386 = vld [vmem:[#allocation11 + $0x1a48] sm:$0xff]
    %v1387 = vld [vmem:[#allocation11 + $0x1a50] sm:$0xff]
    %v1388 = vld [vmem:[#allocation11 + $0x1a58] sm:$0xff]
    %v1389 = vld [vmem:[#allocation11 + $0x1a60] sm:$0xff]
    %v1390 = vld [vmem:[#allocation11 + $0x1a68] sm:$0xff]
    %v1391 = vld [vmem:[#allocation11 + $0x1a70] sm:$0xff]
    %v1392 = vld [vmem:[#allocation11 + $0x1a78] sm:$0xff]
    %v1393 = vld [vmem:[#allocation11 + $0x1a80] sm:$0xff]
    %v1394 = vld [vmem:[#allocation11 + $0x1a88] sm:$0xff]
    %v1395 = vld [vmem:[#allocation11 + $0x1a90] sm:$0xff]
    %v1396 = vld [vmem:[#allocation11 + $0x1a98] sm:$0xff]
    %v1397 = vld [vmem:[#allocation11 + $0x1aa0] sm:$0xff]
    %v1398 = vld [vmem:[#allocation11 + $0x1aa8] sm:$0xff]
    %v1399 = vld [vmem:[#allocation11 + $0x1ab0] sm:$0xff]
    %v1400 = vld [vmem:[#allocation11 + $0x1ab8] sm:$0xff]
    %v1401 = vld [vmem:[#allocation11 + $0x1ac0] sm:$0xff]
    %v1402 = vld [vmem:[#allocation11 + $0x1ac8] sm:$0xff]
    %v1403 = vld [vmem:[#allocation11 + $0x1ad0] sm:$0xff]
    %v1404 = vld [vmem:[#allocation11 + $0x1ad8] sm:$0xff]
    %v1405 = vld [vmem:[#allocation11 + $0x1ae0] sm:$0xff]
    %v1406 = vld [vmem:[#allocation11 + $0x1ae8] sm:$0xff]
    %v1407 = vld [vmem:[#allocation11 + $0x1af0] sm:$0xff]
    %v1408 = vld [vmem:[#allocation11 + $0x1af8] sm:$0xff]
    %v1409 = vld [vmem:[#allocation11 + $0x1b00] sm:$0xff]
    %v1410 = vld [vmem:[#allocation11 + $0x1b08] sm:$0xff]
    %v1411 = vld [vmem:[#allocation11 + $0x1b10] sm:$0xff]
    %v1412 = vld [vmem:[#allocation11 + $0x1b18] sm:$0xff]
    %v1413 = vld [vmem:[#allocation11 + $0x1b20] sm:$0xff]
    %v1414 = vld [vmem:[#allocation11 + $0x1b28] sm:$0xff]
    %v1415 = vld [vmem:[#allocation11 + $0x1b30] sm:$0xff]
    %v1416 = vld [vmem:[#allocation11 + $0x1b38] sm:$0xff]
    %v1417 = vld [vmem:[#allocation11 + $0x1b40] sm:$0xff]
    %v1418 = vld [vmem:[#allocation11 + $0x1b48] sm:$0xff]
    %v1419 = vld [vmem:[#allocation11 + $0x1b50] sm:$0xff]
    %v1420 = vld [vmem:[#allocation11 + $0x1b58] sm:$0xff]
    %v1421 = vld [vmem:[#allocation11 + $0x1b60] sm:$0xff]
    %v1422 = vld [vmem:[#allocation11 + $0x1b68] sm:$0xff]
    %v1423 = vld [vmem:[#allocation11 + $0x1b70] sm:$0xff]
    %v1424 = vld [vmem:[#allocation11 + $0x1b78] sm:$0xff]
    %v1425 = vld [vmem:[#allocation11 + $0x1b80] sm:$0xff]
    %v1426 = vld [vmem:[#allocation11 + $0x1b88] sm:$0xff]
    %v1427 = vld [vmem:[#allocation11 + $0x1b90] sm:$0xff]
    %v1428 = vld [vmem:[#allocation11 + $0x1b98] sm:$0xff]
    %v1429 = vld [vmem:[#allocation11 + $0x1ba0] sm:$0xff]
    %v1430 = vld [vmem:[#allocation11 + $0x1ba8] sm:$0xff]
    %v1431 = vld [vmem:[#allocation11 + $0x1bb0] sm:$0xff]
    %v1432 = vld [vmem:[#allocation11 + $0x1bb8] sm:$0xff]
    %v1433 = vld [vmem:[#allocation11 + $0x1bc0] sm:$0xff]
    %v1434 = vld [vmem:[#allocation11 + $0x1bc8] sm:$0xff]
    %v1435 = vld [vmem:[#allocation11 + $0x1bd0] sm:$0xff]
    %v1436 = vld [vmem:[#allocation11 + $0x1bd8] sm:$0xff]
    %v1437 = vld [vmem:[#allocation11 + $0x1be0] sm:$0xff]
    %v1438 = vld [vmem:[#allocation11 + $0x1be8] sm:$0xff]
    %v1439 = vld [vmem:[#allocation11 + $0x1bf0] sm:$0xff]
    %v1440 = vld [vmem:[#allocation11 + $0x1bf8] sm:$0xff]
    %v1441 = vld [vmem:[#allocation11 + $0x1c00] sm:$0xff]
    %v1442 = vld [vmem:[#allocation11 + $0x1c08] sm:$0xff]
    %v1443 = vld [vmem:[#allocation11 + $0x1c10] sm:$0xff]
    %v1444 = vld [vmem:[#allocation11 + $0x1c18] sm:$0xff]
    %v1445 = vld [vmem:[#allocation11 + $0x1c20] sm:$0xff]
    %v1446 = vld [vmem:[#allocation11 + $0x1c28] sm:$0xff]
    %v1447 = vld [vmem:[#allocation11 + $0x1c30] sm:$0xff]
    %v1448 = vld [vmem:[#allocation11 + $0x1c38] sm:$0xff]
    %v1449 = vld [vmem:[#allocation11 + $0x1c40] sm:$0xff]
    %v1450 = vld [vmem:[#allocation11 + $0x1c48] sm:$0xff]
    %v1451 = vld [vmem:[#allocation11 + $0x1c50] sm:$0xff]
    %v1452 = vld [vmem:[#allocation11 + $0x1c58] sm:$0xff]
    %v1453 = vld [vmem:[#allocation11 + $0x1c60] sm:$0xff]
    %v1454 = vld [vmem:[#allocation11 + $0x1c68] sm:$0xff]
    %v1455 = vld [vmem:[#allocation11 + $0x1c70] sm:$0xff]
    %v1456 = vld [vmem:[#allocation11 + $0x1c78] sm:$0xff]
    %v1457 = vld [vmem:[#allocation11 + $0x1c80] sm:$0xff]
    %v1458 = vld [vmem:[#allocation11 + $0x1c88] sm:$0xff]
    %v1459 = vld [vmem:[#allocation11 + $0x1c90] sm:$0xff]
    %v1460 = vld [vmem:[#allocation11 + $0x1c98] sm:$0xff]
    %v1461 = vld [vmem:[#allocation11 + $0x1ca0] sm:$0xff]
    %v1462 = vld [vmem:[#allocation11 + $0x1ca8] sm:$0xff]
    %v1463 = vld [vmem:[#allocation11 + $0x1cb0] sm:$0xff]
    %v1464 = vld [vmem:[#allocation11 + $0x1cb8] sm:$0xff]
    %v1465 = vld [vmem:[#allocation11 + $0x1cc0] sm:$0xff]
    %v1466 = vld [vmem:[#allocation11 + $0x1cc8] sm:$0xff]
    %v1467 = vld [vmem:[#allocation11 + $0x1cd0] sm:$0xff]
    %v1468 = vld [vmem:[#allocation11 + $0x1cd8] sm:$0xff]
    %v1469 = vld [vmem:[#allocation11 + $0x1ce0] sm:$0xff]
    %v1470 = vld [vmem:[#allocation11 + $0x1ce8] sm:$0xff]
    %v1471 = vld [vmem:[#allocation11 + $0x1cf0] sm:$0xff]
    %v1472 = vld [vmem:[#allocation11 + $0x1cf8] sm:$0xff]
    %v1473 = vld [vmem:[#allocation11 + $0x1d00] sm:$0xff]
    %v1474 = vld [vmem:[#allocation11 + $0x1d08] sm:$0xff]
    %v1475 = vld [vmem:[#allocation11 + $0x1d10] sm:$0xff]
    %v1476 = vld [vmem:[#allocation11 + $0x1d18] sm:$0xff]
    %v1477 = vld [vmem:[#allocation11 + $0x1d20] sm:$0xff]
    %v1478 = vld [vmem:[#allocation11 + $0x1d28] sm:$0xff]
    %v1479 = vld [vmem:[#allocation11 + $0x1d30] sm:$0xff]
    %v1480 = vld [vmem:[#allocation11 + $0x1d38] sm:$0xff]
    %v1481 = vld [vmem:[#allocation11 + $0x1d40] sm:$0xff]
    %v1482 = vld [vmem:[#allocation11 + $0x1d48] sm:$0xff]
    %v1483 = vld [vmem:[#allocation11 + $0x1d50] sm:$0xff]
    %v1484 = vld [vmem:[#allocation11 + $0x1d58] sm:$0xff]
    %v1485 = vld [vmem:[#allocation11 + $0x1d60] sm:$0xff]
    %v1486 = vld [vmem:[#allocation11 + $0x1d68] sm:$0xff]
    %v1487 = vld [vmem:[#allocation11 + $0x1d70] sm:$0xff]
    %v1488 = vld [vmem:[#allocation11 + $0x1d78] sm:$0xff]
    %v1489 = vld [vmem:[#allocation11 + $0x1d80] sm:$0xff]
    %v1490 = vld [vmem:[#allocation11 + $0x1d88] sm:$0xff]
    %v1491 = vld [vmem:[#allocation11 + $0x1d90] sm:$0xff]
    %v1492 = vld [vmem:[#allocation11 + $0x1d98] sm:$0xff]
    %v1493 = vld [vmem:[#allocation11 + $0x1da0] sm:$0xff]
    %v1494 = vld [vmem:[#allocation11 + $0x1da8] sm:$0xff]
    %v1495 = vld [vmem:[#allocation11 + $0x1db0] sm:$0xff]
    %v1496 = vld [vmem:[#allocation11 + $0x1db8] sm:$0xff]
    %v1497 = vld [vmem:[#allocation11 + $0x1dc0] sm:$0xff]
    %v1498 = vld [vmem:[#allocation11 + $0x1dc8] sm:$0xff]
    %v1499 = vld [vmem:[#allocation11 + $0x1dd0] sm:$0xff]
    %v1500 = vld [vmem:[#allocation11 + $0x1dd8] sm:$0xff]
    %v1501 = vld [vmem:[#allocation11 + $0x1de0] sm:$0xff]
    %v1502 = vld [vmem:[#allocation11 + $0x1de8] sm:$0xff]
    %v1503 = vld [vmem:[#allocation11 + $0x1df0] sm:$0xff]
    %v1504 = vld [vmem:[#allocation11 + $0x1df8] sm:$0xff]
    %v1505 = vld [vmem:[#allocation11 + $0x1e00] sm:$0xff]
    %v1506 = vld [vmem:[#allocation11 + $0x1e08] sm:$0xff]
    %v1507 = vld [vmem:[#allocation11 + $0x1e10] sm:$0xff]
    %v1508 = vld [vmem:[#allocation11 + $0x1e18] sm:$0xff]
    %v1509 = vld [vmem:[#allocation11 + $0x1e20] sm:$0xff]
    %v1510 = vld [vmem:[#allocation11 + $0x1e28] sm:$0xff]
    %v1511 = vld [vmem:[#allocation11 + $0x1e30] sm:$0xff]
    %v1512 = vld [vmem:[#allocation11 + $0x1e38] sm:$0xff]
    %v1513 = vld [vmem:[#allocation11 + $0x1e40] sm:$0xff]
    %v1514 = vld [vmem:[#allocation11 + $0x1e48] sm:$0xff]
    %v1515 = vld [vmem:[#allocation11 + $0x1e50] sm:$0xff]
    %v1516 = vld [vmem:[#allocation11 + $0x1e58] sm:$0xff]
    %v1517 = vld [vmem:[#allocation11 + $0x1e60] sm:$0xff]
    %v1518 = vld [vmem:[#allocation11 + $0x1e68] sm:$0xff]
    %v1519 = vld [vmem:[#allocation11 + $0x1e70] sm:$0xff]
    %v1520 = vld [vmem:[#allocation11 + $0x1e78] sm:$0xff]
    %v1521 = vld [vmem:[#allocation11 + $0x1e80] sm:$0xff]
    %v1522 = vld [vmem:[#allocation11 + $0x1e88] sm:$0xff]
    %v1523 = vld [vmem:[#allocation11 + $0x1e90] sm:$0xff]
    %v1524 = vld [vmem:[#allocation11 + $0x1e98] sm:$0xff]
    %v1525 = vld [vmem:[#allocation11 + $0x1ea0] sm:$0xff]
    %v1526 = vld [vmem:[#allocation11 + $0x1ea8] sm:$0xff]
    %v1527 = vld [vmem:[#allocation11 + $0x1eb0] sm:$0xff]
    %v1528 = vld [vmem:[#allocation11 + $0x1eb8] sm:$0xff]
    %v1529 = vld [vmem:[#allocation11 + $0x1ec0] sm:$0xff]
    %v1530 = vld [vmem:[#allocation11 + $0x1ec8] sm:$0xff]
    %v1531 = vld [vmem:[#allocation11 + $0x1ed0] sm:$0xff]
    %v1532 = vld [vmem:[#allocation11 + $0x1ed8] sm:$0xff]
    %v1533 = vld [vmem:[#allocation11 + $0x1ee0] sm:$0xff]
    %v1534 = vld [vmem:[#allocation11 + $0x1ee8] sm:$0xff]
    %v1535 = vld [vmem:[#allocation11 + $0x1ef0] sm:$0xff]
    %v1536 = vld [vmem:[#allocation11 + $0x1ef8] sm:$0xff]
    %v1537 = vld [vmem:[#allocation11 + $0x1f00] sm:$0xff]
    %v1538 = vld [vmem:[#allocation11 + $0x1f08] sm:$0xff]
    %v1539 = vld [vmem:[#allocation11 + $0x1f10] sm:$0xff]
    %v1540 = vld [vmem:[#allocation11 + $0x1f18] sm:$0xff]
    %v1541 = vld [vmem:[#allocation11 + $0x1f20] sm:$0xff]
    %v1542 = vld [vmem:[#allocation11 + $0x1f28] sm:$0xff]
    %v1543 = vld [vmem:[#allocation11 + $0x1f30] sm:$0xff]
    %v1544 = vld [vmem:[#allocation11 + $0x1f38] sm:$0xff]
    %v1545 = vld [vmem:[#allocation11 + $0x1f40] sm:$0xff]
    %v1546 = vld [vmem:[#allocation11 + $0x1f48] sm:$0xff]
    %v1547 = vld [vmem:[#allocation11 + $0x1f50] sm:$0xff]
    %v1548 = vld [vmem:[#allocation11 + $0x1f58] sm:$0xff]
    %v1549 = vld [vmem:[#allocation11 + $0x1f60] sm:$0xff]
    %v1550 = vld [vmem:[#allocation11 + $0x1f68] sm:$0xff]
    %v1551 = vld [vmem:[#allocation11 + $0x1f70] sm:$0xff]
    %v1552 = vld [vmem:[#allocation11 + $0x1f78] sm:$0xff]
    %v1553 = vld [vmem:[#allocation11 + $0x1f80] sm:$0xff]
    %v1554 = vld [vmem:[#allocation11 + $0x1f88] sm:$0xff]
    %v1555 = vld [vmem:[#allocation11 + $0x1f90] sm:$0xff]
    %v1556 = vld [vmem:[#allocation11 + $0x1f98] sm:$0xff]
    %v1557 = vld [vmem:[#allocation11 + $0x1fa0] sm:$0xff]
    %v1558 = vld [vmem:[#allocation11 + $0x1fa8] sm:$0xff]
    %v1559 = vld [vmem:[#allocation11 + $0x1fb0] sm:$0xff]
    %v1560 = vld [vmem:[#allocation11 + $0x1fb8] sm:$0xff]
    %v1561 = vld [vmem:[#allocation11 + $0x1fc0] sm:$0xff]
    %v1562 = vld [vmem:[#allocation11 + $0x1fc8] sm:$0xff]
    %v1563 = vld [vmem:[#allocation11 + $0x1fd0] sm:$0xff]
    %v1564 = vld [vmem:[#allocation11 + $0x1fd8] sm:$0xff]
    %v1565 = vld [vmem:[#allocation11 + $0x1fe0] sm:$0xff]
    %v1566 = vld [vmem:[#allocation11 + $0x1fe8] sm:$0xff]
    %v1567 = vld [vmem:[#allocation11 + $0x1ff0] sm:$0xff]
    %v1568 = vld [vmem:[#allocation11 + $0x1ff8] sm:$0xff]
    %v1569 = vld [vmem:[#allocation13] sm:$0xff]
    %v1570 = vld [vmem:[#allocation13 + $0x8] sm:$0xff]
    %v1573 = vlaneseq
    %v1574 = vshrl.u32 %v1573, 7
    %v1575 = vsub.s32 0, %v1574
    %v1576 = vrot.slane %v1569, %v1575
    %v1577 = vlaneseq
    %v1578 = vshrl.u32 %v1577, 7
    %v1579 = vsub.s32 1, %v1578
    %v1580 = vrot.slane %v1569, %v1579
    %v1581 = vlaneseq
    %v1582 = vshrl.u32 %v1581, 7
    %v1583 = vsub.s32 2, %v1582
    %v1584 = vrot.slane %v1569, %v1583
    %v1585 = vlaneseq
    %v1586 = vshrl.u32 %v1585, 7
    %v1587 = vsub.s32 3, %v1586
    %v1588 = vrot.slane %v1569, %v1587
    %v1589 = vlaneseq
    %v1590 = vshrl.u32 %v1589, 7
    %v1591 = vsub.s32 4, %v1590
    %v1592 = vrot.slane %v1569, %v1591
    %v1593 = vlaneseq
    %v1594 = vshrl.u32 %v1593, 7
    %v1595 = vsub.s32 5, %v1594
    %v1596 = vrot.slane %v1569, %v1595
    %v1597 = vlaneseq
    %v1598 = vshrl.u32 %v1597, 7
    %v1599 = vsub.s32 6, %v1598
    %v1600 = vrot.slane %v1569, %v1599
    %v1601 = vlaneseq
    %v1602 = vshrl.u32 %v1601, 7
    %v1603 = vsub.s32 7, %v1602
    %v1604 = vrot.slane %v1569, %v1603
    %v1605 = vlaneseq
    %v1606 = vshrl.u32 %v1605, 7
    %v1607 = vsub.s32 0, %v1606
    %v1608 = vrot.slane %v1570, %v1607
    %v1609 = vlaneseq
    %v1610 = vshrl.u32 %v1609, 7
    %v1611 = vsub.s32 1, %v1610
    %v1612 = vrot.slane %v1570, %v1611
    %v1613 = vlaneseq
    %v1614 = vshrl.u32 %v1613, 7
    %v1615 = vsub.s32 2, %v1614
    %v1616 = vrot.slane %v1570, %v1615
    %v1617 = vlaneseq
    %v1618 = vshrl.u32 %v1617, 7
    %v1619 = vsub.s32 3, %v1618
    %v1620 = vrot.slane %v1570, %v1619
    %v1621 = vlaneseq
    %v1622 = vshrl.u32 %v1621, 7
    %v1623 = vsub.s32 4, %v1622
    %v1624 = vrot.slane %v1570, %v1623
    %v1625 = vlaneseq
    %v1626 = vshrl.u32 %v1625, 7
    %v1627 = vsub.s32 5, %v1626
    %v1628 = vrot.slane %v1570, %v1627
    %v1629 = vlaneseq
    %v1630 = vshrl.u32 %v1629, 7
    %v1631 = vsub.s32 6, %v1630
    %v1632 = vrot.slane %v1570, %v1631
    %v1633 = vlaneseq
    %v1634 = vshrl.u32 %v1633, 7
    %v1635 = vsub.s32 7, %v1634
    %v1636 = vrot.slane %v1570, %v1635
    %1653 = vmatprep.subr.mxu0 %v546
    %1654 = vmatpush1.msra.mxu0 %v545
    %1655 = vmatprep.subr.mxu0 %v562
    %1656 = vmatpush1.msra.mxu0 %v561
    %1657 = vmatprep.subr.mxu0 %v578
    %1658 = vmatpush1.msra.mxu0 %v577
    %1659 = vmatprep.subr.mxu0 %v594
    %1660 = vmatpush1.msra.mxu0 %v593
    %1661 = vmatprep.subr.mxu0 %v610
    %1662 = vmatpush1.msra.mxu0 %v609
    %1663 = vmatprep.subr.mxu0 %v626
    %1664 = vmatpush1.msra.mxu0 %v625
    %1665 = vmatprep.subr.mxu0 %v642
    %1666 = vmatpush1.msra.mxu0 %v641
    %1667 = vmatprep.subr.mxu0 %v658
    %1668 = vmatpush1.msra.mxu0 %v657
    %1669 = vmatprep.subr.mxu0 %v674
    %1670 = vmatpush1.msra.mxu0 %v673
    %1671 = vmatprep.subr.mxu0 %v690
    %1672 = vmatpush1.msra.mxu0 %v689
    %1673 = vmatprep.subr.mxu0 %v706
    %1674 = vmatpush1.msra.mxu0 %v705
    %1675 = vmatprep.subr.mxu0 %v722
    %1676 = vmatpush1.msra.mxu0 %v721
    %1677 = vmatprep.subr.mxu0 %v738
    %1678 = vmatpush1.msra.mxu0 %v737
    %1679 = vmatprep.subr.mxu0 %v754
    %1680 = vmatpush1.msra.mxu0 %v753
    %1681 = vmatprep.subr.mxu0 %v770
    %1682 = vmatpush1.msra.mxu0 %v769
    %1683 = vmatprep.subr.mxu0 %v786
    %1684 = vmatpush1.msra.mxu0 %v785
    %1685 = vmatprep.subr.mxu0 %v802
    %1686 = vmatpush1.msra.mxu0 %v801
    %1687 = vmatprep.subr.mxu0 %v818
    %1688 = vmatpush1.msra.mxu0 %v817
    %1689 = vmatprep.subr.mxu0 %v834
    %1690 = vmatpush1.msra.mxu0 %v833
    %1691 = vmatprep.subr.mxu0 %v850
    %1692 = vmatpush1.msra.mxu0 %v849
    %1693 = vmatprep.subr.mxu0 %v866
    %1694 = vmatpush1.msra.mxu0 %v865
    %1695 = vmatprep.subr.mxu0 %v882
    %1696 = vmatpush1.msra.mxu0 %v881
    %1697 = vmatprep.subr.mxu0 %v898
    %1698 = vmatpush1.msra.mxu0 %v897
    %1699 = vmatprep.subr.mxu0 %v914
    %1700 = vmatpush1.msra.mxu0 %v913
    %1701 = vmatprep.subr.mxu0 %v930
    %1702 = vmatpush1.msra.mxu0 %v929
    %1703 = vmatprep.subr.mxu0 %v946
    %1704 = vmatpush1.msra.mxu0 %v945
    %1705 = vmatprep.subr.mxu0 %v962
    %1706 = vmatpush1.msra.mxu0 %v961
    %1707 = vmatprep.subr.mxu0 %v978
    %1708 = vmatpush1.msra.mxu0 %v977
    %1709 = vmatprep.subr.mxu0 %v994
    %1710 = vmatpush1.msra.mxu0 %v993
    %1711 = vmatprep.subr.mxu0 %v1010
    %1712 = vmatpush1.msra.mxu0 %v1009
    %1713 = vmatprep.subr.mxu0 %v1026
    %1714 = vmatpush1.msra.mxu0 %v1025
    %1715 = vmatprep.subr.mxu0 %v1042
    %1716 = vmatpush1.msra.mxu0 %v1041
    %1717 = vmatprep.mubr.f32.mxu0 %v542
    %1718 = vmatmul.mubr.f32.gmra.mrb[0].mxu0 %v541
    %v1719 = vpop.f32.mrb[0].mxu0
    %v1720 = vadd.f32 %v1576, %v1719
    %v1721 = vpop.f32.mrb[0].mxu0
    %v1722 = vadd.f32 %v1580, %v1721
    %1723 = vdwg.mxu0
    %1724 = vmatprep.subr.mxu0 %v1058
    %1725 = vmatpush1.msra.mxu0 %v1057
    %1726 = vmatprep.subr.mxu0 %v1074
    %1727 = vmatpush1.msra.mxu0 %v1073
    %1728 = vmatprep.subr.mxu0 %v1090
    %1729 = vmatpush1.msra.mxu0 %v1089
    %1730 = vmatprep.subr.mxu0 %v1106
    %1731 = vmatpush1.msra.mxu0 %v1105
    %1732 = vmatprep.subr.mxu0 %v1122
    %1733 = vmatpush1.msra.mxu0 %v1121
    %1734 = vmatprep.subr.mxu0 %v1138
    %1735 = vmatpush1.msra.mxu0 %v1137
    %1736 = vmatprep.subr.mxu0 %v1154
    %1737 = vmatpush1.msra.mxu0 %v1153
    %1738 = vmatprep.subr.mxu0 %v1170
    %1739 = vmatpush1.msra.mxu0 %v1169
    %1740 = vmatprep.subr.mxu0 %v1186
    %1741 = vmatpush1.msra.mxu0 %v1185
    %1742 = vmatprep.subr.mxu0 %v1202
    %1743 = vmatpush1.msra.mxu0 %v1201
    %1744 = vmatprep.subr.mxu0 %v1218
    %1745 = vmatpush1.msra.mxu0 %v1217
    %1746 = vmatprep.subr.mxu0 %v1234
    %1747 = vmatpush1.msra.mxu0 %v1233
    %1748 = vmatprep.subr.mxu0 %v1250
    %1749 = vmatpush1.msra.mxu0 %v1249
    %1750 = vmatprep.subr.mxu0 %v1266
    %1751 = vmatpush1.msra.mxu0 %v1265
    %1752 = vmatprep.subr.mxu0 %v1282
    %1753 = vmatpush1.msra.mxu0 %v1281
    %1754 = vmatprep.subr.mxu0 %v1298
    %1755 = vmatpush1.msra.mxu0 %v1297
    %1756 = vmatprep.subr.mxu0 %v1314
    %1757 = vmatpush1.msra.mxu0 %v1313
    %1758 = vmatprep.subr.mxu0 %v1330
    %1759 = vmatpush1.msra.mxu0 %v1329
    %1760 = vmatprep.subr.mxu0 %v1346
    %1761 = vmatpush1.msra.mxu0 %v1345
    %1762 = vmatprep.subr.mxu0 %v1362
    %1763 = vmatpush1.msra.mxu0 %v1361
    %1764 = vmatprep.subr.mxu0 %v1378
    %1765 = vmatpush1.msra.mxu0 %v1377
    %1766 = vmatprep.subr.mxu0 %v1394
    %1767 = vmatpush1.msra.mxu0 %v1393
    %1768 = vmatprep.subr.mxu0 %v1410
    %1769 = vmatpush1.msra.mxu0 %v1409
    %1770 = vmatprep.subr.mxu0 %v1426
    %1771 = vmatpush1.msra.mxu0 %v1425
    %1772 = vmatprep.subr.mxu0 %v1442
    %1773 = vmatpush1.msra.mxu0 %v1441
    %1774 = vmatprep.subr.mxu0 %v1458
    %1775 = vmatpush1.msra.mxu0 %v1457
    %1776 = vmatprep.subr.mxu0 %v1474
    %1777 = vmatpush1.msra.mxu0 %v1473
    %1778 = vmatprep.subr.mxu0 %v1490
    %1779 = vmatpush1.msra.mxu0 %v1489
    %1780 = vmatprep.subr.mxu0 %v1506
    %1781 = vmatpush1.msra.mxu0 %v1505
    %1782 = vmatprep.subr.mxu0 %v1522
    %1783 = vmatpush1.msra.mxu0 %v1521
    %1784 = vmatprep.subr.mxu0 %v1538
    %1785 = vmatpush1.msra.mxu0 %v1537
    %1786 = vmatprep.subr.mxu0 %v1554
    %1787 = vmatpush1.msra.mxu0 %v1553
    %1788 = vmatprep.mubr.f32.mxu0 %v544
    %1789 = vmatmul.mubr.f32.gmra.mrb[0].mxu0 %v543
    %v1790 = vpop.f32.mrb[0].mxu0
    %v1791 = vadd.f32 %v1720, %v1790
    %v1792 = vpop.f32.mrb[0].mxu0
    %v1793 = vadd.f32 %v1722, %v1792
    %1794 = vdwg.mxu0
    %1795 = vmatprep.subr.mxu0 %v548
    %1796 = vmatpush1.msra.mxu0 %v547
    %1797 = vmatprep.subr.mxu0 %v564
    %1798 = vmatpush1.msra.mxu0 %v563
    %1799 = vmatprep.subr.mxu0 %v580
    %1800 = vmatpush1.msra.mxu0 %v579
    %1801 = vmatprep.subr.mxu0 %v596
    %1802 = vmatpush1.msra.mxu0 %v595
    %1803 = vmatprep.subr.mxu0 %v612
    %1804 = vmatpush1.msra.mxu0 %v611
    %1805 = vmatprep.subr.mxu0 %v628
    %1806 = vmatpush1.msra.mxu0 %v627
    %1807 = vmatprep.subr.mxu0 %v644
    %1808 = vmatpush1.msra.mxu0 %v643
    %1809 = vmatprep.subr.mxu0 %v660
    %1810 = vmatpush1.msra.mxu0 %v659
    %1811 = vmatprep.subr.mxu0 %v676
    %1812 = vmatpush1.msra.mxu0 %v675
    %1813 = vmatprep.subr.mxu0 %v692
    %1814 = vmatpush1.msra.mxu0 %v691
    %1815 = vmatprep.subr.mxu0 %v708
    %1816 = vmatpush1.msra.mxu0 %v707
    %1817 = vmatprep.subr.mxu0 %v724
    %1818 = vmatpush1.msra.mxu0 %v723
    %1819 = vmatprep.subr.mxu0 %v740
    %1820 = vmatpush1.msra.mxu0 %v739
    %1821 = vmatprep.subr.mxu0 %v756
    %1822 = vmatpush1.msra.mxu0 %v755
    %1823 = vmatprep.subr.mxu0 %v772
    %1824 = vmatpush1.msra.mxu0 %v771
    %1825 = vmatprep.subr.mxu0 %v788
    %1826 = vmatpush1.msra.mxu0 %v787
    %1827 = vmatprep.subr.mxu0 %v804
    %1828 = vmatpush1.msra.mxu0 %v803
    %1829 = vmatprep.subr.mxu0 %v820
    %1830 = vmatpush1.msra.mxu0 %v819
    %1831 = vmatprep.subr.mxu0 %v836
    %1832 = vmatpush1.msra.mxu0 %v835
    %1833 = vmatprep.subr.mxu0 %v852
    %1834 = vmatpush1.msra.mxu0 %v851
    %1835 = vmatprep.subr.mxu0 %v868
    %1836 = vmatpush1.msra.mxu0 %v867
    %1837 = vmatprep.subr.mxu0 %v884
    %1838 = vmatpush1.msra.mxu0 %v883
    %1839 = vmatprep.subr.mxu0 %v900
    %1840 = vmatpush1.msra.mxu0 %v899
    %1841 = vmatprep.subr.mxu0 %v916
    %1842 = vmatpush1.msra.mxu0 %v915
    %1843 = vmatprep.subr.mxu0 %v932
    %1844 = vmatpush1.msra.mxu0 %v931
    %1845 = vmatprep.subr.mxu0 %v948
    %1846 = vmatpush1.msra.mxu0 %v947
    %1847 = vmatprep.subr.mxu0 %v964
    %1848 = vmatpush1.msra.mxu0 %v963
    %1849 = vmatprep.subr.mxu0 %v980
    %1850 = vmatpush1.msra.mxu0 %v979
    %1851 = vmatprep.subr.mxu0 %v996
    %1852 = vmatpush1.msra.mxu0 %v995
    %1853 = vmatprep.subr.mxu0 %v1012
    %1854 = vmatpush1.msra.mxu0 %v1011
    %1855 = vmatprep.subr.mxu0 %v1028
    %1856 = vmatpush1.msra.mxu0 %v1027
    %1857 = vmatprep.subr.mxu0 %v1044
    %1858 = vmatpush1.msra.mxu0 %v1043
    %1859 = vmatprep.mubr.f32.mxu0 %v542
    %1860 = vmatmul.mubr.f32.gmra.mrb[0].mxu0 %v541
    %v1861 = vpop.f32.mrb[0].mxu0
    %v1862 = vadd.f32 %v1584, %v1861
    %v1863 = vpop.f32.mrb[0].mxu0
    %v1864 = vadd.f32 %v1588, %v1863
    %1865 = vdwg.mxu0
    %1866 = vmatprep.subr.mxu0 %v1060
    %1867 = vmatpush1.msra.mxu0 %v1059
    %1868 = vmatprep.subr.mxu0 %v1076
    %1869 = vmatpush1.msra.mxu0 %v1075
    %1870 = vmatprep.subr.mxu0 %v1092
    %1871 = vmatpush1.msra.mxu0 %v1091
    %1872 = vmatprep.subr.mxu0 %v1108
    %1873 = vmatpush1.msra.mxu0 %v1107
    %1874 = vmatprep.subr.mxu0 %v1124
    %1875 = vmatpush1.msra.mxu0 %v1123
    %1876 = vmatprep.subr.mxu0 %v1140
    %1877 = vmatpush1.msra.mxu0 %v1139
    %1878 = vmatprep.subr.mxu0 %v1156
    %1879 = vmatpush1.msra.mxu0 %v1155
    %1880 = vmatprep.subr.mxu0 %v1172
    %1881 = vmatpush1.msra.mxu0 %v1171
    %1882 = vmatprep.subr.mxu0 %v1188
    %1883 = vmatpush1.msra.mxu0 %v1187
    %1884 = vmatprep.subr.mxu0 %v1204
    %1885 = vmatpush1.msra.mxu0 %v1203
    %1886 = vmatprep.subr.mxu0 %v1220
    %1887 = vmatpush1.msra.mxu0 %v1219
    %1888 = vmatprep.subr.mxu0 %v1236
    %1889 = vmatpush1.msra.mxu0 %v1235
    %1890 = vmatprep.subr.mxu0 %v1252
    %1891 = vmatpush1.msra.mxu0 %v1251
    %1892 = vmatprep.subr.mxu0 %v1268
    %1893 = vmatpush1.msra.mxu0 %v1267
    %1894 = vmatprep.subr.mxu0 %v1284
    %1895 = vmatpush1.msra.mxu0 %v1283
    %1896 = vmatprep.subr.mxu0 %v1300
    %1897 = vmatpush1.msra.mxu0 %v1299
    %1898 = vmatprep.subr.mxu0 %v1316
    %1899 = vmatpush1.msra.mxu0 %v1315
    %1900 = vmatprep.subr.mxu0 %v1332
    %1901 = vmatpush1.msra.mxu0 %v1331
    %1902 = vmatprep.subr.mxu0 %v1348
    %1903 = vmatpush1.msra.mxu0 %v1347
    %1904 = vmatprep.subr.mxu0 %v1364
    %1905 = vmatpush1.msra.mxu0 %v1363
    %1906 = vmatprep.subr.mxu0 %v1380
    %1907 = vmatpush1.msra.mxu0 %v1379
    %1908 = vmatprep.subr.mxu0 %v1396
    %1909 = vmatpush1.msra.mxu0 %v1395
    %1910 = vmatprep.subr.mxu0 %v1412
    %1911 = vmatpush1.msra.mxu0 %v1411
    %1912 = vmatprep.subr.mxu0 %v1428
    %1913 = vmatpush1.msra.mxu0 %v1427
    %1914 = vmatprep.subr.mxu0 %v1444
    %1915 = vmatpush1.msra.mxu0 %v1443
    %1916 = vmatprep.subr.mxu0 %v1460
    %1917 = vmatpush1.msra.mxu0 %v1459
    %1918 = vmatprep.subr.mxu0 %v1476
    %1919 = vmatpush1.msra.mxu0 %v1475
    %1920 = vmatprep.subr.mxu0 %v1492
    %1921 = vmatpush1.msra.mxu0 %v1491
    %1922 = vmatprep.subr.mxu0 %v1508
    %1923 = vmatpush1.msra.mxu0 %v1507
    %1924 = vmatprep.subr.mxu0 %v1524
    %1925 = vmatpush1.msra.mxu0 %v1523
    %1926 = vmatprep.subr.mxu0 %v1540
    %1927 = vmatpush1.msra.mxu0 %v1539
    %1928 = vmatprep.subr.mxu0 %v1556
    %1929 = vmatpush1.msra.mxu0 %v1555
    %1930 = vmatprep.mubr.f32.mxu0 %v544
    %1931 = vmatmul.mubr.f32.gmra.mrb[0].mxu0 %v543
    %v1932 = vpop.f32.mrb[0].mxu0
    %v1933 = vadd.f32 %v1862, %v1932
    %v1934 = vpop.f32.mrb[0].mxu0
    %v1935 = vadd.f32 %v1864, %v1934
    %1936 = vdwg.mxu0
    %1937 = vmatprep.subr.mxu0 %v550
    %1938 = vmatpush1.msra.mxu0 %v549
    %1939 = vmatprep.subr.mxu0 %v566
    %1940 = vmatpush1.msra.mxu0 %v565
    %1941 = vmatprep.subr.mxu0 %v582
    %1942 = vmatpush1.msra.mxu0 %v581
    %1943 = vmatprep.subr.mxu0 %v598
    %1944 = vmatpush1.msra.mxu0 %v597
    %1945 = vmatprep.subr.mxu0 %v614
    %1946 = vmatpush1.msra.mxu0 %v613
    %1947 = vmatprep.subr.mxu0 %v630
    %1948 = vmatpush1.msra.mxu0 %v629
    %1949 = vmatprep.subr.mxu0 %v646
    %1950 = vmatpush1.msra.mxu0 %v645
    %1951 = vmatprep.subr.mxu0 %v662
    %1952 = vmatpush1.msra.mxu0 %v661
    %1953 = vmatprep.subr.mxu0 %v678
    %1954 = vmatpush1.msra.mxu0 %v677
    %1955 = vmatprep.subr.mxu0 %v694
    %1956 = vmatpush1.msra.mxu0 %v693
    %1957 = vmatprep.subr.mxu0 %v710
    %1958 = vmatpush1.msra.mxu0 %v709
    %1959 = vmatprep.subr.mxu0 %v726
    %1960 = vmatpush1.msra.mxu0 %v725
    %1961 = vmatprep.subr.mxu0 %v742
    %1962 = vmatpush1.msra.mxu0 %v741
    %1963 = vmatprep.subr.mxu0 %v758
    %1964 = vmatpush1.msra.mxu0 %v757
    %1965 = vmatprep.subr.mxu0 %v774
    %1966 = vmatpush1.msra.mxu0 %v773
    %1967 = vmatprep.subr.mxu0 %v790
    %1968 = vmatpush1.msra.mxu0 %v789
    %1969 = vmatprep.subr.mxu0 %v806
    %1970 = vmatpush1.msra.mxu0 %v805
    %1971 = vmatprep.subr.mxu0 %v822
    %1972 = vmatpush1.msra.mxu0 %v821
    %1973 = vmatprep.subr.mxu0 %v838
    %1974 = vmatpush1.msra.mxu0 %v837
    %1975 = vmatprep.subr.mxu0 %v854
    %1976 = vmatpush1.msra.mxu0 %v853
    %1977 = vmatprep.subr.mxu0 %v870
    %1978 = vmatpush1.msra.mxu0 %v869
    %1979 = vmatprep.subr.mxu0 %v886
    %1980 = vmatpush1.msra.mxu0 %v885
    %1981 = vmatprep.subr.mxu0 %v902
    %1982 = vmatpush1.msra.mxu0 %v901
    %1983 = vmatprep.subr.mxu0 %v918
    %1984 = vmatpush1.msra.mxu0 %v917
    %1985 = vmatprep.subr.mxu0 %v934
    %1986 = vmatpush1.msra.mxu0 %v933
    %1987 = vmatprep.subr.mxu0 %v950
    %1988 = vmatpush1.msra.mxu0 %v949
    %1989 = vmatprep.subr.mxu0 %v966
    %1990 = vmatpush1.msra.mxu0 %v965
    %1991 = vmatprep.subr.mxu0 %v982
    %1992 = vmatpush1.msra.mxu0 %v981
    %1993 = vmatprep.subr.mxu0 %v998
    %1994 = vmatpush1.msra.mxu0 %v997
    %1995 = vmatprep.subr.mxu0 %v1014
    %1996 = vmatpush1.msra.mxu0 %v1013
    %1997 = vmatprep.subr.mxu0 %v1030
    %1998 = vmatpush1.msra.mxu0 %v1029
    %1999 = vmatprep.subr.mxu0 %v1046
    %2000 = vmatpush1.msra.mxu0 %v1045
    %2001 = vmatprep.mubr.f32.mxu0 %v542
    %2002 = vmatmul.mubr.f32.gmra.mrb[0].mxu0 %v541
    %v2003 = vpop.f32.mrb[0].mxu0
    %v2004 = vadd.f32 %v1592, %v2003
    %v2005 = vpop.f32.mrb[0].mxu0
    %v2006 = vadd.f32 %v1596, %v2005
    %2007 = vdwg.mxu0
    %2008 = vmatprep.subr.mxu0 %v1062
    %2009 = vmatpush1.msra.mxu0 %v1061
    %2010 = vmatprep.subr.mxu0 %v1078
    %2011 = vmatpush1.msra.mxu0 %v1077
    %2012 = vmatprep.subr.mxu0 %v1094
    %2013 = vmatpush1.msra.mxu0 %v1093
    %2014 = vmatprep.subr.mxu0 %v1110
    %2015 = vmatpush1.msra.mxu0 %v1109
    %2016 = vmatprep.subr.mxu0 %v1126
    %2017 = vmatpush1.msra.mxu0 %v1125
    %2018 = vmatprep.subr.mxu0 %v1142
    %2019 = vmatpush1.msra.mxu0 %v1141
    %2020 = vmatprep.subr.mxu0 %v1158
    %2021 = vmatpush1.msra.mxu0 %v1157
    %2022 = vmatprep.subr.mxu0 %v1174
    %2023 = vmatpush1.msra.mxu0 %v1173
    %2024 = vmatprep.subr.mxu0 %v1190
    %2025 = vmatpush1.msra.mxu0 %v1189
    %2026 = vmatprep.subr.mxu0 %v1206
    %2027 = vmatpush1.msra.mxu0 %v1205
    %2028 = vmatprep.subr.mxu0 %v1222
    %2029 = vmatpush1.msra.mxu0 %v1221
    %2030 = vmatprep.subr.mxu0 %v1238
    %2031 = vmatpush1.msra.mxu0 %v1237
    %2032 = vmatprep.subr.mxu0 %v1254
    %2033 = vmatpush1.msra.mxu0 %v1253
    %2034 = vmatprep.subr.mxu0 %v1270
    %2035 = vmatpush1.msra.mxu0 %v1269
    %2036 = vmatprep.subr.mxu0 %v1286
    %2037 = vmatpush1.msra.mxu0 %v1285
    %2038 = vmatprep.subr.mxu0 %v1302
    %2039 = vmatpush1.msra.mxu0 %v1301
    %2040 = vmatprep.subr.mxu0 %v1318
    %2041 = vmatpush1.msra.mxu0 %v1317
    %2042 = vmatprep.subr.mxu0 %v1334
    %2043 = vmatpush1.msra.mxu0 %v1333
    %2044 = vmatprep.subr.mxu0 %v1350
    %2045 = vmatpush1.msra.mxu0 %v1349
    %2046 = vmatprep.subr.mxu0 %v1366
    %2047 = vmatpush1.msra.mxu0 %v1365
    %2048 = vmatprep.subr.mxu0 %v1382
    %2049 = vmatpush1.msra.mxu0 %v1381
    %2050 = vmatprep.subr.mxu0 %v1398
    %2051 = vmatpush1.msra.mxu0 %v1397
    %2052 = vmatprep.subr.mxu0 %v1414
    %2053 = vmatpush1.msra.mxu0 %v1413
    %2054 = vmatprep.subr.mxu0 %v1430
    %2055 = vmatpush1.msra.mxu0 %v1429
    %2056 = vmatprep.subr.mxu0 %v1446
    %2057 = vmatpush1.msra.mxu0 %v1445
    %2058 = vmatprep.subr.mxu0 %v1462
    %2059 = vmatpush1.msra.mxu0 %v1461
    %2060 = vmatprep.subr.mxu0 %v1478
    %2061 = vmatpush1.msra.mxu0 %v1477
    %2062 = vmatprep.subr.mxu0 %v1494
    %2063 = vmatpush1.msra.mxu0 %v1493
    %2064 = vmatprep.subr.mxu0 %v1510
    %2065 = vmatpush1.msra.mxu0 %v1509
    %2066 = vmatprep.subr.mxu0 %v1526
    %2067 = vmatpush1.msra.mxu0 %v1525
    %2068 = vmatprep.subr.mxu0 %v1542
    %2069 = vmatpush1.msra.mxu0 %v1541
    %2070 = vmatprep.subr.mxu0 %v1558
    %2071 = vmatpush1.msra.mxu0 %v1557
    %2072 = vmatprep.mubr.f32.mxu0 %v544
    %2073 = vmatmul.mubr.f32.gmra.mrb[0].mxu0 %v543
    %v2074 = vpop.f32.mrb[0].mxu0
    %v2075 = vadd.f32 %v2004, %v2074
    %v2076 = vpop.f32.mrb[0].mxu0
    %v2077 = vadd.f32 %v2006, %v2076
    %2078 = vdwg.mxu0
    %2079 = vmatprep.subr.mxu0 %v552
    %2080 = vmatpush1.msra.mxu0 %v551
    %2081 = vmatprep.subr.mxu0 %v568
    %2082 = vmatpush1.msra.mxu0 %v567
    %2083 = vmatprep.subr.mxu0 %v584
    %2084 = vmatpush1.msra.mxu0 %v583
    %2085 = vmatprep.subr.mxu0 %v600
    %2086 = vmatpush1.msra.mxu0 %v599
    %2087 = vmatprep.subr.mxu0 %v616
    %2088 = vmatpush1.msra.mxu0 %v615
    %2089 = vmatprep.subr.mxu0 %v632
    %2090 = vmatpush1.msra.mxu0 %v631
    %2091 = vmatprep.subr.mxu0 %v648
    %2092 = vmatpush1.msra.mxu0 %v647
    %2093 = vmatprep.subr.mxu0 %v664
    %2094 = vmatpush1.msra.mxu0 %v663
    %2095 = vmatprep.subr.mxu0 %v680
    %2096 = vmatpush1.msra.mxu0 %v679
    %2097 = vmatprep.subr.mxu0 %v696
    %2098 = vmatpush1.msra.mxu0 %v695
    %2099 = vmatprep.subr.mxu0 %v712
    %2100 = vmatpush1.msra.mxu0 %v711
    %2101 = vmatprep.subr.mxu0 %v728
    %2102 = vmatpush1.msra.mxu0 %v727
    %2103 = vmatprep.subr.mxu0 %v744
    %2104 = vmatpush1.msra.mxu0 %v743
    %2105 = vmatprep.subr.mxu0 %v760
    %2106 = vmatpush1.msra.mxu0 %v759
    %2107 = vmatprep.subr.mxu0 %v776
    %2108 = vmatpush1.msra.mxu0 %v775
    %2109 = vmatprep.subr.mxu0 %v792
    %2110 = vmatpush1.msra.mxu0 %v791
    %2111 = vmatprep.subr.mxu0 %v808
    %2112 = vmatpush1.msra.mxu0 %v807
    %2113 = vmatprep.subr.mxu0 %v824
    %2114 = vmatpush1.msra.mxu0 %v823
    %2115 = vmatprep.subr.mxu0 %v840
    %2116 = vmatpush1.msra.mxu0 %v839
    %2117 = vmatprep.subr.mxu0 %v856
    %2118 = vmatpush1.msra.mxu0 %v855
    %2119 = vmatprep.subr.mxu0 %v872
    %2120 = vmatpush1.msra.mxu0 %v871
    %2121 = vmatprep.subr.mxu0 %v888
    %2122 = vmatpush1.msra.mxu0 %v887
    %2123 = vmatprep.subr.mxu0 %v904
    %2124 = vmatpush1.msra.mxu0 %v903
    %2125 = vmatprep.subr.mxu0 %v920
    %2126 = vmatpush1.msra.mxu0 %v919
    %2127 = vmatprep.subr.mxu0 %v936
    %2128 = vmatpush1.msra.mxu0 %v935
    %2129 = vmatprep.subr.mxu0 %v952
    %2130 = vmatpush1.msra.mxu0 %v951
    %2131 = vmatprep.subr.mxu0 %v968
    %2132 = vmatpush1.msra.mxu0 %v967
    %2133 = vmatprep.subr.mxu0 %v984
    %2134 = vmatpush1.msra.mxu0 %v983
    %2135 = vmatprep.subr.mxu0 %v1000
    %2136 = vmatpush1.msra.mxu0 %v999
    %2137 = vmatprep.subr.mxu0 %v1016
    %2138 = vmatpush1.msra.mxu0 %v1015
    %2139 = vmatprep.subr.mxu0 %v1032
    %2140 = vmatpush1.msra.mxu0 %v1031
    %2141 = vmatprep.subr.mxu0 %v1048
    %2142 = vmatpush1.msra.mxu0 %v1047
    %2143 = vmatprep.mubr.f32.mxu0 %v542
    %2144 = vmatmul.mubr.f32.gmra.mrb[0].mxu0 %v541
    %v2145 = vpop.f32.mrb[0].mxu0
    %v2146 = vadd.f32 %v1600, %v2145
    %v2147 = vpop.f32.mrb[0].mxu0
    %v2148 = vadd.f32 %v1604, %v2147
    %2149 = vdwg.mxu0
    %2150 = vmatprep.subr.mxu0 %v1064
    %2151 = vmatpush1.msra.mxu0 %v1063
    %2152 = vmatprep.subr.mxu0 %v1080
    %2153 = vmatpush1.msra.mxu0 %v1079
    %2154 = vmatprep.subr.mxu0 %v1096
    %2155 = vmatpush1.msra.mxu0 %v1095
    %2156 = vmatprep.subr.mxu0 %v1112
    %2157 = vmatpush1.msra.mxu0 %v1111
    %2158 = vmatprep.subr.mxu0 %v1128
    %2159 = vmatpush1.msra.mxu0 %v1127
    %2160 = vmatprep.subr.mxu0 %v1144
    %2161 = vmatpush1.msra.mxu0 %v1143
    %2162 = vmatprep.subr.mxu0 %v1160
    %2163 = vmatpush1.msra.mxu0 %v1159
    %2164 = vmatprep.subr.mxu0 %v1176
    %2165 = vmatpush1.msra.mxu0 %v1175
    %2166 = vmatprep.subr.mxu0 %v1192
    %2167 = vmatpush1.msra.mxu0 %v1191
    %2168 = vmatprep.subr.mxu0 %v1208
    %2169 = vmatpush1.msra.mxu0 %v1207
    %2170 = vmatprep.subr.mxu0 %v1224
    %2171 = vmatpush1.msra.mxu0 %v1223
    %2172 = vmatprep.subr.mxu0 %v1240
    %2173 = vmatpush1.msra.mxu0 %v1239
    %2174 = vmatprep.subr.mxu0 %v1256
    %2175 = vmatpush1.msra.mxu0 %v1255
    %2176 = vmatprep.subr.mxu0 %v1272
    %2177 = vmatpush1.msra.mxu0 %v1271
    %2178 = vmatprep.subr.mxu0 %v1288
    %2179 = vmatpush1.msra.mxu0 %v1287
    %2180 = vmatprep.subr.mxu0 %v1304
    %2181 = vmatpush1.msra.mxu0 %v1303
    %2182 = vmatprep.subr.mxu0 %v1320
    %2183 = vmatpush1.msra.mxu0 %v1319
    %2184 = vmatprep.subr.mxu0 %v1336
    %2185 = vmatpush1.msra.mxu0 %v1335
    %2186 = vmatprep.subr.mxu0 %v1352
    %2187 = vmatpush1.msra.mxu0 %v1351
    %2188 = vmatprep.subr.mxu0 %v1368
    %2189 = vmatpush1.msra.mxu0 %v1367
    %2190 = vmatprep.subr.mxu0 %v1384
    %2191 = vmatpush1.msra.mxu0 %v1383
    %2192 = vmatprep.subr.mxu0 %v1400
    %2193 = vmatpush1.msra.mxu0 %v1399
    %2194 = vmatprep.subr.mxu0 %v1416
    %2195 = vmatpush1.msra.mxu0 %v1415
    %2196 = vmatprep.subr.mxu0 %v1432
    %2197 = vmatpush1.msra.mxu0 %v1431
    %2198 = vmatprep.subr.mxu0 %v1448
    %2199 = vmatpush1.msra.mxu0 %v1447
    %2200 = vmatprep.subr.mxu0 %v1464
    %2201 = vmatpush1.msra.mxu0 %v1463
    %2202 = vmatprep.subr.mxu0 %v1480
    %2203 = vmatpush1.msra.mxu0 %v1479
    %2204 = vmatprep.subr.mxu0 %v1496
    %2205 = vmatpush1.msra.mxu0 %v1495
    %2206 = vmatprep.subr.mxu0 %v1512
    %2207 = vmatpush1.msra.mxu0 %v1511
    %2208 = vmatprep.subr.mxu0 %v1528
    %2209 = vmatpush1.msra.mxu0 %v1527
    %2210 = vmatprep.subr.mxu0 %v1544
    %2211 = vmatpush1.msra.mxu0 %v1543
    %2212 = vmatprep.subr.mxu0 %v1560
    %2213 = vmatpush1.msra.mxu0 %v1559
    %2214 = vmatprep.mubr.f32.mxu0 %v544
    %2215 = vmatmul.mubr.f32.gmra.mrb[0].mxu0 %v543
    %v2216 = vpop.f32.mrb[0].mxu0
    %v2217 = vadd.f32 %v2146, %v2216
    %v2218 = vpop.f32.mrb[0].mxu0
    %v2219 = vadd.f32 %v2148, %v2218
    %2220 = vdwg.mxu0
    %2221 = vmatprep.subr.mxu0 %v554
    %2222 = vmatpush1.msra.mxu0 %v553
    %2223 = vmatprep.subr.mxu0 %v570
    %2224 = vmatpush1.msra.mxu0 %v569
    %2225 = vmatprep.subr.mxu0 %v586
    %2226 = vmatpush1.msra.mxu0 %v585
    %2227 = vmatprep.subr.mxu0 %v602
    %2228 = vmatpush1.msra.mxu0 %v601
    %2229 = vmatprep.subr.mxu0 %v618
    %2230 = vmatpush1.msra.mxu0 %v617
    %2231 = vmatprep.subr.mxu0 %v634
    %2232 = vmatpush1.msra.mxu0 %v633
    %2233 = vmatprep.subr.mxu0 %v650
    %2234 = vmatpush1.msra.mxu0 %v649
    %2235 = vmatprep.subr.mxu0 %v666
    %2236 = vmatpush1.msra.mxu0 %v665
    %2237 = vmatprep.subr.mxu0 %v682
    %2238 = vmatpush1.msra.mxu0 %v681
    %2239 = vmatprep.subr.mxu0 %v698
    %2240 = vmatpush1.msra.mxu0 %v697
    %2241 = vmatprep.subr.mxu0 %v714
    %2242 = vmatpush1.msra.mxu0 %v713
    %2243 = vmatprep.subr.mxu0 %v730
    %2244 = vmatpush1.msra.mxu0 %v729
    %2245 = vmatprep.subr.mxu0 %v746
    %2246 = vmatpush1.msra.mxu0 %v745
    %2247 = vmatprep.subr.mxu0 %v762
    %2248 = vmatpush1.msra.mxu0 %v761
    %2249 = vmatprep.subr.mxu0 %v778
    %2250 = vmatpush1.msra.mxu0 %v777
    %2251 = vmatprep.subr.mxu0 %v794
    %2252 = vmatpush1.msra.mxu0 %v793
    %2253 = vmatprep.subr.mxu0 %v810
    %2254 = vmatpush1.msra.mxu0 %v809
    %2255 = vmatprep.subr.mxu0 %v826
    %2256 = vmatpush1.msra.mxu0 %v825
    %2257 = vmatprep.subr.mxu0 %v842
    %2258 = vmatpush1.msra.mxu0 %v841
    %2259 = vmatprep.subr.mxu0 %v858
    %2260 = vmatpush1.msra.mxu0 %v857
    %2261 = vmatprep.subr.mxu0 %v874
    %2262 = vmatpush1.msra.mxu0 %v873
    %2263 = vmatprep.subr.mxu0 %v890
    %2264 = vmatpush1.msra.mxu0 %v889
    %2265 = vmatprep.subr.mxu0 %v906
    %2266 = vmatpush1.msra.mxu0 %v905
    %2267 = vmatprep.subr.mxu0 %v922
    %2268 = vmatpush1.msra.mxu0 %v921
    %2269 = vmatprep.subr.mxu0 %v938
    %2270 = vmatpush1.msra.mxu0 %v937
    %2271 = vmatprep.subr.mxu0 %v954
    %2272 = vmatpush1.msra.mxu0 %v953
    %2273 = vmatprep.subr.mxu0 %v970
    %2274 = vmatpush1.msra.mxu0 %v969
    %2275 = vmatprep.subr.mxu0 %v986
    %2276 = vmatpush1.msra.mxu0 %v985
    %2277 = vmatprep.subr.mxu0 %v1002
    %2278 = vmatpush1.msra.mxu0 %v1001
    %2279 = vmatprep.subr.mxu0 %v1018
    %2280 = vmatpush1.msra.mxu0 %v1017
    %2281 = vmatprep.subr.mxu0 %v1034
    %2282 = vmatpush1.msra.mxu0 %v1033
    %2283 = vmatprep.subr.mxu0 %v1050
    %2284 = vmatpush1.msra.mxu0 %v1049
    %2285 = vmatprep.mubr.f32.mxu0 %v542
    %2286 = vmatmul.mubr.f32.gmra.mrb[0].mxu0 %v541
    %v2287 = vpop.f32.mrb[0].mxu0
    %v2288 = vadd.f32 %v1608, %v2287
    %v2289 = vpop.f32.mrb[0].mxu0
    %v2290 = vadd.f32 %v1612, %v2289
    %2291 = vdwg.mxu0
    %2292 = vmatprep.subr.mxu0 %v1066
    %2293 = vmatpush1.msra.mxu0 %v1065
    %2294 = vmatprep.subr.mxu0 %v1082
    %2295 = vmatpush1.msra.mxu0 %v1081
    %2296 = vmatprep.subr.mxu0 %v1098
    %2297 = vmatpush1.msra.mxu0 %v1097
    %2298 = vmatprep.subr.mxu0 %v1114
    %2299 = vmatpush1.msra.mxu0 %v1113
    %2300 = vmatprep.subr.mxu0 %v1130
    %2301 = vmatpush1.msra.mxu0 %v1129
    %2302 = vmatprep.subr.mxu0 %v1146
    %2303 = vmatpush1.msra.mxu0 %v1145
    %2304 = vmatprep.subr.mxu0 %v1162
    %2305 = vmatpush1.msra.mxu0 %v1161
    %2306 = vmatprep.subr.mxu0 %v1178
    %2307 = vmatpush1.msra.mxu0 %v1177
    %2308 = vmatprep.subr.mxu0 %v1194
    %2309 = vmatpush1.msra.mxu0 %v1193
    %2310 = vmatprep.subr.mxu0 %v1210
    %2311 = vmatpush1.msra.mxu0 %v1209
    %2312 = vmatprep.subr.mxu0 %v1226
    %2313 = vmatpush1.msra.mxu0 %v1225
    %2314 = vmatprep.subr.mxu0 %v1242
    %2315 = vmatpush1.msra.mxu0 %v1241
    %2316 = vmatprep.subr.mxu0 %v1258
    %2317 = vmatpush1.msra.mxu0 %v1257
    %2318 = vmatprep.subr.mxu0 %v1274
    %2319 = vmatpush1.msra.mxu0 %v1273
    %2320 = vmatprep.subr.mxu0 %v1290
    %2321 = vmatpush1.msra.mxu0 %v1289
    %2322 = vmatprep.subr.mxu0 %v1306
    %2323 = vmatpush1.msra.mxu0 %v1305
    %2324 = vmatprep.subr.mxu0 %v1322
    %2325 = vmatpush1.msra.mxu0 %v1321
    %2326 = vmatprep.subr.mxu0 %v1338
    %2327 = vmatpush1.msra.mxu0 %v1337
    %2328 = vmatprep.subr.mxu0 %v1354
    %2329 = vmatpush1.msra.mxu0 %v1353
    %2330 = vmatprep.subr.mxu0 %v1370
    %2331 = vmatpush1.msra.mxu0 %v1369
    %2332 = vmatprep.subr.mxu0 %v1386
    %2333 = vmatpush1.msra.mxu0 %v1385
    %2334 = vmatprep.subr.mxu0 %v1402
    %2335 = vmatpush1.msra.mxu0 %v1401
    %2336 = vmatprep.subr.mxu0 %v1418
    %2337 = vmatpush1.msra.mxu0 %v1417
    %2338 = vmatprep.subr.mxu0 %v1434
    %2339 = vmatpush1.msra.mxu0 %v1433
    %2340 = vmatprep.subr.mxu0 %v1450
    %2341 = vmatpush1.msra.mxu0 %v1449
    %2342 = vmatprep.subr.mxu0 %v1466
    %2343 = vmatpush1.msra.mxu0 %v1465
    %2344 = vmatprep.subr.mxu0 %v1482
    %2345 = vmatpush1.msra.mxu0 %v1481
    %2346 = vmatprep.subr.mxu0 %v1498
    %2347 = vmatpush1.msra.mxu0 %v1497
    %2348 = vmatprep.subr.mxu0 %v1514
    %2349 = vmatpush1.msra.mxu0 %v1513
    %2350 = vmatprep.subr.mxu0 %v1530
    %2351 = vmatpush1.msra.mxu0 %v1529
    %2352 = vmatprep.subr.mxu0 %v1546
    %2353 = vmatpush1.msra.mxu0 %v1545
    %2354 = vmatprep.subr.mxu0 %v1562
    %2355 = vmatpush1.msra.mxu0 %v1561
    %2356 = vmatprep.mubr.f32.mxu0 %v544
    %2357 = vmatmul.mubr.f32.gmra.mrb[0].mxu0 %v543
    %v2358 = vpop.f32.mrb[0].mxu0
    %v2359 = vadd.f32 %v2288, %v2358
    %v2360 = vpop.f32.mrb[0].mxu0
    %v2361 = vadd.f32 %v2290, %v2360
    %2362 = vdwg.mxu0
    %2363 = vmatprep.subr.mxu0 %v556
    %2364 = vmatpush1.msra.mxu0 %v555
    %2365 = vmatprep.subr.mxu0 %v572
    %2366 = vmatpush1.msra.mxu0 %v571
    %2367 = vmatprep.subr.mxu0 %v588
    %2368 = vmatpush1.msra.mxu0 %v587
    %2369 = vmatprep.subr.mxu0 %v604
    %2370 = vmatpush1.msra.mxu0 %v603
    %2371 = vmatprep.subr.mxu0 %v620
    %2372 = vmatpush1.msra.mxu0 %v619
    %2373 = vmatprep.subr.mxu0 %v636
    %2374 = vmatpush1.msra.mxu0 %v635
    %2375 = vmatprep.subr.mxu0 %v652
    %2376 = vmatpush1.msra.mxu0 %v651
    %2377 = vmatprep.subr.mxu0 %v668
    %2378 = vmatpush1.msra.mxu0 %v667
    %2379 = vmatprep.subr.mxu0 %v684
    %2380 = vmatpush1.msra.mxu0 %v683
    %2381 = vmatprep.subr.mxu0 %v700
    %2382 = vmatpush1.msra.mxu0 %v699
    %2383 = vmatprep.subr.mxu0 %v716
    %2384 = vmatpush1.msra.mxu0 %v715
    %2385 = vmatprep.subr.mxu0 %v732
    %2386 = vmatpush1.msra.mxu0 %v731
    %2387 = vmatprep.subr.mxu0 %v748
    %2388 = vmatpush1.msra.mxu0 %v747
    %2389 = vmatprep.subr.mxu0 %v764
    %2390 = vmatpush1.msra.mxu0 %v763
    %2391 = vmatprep.subr.mxu0 %v780
    %2392 = vmatpush1.msra.mxu0 %v779
    %2393 = vmatprep.subr.mxu0 %v796
    %2394 = vmatpush1.msra.mxu0 %v795
    %2395 = vmatprep.subr.mxu0 %v812
    %2396 = vmatpush1.msra.mxu0 %v811
    %2397 = vmatprep.subr.mxu0 %v828
    %2398 = vmatpush1.msra.mxu0 %v827
    %2399 = vmatprep.subr.mxu0 %v844
    %2400 = vmatpush1.msra.mxu0 %v843
    %2401 = vmatprep.subr.mxu0 %v860
    %2402 = vmatpush1.msra.mxu0 %v859
    %2403 = vmatprep.subr.mxu0 %v876
    %2404 = vmatpush1.msra.mxu0 %v875
    %2405 = vmatprep.subr.mxu0 %v892
    %2406 = vmatpush1.msra.mxu0 %v891
    %2407 = vmatprep.subr.mxu0 %v908
    %2408 = vmatpush1.msra.mxu0 %v907
    %2409 = vmatprep.subr.mxu0 %v924
    %2410 = vmatpush1.msra.mxu0 %v923
    %2411 = vmatprep.subr.mxu0 %v940
    %2412 = vmatpush1.msra.mxu0 %v939
    %2413 = vmatprep.subr.mxu0 %v956
    %2414 = vmatpush1.msra.mxu0 %v955
    %2415 = vmatprep.subr.mxu0 %v972
    %2416 = vmatpush1.msra.mxu0 %v971
    %2417 = vmatprep.subr.mxu0 %v988
    %2418 = vmatpush1.msra.mxu0 %v987
    %2419 = vmatprep.subr.mxu0 %v1004
    %2420 = vmatpush1.msra.mxu0 %v1003
    %2421 = vmatprep.subr.mxu0 %v1020
    %2422 = vmatpush1.msra.mxu0 %v1019
    %2423 = vmatprep.subr.mxu0 %v1036
    %2424 = vmatpush1.msra.mxu0 %v1035
    %2425 = vmatprep.subr.mxu0 %v1052
    %2426 = vmatpush1.msra.mxu0 %v1051
    %2427 = vmatprep.mubr.f32.mxu0 %v542
    %2428 = vmatmul.mubr.f32.gmra.mrb[0].mxu0 %v541
    %v2429 = vpop.f32.mrb[0].mxu0
    %v2430 = vadd.f32 %v1616, %v2429
    %v2431 = vpop.f32.mrb[0].mxu0
    %v2432 = vadd.f32 %v1620, %v2431
    %2433 = vdwg.mxu0
    %2434 = vmatprep.subr.mxu0 %v1068
    %2435 = vmatpush1.msra.mxu0 %v1067
    %2436 = vmatprep.subr.mxu0 %v1084
    %2437 = vmatpush1.msra.mxu0 %v1083
    %2438 = vmatprep.subr.mxu0 %v1100
    %2439 = vmatpush1.msra.mxu0 %v1099
    %2440 = vmatprep.subr.mxu0 %v1116
    %2441 = vmatpush1.msra.mxu0 %v1115
    %2442 = vmatprep.subr.mxu0 %v1132
    %2443 = vmatpush1.msra.mxu0 %v1131
    %2444 = vmatprep.subr.mxu0 %v1148
    %2445 = vmatpush1.msra.mxu0 %v1147
    %2446 = vmatprep.subr.mxu0 %v1164
    %2447 = vmatpush1.msra.mxu0 %v1163
    %2448 = vmatprep.subr.mxu0 %v1180
    %2449 = vmatpush1.msra.mxu0 %v1179
    %2450 = vmatprep.subr.mxu0 %v1196
    %2451 = vmatpush1.msra.mxu0 %v1195
    %2452 = vmatprep.subr.mxu0 %v1212
    %2453 = vmatpush1.msra.mxu0 %v1211
    %2454 = vmatprep.subr.mxu0 %v1228
    %2455 = vmatpush1.msra.mxu0 %v1227
    %2456 = vmatprep.subr.mxu0 %v1244
    %2457 = vmatpush1.msra.mxu0 %v1243
    %2458 = vmatprep.subr.mxu0 %v1260
    %2459 = vmatpush1.msra.mxu0 %v1259
    %2460 = vmatprep.subr.mxu0 %v1276
    %2461 = vmatpush1.msra.mxu0 %v1275
    %2462 = vmatprep.subr.mxu0 %v1292
    %2463 = vmatpush1.msra.mxu0 %v1291
    %2464 = vmatprep.subr.mxu0 %v1308
    %2465 = vmatpush1.msra.mxu0 %v1307
    %2466 = vmatprep.subr.mxu0 %v1324
    %2467 = vmatpush1.msra.mxu0 %v1323
    %2468 = vmatprep.subr.mxu0 %v1340
    %2469 = vmatpush1.msra.mxu0 %v1339
    %2470 = vmatprep.subr.mxu0 %v1356
    %2471 = vmatpush1.msra.mxu0 %v1355
    %2472 = vmatprep.subr.mxu0 %v1372
    %2473 = vmatpush1.msra.mxu0 %v1371
    %2474 = vmatprep.subr.mxu0 %v1388
    %2475 = vmatpush1.msra.mxu0 %v1387
    %2476 = vmatprep.subr.mxu0 %v1404
    %2477 = vmatpush1.msra.mxu0 %v1403
    %2478 = vmatprep.subr.mxu0 %v1420
    %2479 = vmatpush1.msra.mxu0 %v1419
    %2480 = vmatprep.subr.mxu0 %v1436
    %2481 = vmatpush1.msra.mxu0 %v1435
    %2482 = vmatprep.subr.mxu0 %v1452
    %2483 = vmatpush1.msra.mxu0 %v1451
    %2484 = vmatprep.subr.mxu0 %v1468
    %2485 = vmatpush1.msra.mxu0 %v1467
    %2486 = vmatprep.subr.mxu0 %v1484
    %2487 = vmatpush1.msra.mxu0 %v1483
    %2488 = vmatprep.subr.mxu0 %v1500
    %2489 = vmatpush1.msra.mxu0 %v1499
    %2490 = vmatprep.subr.mxu0 %v1516
    %2491 = vmatpush1.msra.mxu0 %v1515
    %2492 = vmatprep.subr.mxu0 %v1532
    %2493 = vmatpush1.msra.mxu0 %v1531
    %2494 = vmatprep.subr.mxu0 %v1548
    %2495 = vmatpush1.msra.mxu0 %v1547
    %2496 = vmatprep.subr.mxu0 %v1564
    %2497 = vmatpush1.msra.mxu0 %v1563
    %2498 = vmatprep.mubr.f32.mxu0 %v544
    %2499 = vmatmul.mubr.f32.gmra.mrb[0].mxu0 %v543
    %v2500 = vpop.f32.mrb[0].mxu0
    %v2501 = vadd.f32 %v2430, %v2500
    %v2502 = vpop.f32.mrb[0].mxu0
    %v2503 = vadd.f32 %v2432, %v2502
    %2504 = vdwg.mxu0
    %2505 = vmatprep.subr.mxu0 %v558
    %2506 = vmatpush1.msra.mxu0 %v557
    %2507 = vmatprep.subr.mxu0 %v574
    %2508 = vmatpush1.msra.mxu0 %v573
    %2509 = vmatprep.subr.mxu0 %v590
    %2510 = vmatpush1.msra.mxu0 %v589
    %2511 = vmatprep.subr.mxu0 %v606
    %2512 = vmatpush1.msra.mxu0 %v605
    %2513 = vmatprep.subr.mxu0 %v622
    %2514 = vmatpush1.msra.mxu0 %v621
    %2515 = vmatprep.subr.mxu0 %v638
    %2516 = vmatpush1.msra.mxu0 %v637
    %2517 = vmatprep.subr.mxu0 %v654
    %2518 = vmatpush1.msra.mxu0 %v653
    %2519 = vmatprep.subr.mxu0 %v670
    %2520 = vmatpush1.msra.mxu0 %v669
    %2521 = vmatprep.subr.mxu0 %v686
    %2522 = vmatpush1.msra.mxu0 %v685
    %2523 = vmatprep.subr.mxu0 %v702
    %2524 = vmatpush1.msra.mxu0 %v701
    %2525 = vmatprep.subr.mxu0 %v718
    %2526 = vmatpush1.msra.mxu0 %v717
    %2527 = vmatprep.subr.mxu0 %v734
    %2528 = vmatpush1.msra.mxu0 %v733
    %2529 = vmatprep.subr.mxu0 %v750
    %2530 = vmatpush1.msra.mxu0 %v749
    %2531 = vmatprep.subr.mxu0 %v766
    %2532 = vmatpush1.msra.mxu0 %v765
    %2533 = vmatprep.subr.mxu0 %v782
    %2534 = vmatpush1.msra.mxu0 %v781
    %2535 = vmatprep.subr.mxu0 %v798
    %2536 = vmatpush1.msra.mxu0 %v797
    %2537 = vmatprep.subr.mxu0 %v814
    %2538 = vmatpush1.msra.mxu0 %v813
    %2539 = vmatprep.subr.mxu0 %v830
    %2540 = vmatpush1.msra.mxu0 %v829
    %2541 = vmatprep.subr.mxu0 %v846
    %2542 = vmatpush1.msra.mxu0 %v845
    %2543 = vmatprep.subr.mxu0 %v862
    %2544 = vmatpush1.msra.mxu0 %v861
    %2545 = vmatprep.subr.mxu0 %v878
    %2546 = vmatpush1.msra.mxu0 %v877
    %2547 = vmatprep.subr.mxu0 %v894
    %2548 = vmatpush1.msra.mxu0 %v893
    %2549 = vmatprep.subr.mxu0 %v910
    %2550 = vmatpush1.msra.mxu0 %v909
    %2551 = vmatprep.subr.mxu0 %v926
    %2552 = vmatpush1.msra.mxu0 %v925
    %2553 = vmatprep.subr.mxu0 %v942
    %2554 = vmatpush1.msra.mxu0 %v941
    %2555 = vmatprep.subr.mxu0 %v958
    %2556 = vmatpush1.msra.mxu0 %v957
    %2557 = vmatprep.subr.mxu0 %v974
    %2558 = vmatpush1.msra.mxu0 %v973
    %2559 = vmatprep.subr.mxu0 %v990
    %2560 = vmatpush1.msra.mxu0 %v989
    %2561 = vmatprep.subr.mxu0 %v1006
    %2562 = vmatpush1.msra.mxu0 %v1005
    %2563 = vmatprep.subr.mxu0 %v1022
    %2564 = vmatpush1.msra.mxu0 %v1021
    %2565 = vmatprep.subr.mxu0 %v1038
    %2566 = vmatpush1.msra.mxu0 %v1037
    %2567 = vmatprep.subr.mxu0 %v1054
    %2568 = vmatpush1.msra.mxu0 %v1053
    %2569 = vmatprep.mubr.f32.mxu0 %v542
    %2570 = vmatmul.mubr.f32.gmra.mrb[0].mxu0 %v541
    %v2571 = vpop.f32.mrb[0].mxu0
    %v2572 = vadd.f32 %v1624, %v2571
    %v2573 = vpop.f32.mrb[0].mxu0
    %v2574 = vadd.f32 %v1628, %v2573
    %2575 = vdwg.mxu0
    %2576 = vmatprep.subr.mxu0 %v1070
    %2577 = vmatpush1.msra.mxu0 %v1069
    %2578 = vmatprep.subr.mxu0 %v1086
    %2579 = vmatpush1.msra.mxu0 %v1085
    %2580 = vmatprep.subr.mxu0 %v1102
    %2581 = vmatpush1.msra.mxu0 %v1101
    %2582 = vmatprep.subr.mxu0 %v1118
    %2583 = vmatpush1.msra.mxu0 %v1117
    %2584 = vmatprep.subr.mxu0 %v1134
    %2585 = vmatpush1.msra.mxu0 %v1133
    %2586 = vmatprep.subr.mxu0 %v1150
    %2587 = vmatpush1.msra.mxu0 %v1149
    %2588 = vmatprep.subr.mxu0 %v1166
    %2589 = vmatpush1.msra.mxu0 %v1165
    %2590 = vmatprep.subr.mxu0 %v1182
    %2591 = vmatpush1.msra.mxu0 %v1181
    %2592 = vmatprep.subr.mxu0 %v1198
    %2593 = vmatpush1.msra.mxu0 %v1197
    %2594 = vmatprep.subr.mxu0 %v1214
    %2595 = vmatpush1.msra.mxu0 %v1213
    %2596 = vmatprep.subr.mxu0 %v1230
    %2597 = vmatpush1.msra.mxu0 %v1229
    %2598 = vmatprep.subr.mxu0 %v1246
    %2599 = vmatpush1.msra.mxu0 %v1245
    %2600 = vmatprep.subr.mxu0 %v1262
    %2601 = vmatpush1.msra.mxu0 %v1261
    %2602 = vmatprep.subr.mxu0 %v1278
    %2603 = vmatpush1.msra.mxu0 %v1277
    %2604 = vmatprep.subr.mxu0 %v1294
    %2605 = vmatpush1.msra.mxu0 %v1293
    %2606 = vmatprep.subr.mxu0 %v1310
    %2607 = vmatpush1.msra.mxu0 %v1309
    %2608 = vmatprep.subr.mxu0 %v1326
    %2609 = vmatpush1.msra.mxu0 %v1325
    %2610 = vmatprep.subr.mxu0 %v1342
    %2611 = vmatpush1.msra.mxu0 %v1341
    %2612 = vmatprep.subr.mxu0 %v1358
    %2613 = vmatpush1.msra.mxu0 %v1357
    %2614 = vmatprep.subr.mxu0 %v1374
    %2615 = vmatpush1.msra.mxu0 %v1373
    %2616 = vmatprep.subr.mxu0 %v1390
    %2617 = vmatpush1.msra.mxu0 %v1389
    %2618 = vmatprep.subr.mxu0 %v1406
    %2619 = vmatpush1.msra.mxu0 %v1405
    %2620 = vmatprep.subr.mxu0 %v1422
    %2621 = vmatpush1.msra.mxu0 %v1421
    %2622 = vmatprep.subr.mxu0 %v1438
    %2623 = vmatpush1.msra.mxu0 %v1437
    %2624 = vmatprep.subr.mxu0 %v1454
    %2625 = vmatpush1.msra.mxu0 %v1453
    %2626 = vmatprep.subr.mxu0 %v1470
    %2627 = vmatpush1.msra.mxu0 %v1469
    %2628 = vmatprep.subr.mxu0 %v1486
    %2629 = vmatpush1.msra.mxu0 %v1485
    %2630 = vmatprep.subr.mxu0 %v1502
    %2631 = vmatpush1.msra.mxu0 %v1501
    %2632 = vmatprep.subr.mxu0 %v1518
    %2633 = vmatpush1.msra.mxu0 %v1517
    %2634 = vmatprep.subr.mxu0 %v1534
    %2635 = vmatpush1.msra.mxu0 %v1533
    %2636 = vmatprep.subr.mxu0 %v1550
    %2637 = vmatpush1.msra.mxu0 %v1549
    %2638 = vmatprep.subr.mxu0 %v1566
    %2639 = vmatpush1.msra.mxu0 %v1565
    %2640 = vmatprep.mubr.f32.mxu0 %v544
    %2641 = vmatmul.mubr.f32.gmra.mrb[0].mxu0 %v543
    %v2642 = vpop.f32.mrb[0].mxu0
    %v2643 = vadd.f32 %v2572, %v2642
    %v2644 = vpop.f32.mrb[0].mxu0
    %v2645 = vadd.f32 %v2574, %v2644
    %2646 = vdwg.mxu0
    %2647 = vmatprep.subr.mxu0 %v560
    %2648 = vmatpush1.msra.mxu0 %v559
    %2649 = vmatprep.subr.mxu0 %v576
    %2650 = vmatpush1.msra.mxu0 %v575
    %2651 = vmatprep.subr.mxu0 %v592
    %2652 = vmatpush1.msra.mxu0 %v591
    %2653 = vmatprep.subr.mxu0 %v608
    %2654 = vmatpush1.msra.mxu0 %v607
    %2655 = vmatprep.subr.mxu0 %v624
    %2656 = vmatpush1.msra.mxu0 %v623
    %2657 = vmatprep.subr.mxu0 %v640
    %2658 = vmatpush1.msra.mxu0 %v639
    %2659 = vmatprep.subr.mxu0 %v656
    %2660 = vmatpush1.msra.mxu0 %v655
    %2661 = vmatprep.subr.mxu0 %v672
    %2662 = vmatpush1.msra.mxu0 %v671
    %2663 = vmatprep.subr.mxu0 %v688
    %2664 = vmatpush1.msra.mxu0 %v687
    %2665 = vmatprep.subr.mxu0 %v704
    %2666 = vmatpush1.msra.mxu0 %v703
    %2667 = vmatprep.subr.mxu0 %v720
    %2668 = vmatpush1.msra.mxu0 %v719
    %2669 = vmatprep.subr.mxu0 %v736
    %2670 = vmatpush1.msra.mxu0 %v735
    %2671 = vmatprep.subr.mxu0 %v752
    %2672 = vmatpush1.msra.mxu0 %v751
    %2673 = vmatprep.subr.mxu0 %v768
    %2674 = vmatpush1.msra.mxu0 %v767
    %2675 = vmatprep.subr.mxu0 %v784
    %2676 = vmatpush1.msra.mxu0 %v783
    %2677 = vmatprep.subr.mxu0 %v800
    %2678 = vmatpush1.msra.mxu0 %v799
    %2679 = vmatprep.subr.mxu0 %v816
    %2680 = vmatpush1.msra.mxu0 %v815
    %2681 = vmatprep.subr.mxu0 %v832
    %2682 = vmatpush1.msra.mxu0 %v831
    %2683 = vmatprep.subr.mxu0 %v848
    %2684 = vmatpush1.msra.mxu0 %v847
    %2685 = vmatprep.subr.mxu0 %v864
    %2686 = vmatpush1.msra.mxu0 %v863
    %2687 = vmatprep.subr.mxu0 %v880
    %2688 = vmatpush1.msra.mxu0 %v879
    %2689 = vmatprep.subr.mxu0 %v896
    %2690 = vmatpush1.msra.mxu0 %v895
    %2691 = vmatprep.subr.mxu0 %v912
    %2692 = vmatpush1.msra.mxu0 %v911
    %2693 = vmatprep.subr.mxu0 %v928
    %2694 = vmatpush1.msra.mxu0 %v927
    %2695 = vmatprep.subr.mxu0 %v944
    %2696 = vmatpush1.msra.mxu0 %v943
    %2697 = vmatprep.subr.mxu0 %v960
    %2698 = vmatpush1.msra.mxu0 %v959
    %2699 = vmatprep.subr.mxu0 %v976
    %2700 = vmatpush1.msra.mxu0 %v975
    %2701 = vmatprep.subr.mxu0 %v992
    %2702 = vmatpush1.msra.mxu0 %v991
    %2703 = vmatprep.subr.mxu0 %v1008
    %2704 = vmatpush1.msra.mxu0 %v1007
    %2705 = vmatprep.subr.mxu0 %v1024
    %2706 = vmatpush1.msra.mxu0 %v1023
    %2707 = vmatprep.subr.mxu0 %v1040
    %2708 = vmatpush1.msra.mxu0 %v1039
    %2709 = vmatprep.subr.mxu0 %v1056
    %2710 = vmatpush1.msra.mxu0 %v1055
    %2711 = vmatprep.mubr.f32.mxu0 %v542
    %2712 = vmatmul.mubr.f32.gmra.mrb[0].mxu0 %v541
    %v2713 = vpop.f32.mrb[0].mxu0
    %v2714 = vadd.f32 %v1632, %v2713
    %v2715 = vpop.f32.mrb[0].mxu0
    %v2716 = vadd.f32 %v1636, %v2715
    %2717 = vdwg.mxu0
    %2718 = vmatprep.subr.mxu0 %v1072
    %2719 = vmatpush1.msra.mxu0 %v1071
    %2720 = vmatprep.subr.mxu0 %v1088
    %2721 = vmatpush1.msra.mxu0 %v1087
    %2722 = vmatprep.subr.mxu0 %v1104
    %2723 = vmatpush1.msra.mxu0 %v1103
    %2724 = vmatprep.subr.mxu0 %v1120
    %2725 = vmatpush1.msra.mxu0 %v1119
    %2726 = vmatprep.subr.mxu0 %v1136
    %2727 = vmatpush1.msra.mxu0 %v1135
    %2728 = vmatprep.subr.mxu0 %v1152
    %2729 = vmatpush1.msra.mxu0 %v1151
    %2730 = vmatprep.subr.mxu0 %v1168
    %2731 = vmatpush1.msra.mxu0 %v1167
    %2732 = vmatprep.subr.mxu0 %v1184
    %2733 = vmatpush1.msra.mxu0 %v1183
    %2734 = vmatprep.subr.mxu0 %v1200
    %2735 = vmatpush1.msra.mxu0 %v1199
    %2736 = vmatprep.subr.mxu0 %v1216
    %2737 = vmatpush1.msra.mxu0 %v1215
    %2738 = vmatprep.subr.mxu0 %v1232
    %2739 = vmatpush1.msra.mxu0 %v1231
    %2740 = vmatprep.subr.mxu0 %v1248
    %2741 = vmatpush1.msra.mxu0 %v1247
    %2742 = vmatprep.subr.mxu0 %v1264
    %2743 = vmatpush1.msra.mxu0 %v1263
    %2744 = vmatprep.subr.mxu0 %v1280
    %2745 = vmatpush1.msra.mxu0 %v1279
    %2746 = vmatprep.subr.mxu0 %v1296
    %2747 = vmatpush1.msra.mxu0 %v1295
    %2748 = vmatprep.subr.mxu0 %v1312
    %2749 = vmatpush1.msra.mxu0 %v1311
    %2750 = vmatprep.subr.mxu0 %v1328
    %2751 = vmatpush1.msra.mxu0 %v1327
    %2752 = vmatprep.subr.mxu0 %v1344
    %2753 = vmatpush1.msra.mxu0 %v1343
    %2754 = vmatprep.subr.mxu0 %v1360
    %2755 = vmatpush1.msra.mxu0 %v1359
    %2756 = vmatprep.subr.mxu0 %v1376
    %2757 = vmatpush1.msra.mxu0 %v1375
    %2758 = vmatprep.subr.mxu0 %v1392
    %2759 = vmatpush1.msra.mxu0 %v1391
    %2760 = vmatprep.subr.mxu0 %v1408
    %2761 = vmatpush1.msra.mxu0 %v1407
    %2762 = vmatprep.subr.mxu0 %v1424
    %2763 = vmatpush1.msra.mxu0 %v1423
    %2764 = vmatprep.subr.mxu0 %v1440
    %2765 = vmatpush1.msra.mxu0 %v1439
    %2766 = vmatprep.subr.mxu0 %v1456
    %2767 = vmatpush1.msra.mxu0 %v1455
    %2768 = vmatprep.subr.mxu0 %v1472
    %2769 = vmatpush1.msra.mxu0 %v1471
    %2770 = vmatprep.subr.mxu0 %v1488
    %2771 = vmatpush1.msra.mxu0 %v1487
    %2772 = vmatprep.subr.mxu0 %v1504
    %2773 = vmatpush1.msra.mxu0 %v1503
    %2774 = vmatprep.subr.mxu0 %v1520
    %2775 = vmatpush1.msra.mxu0 %v1519
    %2776 = vmatprep.subr.mxu0 %v1536
    %2777 = vmatpush1.msra.mxu0 %v1535
    %2778 = vmatprep.subr.mxu0 %v1552
    %2779 = vmatpush1.msra.mxu0 %v1551
    %2780 = vmatprep.subr.mxu0 %v1568
    %2781 = vmatpush1.msra.mxu0 %v1567
    %2782 = vmatprep.mubr.f32.mxu0 %v544
    %2783 = vmatmul.mubr.f32.gmra.mrb[0].mxu0 %v543
    %v2784 = vpop.f32.mrb[0].mxu0
    %v2785 = vadd.f32 %v2714, %v2784
    %v2786 = vpop.f32.mrb[0].mxu0
    %v2787 = vadd.f32 %v2716, %v2786
    %2788 = vdwg.mxu0
    %vm2789 = vcmp.gt.f32.partialorder %v1791, 0.0
    %vm2790 = vcmp.gt.f32.partialorder %v1793, 0.0
    %vm2791 = vcmp.gt.f32.partialorder %v1933, 0.0
    %vm2792 = vcmp.gt.f32.partialorder %v1935, 0.0
    %vm2793 = vcmp.gt.f32.partialorder %v2075, 0.0
    %vm2794 = vcmp.gt.f32.partialorder %v2077, 0.0
    %vm2795 = vcmp.gt.f32.partialorder %v2217, 0.0
    %vm2796 = vcmp.gt.f32.partialorder %v2219, 0.0
    %vm2797 = vcmp.gt.f32.partialorder %v2359, 0.0
    %vm2798 = vcmp.gt.f32.partialorder %v2361, 0.0
    %vm2799 = vcmp.gt.f32.partialorder %v2501, 0.0
    %vm2800 = vcmp.gt.f32.partialorder %v2503, 0.0
    %vm2801 = vcmp.gt.f32.partialorder %v2643, 0.0
    %vm2802 = vcmp.gt.f32.partialorder %v2645, 0.0
    %vm2803 = vcmp.gt.f32.partialorder %v2785, 0.0
    %vm2804 = vcmp.gt.f32.partialorder %v2787, 0.0
    %v2805 = vmul.f32 %v1791, 0.01
    %v2806 = vmul.f32 %v1793, 0.01
    %v2807 = vmul.f32 %v1933, 0.01
    %v2808 = vmul.f32 %v1935, 0.01
    %v2809 = vmul.f32 %v2075, 0.01
    %v2810 = vmul.f32 %v2077, 0.01
    %v2811 = vmul.f32 %v2217, 0.01
    %v2812 = vmul.f32 %v2219, 0.01
    %v2813 = vmul.f32 %v2359, 0.01
    %v2814 = vmul.f32 %v2361, 0.01
    %v2815 = vmul.f32 %v2501, 0.01
    %v2816 = vmul.f32 %v2503, 0.01
    %v2817 = vmul.f32 %v2643, 0.01
    %v2818 = vmul.f32 %v2645, 0.01
    %v2819 = vmul.f32 %v2785, 0.01
    %v2820 = vmul.f32 %v2787, 0.01
    %v2821 = vsel %vm2789, %v1791, %v2805
    %v2822 = vsel %vm2790, %v1793, %v2806
    %v2823 = vsel %vm2791, %v1933, %v2807
    %v2824 = vsel %vm2792, %v1935, %v2808
    %v2825 = vsel %vm2793, %v2075, %v2809
    %v2826 = vsel %vm2794, %v2077, %v2810
    %v2827 = vsel %vm2795, %v2217, %v2811
    %v2828 = vsel %vm2796, %v2219, %v2812
    %v2829 = vsel %vm2797, %v2359, %v2813
    %v2830 = vsel %vm2798, %v2361, %v2814
    %v2831 = vsel %vm2799, %v2501, %v2815
    %v2832 = vsel %vm2800, %v2503, %v2816
    %v2833 = vsel %vm2801, %v2643, %v2817
    %v2834 = vsel %vm2802, %v2645, %v2818
    %v2835 = vsel %vm2803, %v2785, %v2819
    %v2836 = vsel %vm2804, %v2787, %v2820
    %v2837 = vpack.c.bf16 %v2821, %v2821
    %v2838 = vpack.c.bf16 %v2822, %v2822
    %v2839 = vpack.c.bf16 %v2823, %v2823
    %v2840 = vpack.c.bf16 %v2824, %v2824
    %v2841 = vpack.c.bf16 %v2825, %v2825
    %v2842 = vpack.c.bf16 %v2826, %v2826
    %v2843 = vpack.c.bf16 %v2827, %v2827
    %v2844 = vpack.c.bf16 %v2828, %v2828
    %v2845 = vpack.c.bf16 %v2829, %v2829
    %v2846 = vpack.c.bf16 %v2830, %v2830
    %v2847 = vpack.c.bf16 %v2831, %v2831
    %v2848 = vpack.c.bf16 %v2832, %v2832
    %v2849 = vpack.c.bf16 %v2833, %v2833
    %v2850 = vpack.c.bf16 %v2834, %v2834
    %v2851 = vpack.c.bf16 %v2835, %v2835
    %v2852 = vpack.c.bf16 %v2836, %v2836
    %v2869 = vunpack.c.l.b16 %v2837
    %v2870 = vunpack.c.l.b16 %v2838
    %v2871 = vunpack.c.l.b16 %v2839
    %v2872 = vunpack.c.l.b16 %v2840
    %v2873 = vunpack.c.l.b16 %v2841
    %v2874 = vunpack.c.l.b16 %v2842
    %v2875 = vunpack.c.l.b16 %v2843
    %v2876 = vunpack.c.l.b16 %v2844
    %v2877 = vunpack.c.l.b16 %v2845
    %v2878 = vunpack.c.l.b16 %v2846
    %v2879 = vunpack.c.l.b16 %v2847
    %v2880 = vunpack.c.l.b16 %v2848
    %v2881 = vunpack.c.l.b16 %v2849
    %v2882 = vunpack.c.l.b16 %v2850
    %v2883 = vunpack.c.l.b16 %v2851
    %v2884 = vunpack.c.l.b16 %v2852
    %v2885 = vpack.c.b16 %v2870, %v2869
    %v2886 = vpack.c.b16 %v2872, %v2871
    %v2887 = vpack.c.b16 %v2874, %v2873
    %v2888 = vpack.c.b16 %v2876, %v2875
    %v2889 = vpack.c.b16 %v2878, %v2877
    %v2890 = vpack.c.b16 %v2880, %v2879
    %v2891 = vpack.c.b16 %v2882, %v2881
    %v2892 = vpack.c.b16 %v2884, %v2883
    %2901 = vst [vmem:[#allocation14] sm:$0xff] %v2885
    %2902 = vst [vmem:[#allocation14 + $0x8] sm:$0xff] %v2886
    %2903 = vst [vmem:[#allocation14 + $0x10] sm:$0xff] %v2887
    %2904 = vst [vmem:[#allocation14 + $0x18] sm:$0xff] %v2888
    %2905 = vst [vmem:[#allocation14 + $0x20] sm:$0xff] %v2889
    %2906 = vst [vmem:[#allocation14 + $0x28] sm:$0xff] %v2890
    %2907 = vst [vmem:[#allocation14 + $0x30] sm:$0xff] %v2891
    %2908 = vst [vmem:[#allocation14 + $0x38] sm:$0xff] %v2892
    // Predicated region
    $region58: #{tpu_custom_call.1} parent=1 // pred_check
      _
    $region59: #{tpu_custom_call.1} parent=1 // pred_check_branch
      %2910 = sbr.rel (0) target = $region61
    $region60: #{tpu_custom_call.1} parent=1 // pred_region
      %s2912 = ssub.s32 1024, 1024
      %2913 = vsyncadd [#allocation4], %s2912
      %s2915 = sshll.u32 [#allocation14], 4
      %s2916 = int_to_ptr.vmem [resolvable:$true] %s2915
      %2918 = dma.vmem_to_hbm [thread:$0]  %s2916, 1024, %s7, [#allocation4]
    $region61: #{tpu_custom_call.1} parent=1 // pred_fallthru
      _
    // Predicated region
    $region62: #{tpu_custom_call.1} parent=1 // pred_check
      _
    $region63: #{tpu_custom_call.1} parent=1 // pred_check_branch
      %2920 = sbr.rel (0) target = $region65
    $region64: #{tpu_custom_call.1} parent=1 // pred_region
      %2921 = dma.done [#allocation4], 1024
    $region65: #{tpu_custom_call.1} parent=1 // pred_fallthru
      _
    %2922 = vsyncpa [#allocation3], 1
    %2923 = vsyncpa [#allocation6], 1
    %2924 = vsyncpa [#allocation9], 1
    %2925 = vsyncpa [#allocation12], 1
    %2926 = vsyncpa [#allocation4], 1

</llo_original>
